<compile_context>
chip_gen: v6e
topology: v6e:2x2x1
jax: 0.10.0
libtpu: 0.0.40
codegen_flags: <defaults>
</compile_context>

<pallas_src>
import math

import jax
import jax.numpy as jnp
from jax.experimental import pallas as pl
from jax.experimental.pallas import tpu as pltpu

# ----------------------------- config ---------------------------------------
B = 2            # batch
S = 8            # sequence length
D = 32           # feat_dim
H = 4            # num_head
DH = D // H      # per-head dim
HID = 64         # hid_dim (FFN hidden)
NUM_BLOCKS = 2   # num_enc_block
LN_EPS = 1e-5


# ------------------------- fused Pallas kernel ------------------------------
def _layernorm(y, gamma, beta):
    mu = jnp.mean(y, axis=-1, keepdims=True)
    var = jnp.mean((y - mu) ** 2, axis=-1, keepdims=True)
    return (y - mu) * jax.lax.rsqrt(var + LN_EPS) * gamma + beta


def encoder_kernel(x_ref, w96_ref, w64_ref, w32_ref, vec_ref, o_ref):
    # Whole problem resident in VMEM; single invocation (no grid).
    xf = x_ref[...].astype(jnp.float32)                 # (B*S, D) = (16, 32)

    for blk in range(NUM_BLOCKS):                       # static unroll (=2)
        # ---------------- per-block parameter slabs ---------------------
        p96 = w96_ref[blk]          # (40, 96): wqkv rows 0:32 (scale folded), bqkv row 32
        p64 = w64_ref[blk]          # (40, 64): w1 rows 0:32, bf1 row 32
        p32 = w32_ref[blk]          # (96, 32): wo rows 0:32, w2 rows 32:96
        vec = vec_ref[blk]          # (8, 32):  bo, g1, b1, bf2, g2, b2, pad, pad

        wqkv = p96[0:D, :]
        bqkv = p96[D:D + 1, :]
        w1 = p64[0:D, :]
        bf1 = p64[D:D + 1, :]
        wo = p32[0:D, :]
        w2 = p32[D:D + HID, :]
        bo = vec[0:1, :]
        g1 = vec[1:2, :]
        b1 = vec[2:3, :]
        bf2 = vec[3:4, :]
        g2 = vec[4:5, :]
        b2 = vec[5:6, :]

        # ------------------------- MHSA --------------------------------
        # Fused QKV projection: one (16,32) @ (32,96) matmul (1/sqrt(DH)
        # already folded into the Q columns host-side).
        qkv = jnp.dot(xf, wqkv, preferred_element_type=jnp.float32) + bqkv  # (16, 96)

        def heads(off):
            # gather lane blocks into a single (H*B, S, DH) batch (head-major)
            return jnp.concatenate(
                [qkv[:, off + h * DH: off + (h + 1) * DH].reshape(B, S, DH)
                 for h in range(H)],
                axis=0)

        qh = heads(0)          # (H*B, S, DH) = (8, 8, 8)
        kh = heads(D)
        vh = heads(2 * D)

        # One batched contraction over all B*H (batch, head) pairs.
        s = jnp.einsum("bqd,bkd->bqk", qh, kh,
                       preferred_element_type=jnp.float32)          # (8, 8, 8)
        # TODO(synk): additive mhsa_mask not wired in (mask is None here).
        s = s - jnp.max(s, axis=-1, keepdims=True)
        p = jnp.exp(s)
        p = p * pl.reciprocal(jnp.sum(p, axis=-1, keepdims=True), approx=True)
        o = jnp.einsum("bqk,bkd->bqd", p, vh,
                       preferred_element_type=jnp.float32)          # (8, 8, 8)

        # (H*B, S, DH) -> (B, S, H*DH) -> (B*S, D)
        attn = jnp.concatenate([o[h * B:(h + 1) * B] for h in range(H)],
                               axis=-1).reshape(B * S, D)

        proj = jnp.dot(attn, wo, preferred_element_type=jnp.float32) + bo
        xf = _layernorm(xf + proj, g1, b1)                  # residual + LN

        # -------------------------- FFN --------------------------------
        hid = jnp.dot(xf, w1, preferred_element_type=jnp.float32) + bf1
        hid = jnp.maximum(hid, 0.0)                         # ReLU
        y = jnp.dot(hid, w2, preferred_element_type=jnp.float32) + bf2
        xf = _layernorm(xf + y, g2, b2)                     # residual + LN

    o_ref[...] = xf.astype(o_ref.dtype)


# ------------------------- pallas_call wrapper -------------------------------
@jax.jit
def encoder_forward(x, sp):
    vmem = lambda: pl.BlockSpec(memory_space=pltpu.MemorySpace.VMEM)
    xf = x.reshape(B * S, D)                      # metadata-only XLA reshape
    out = pl.pallas_call(
        encoder_kernel,
        out_shape=jax.ShapeDtypeStruct((B * S, D), x.dtype),
        in_specs=[vmem() for _ in range(5)],
        out_specs=vmem(),
    )(xf, sp["w96"], sp["w64"], sp["w32"], sp["vec"])
    return out.reshape(B, S, D)


# ------------------------- pure-JAX reference --------------------------------
def encoder_reference(x, blocks):
    def ln(y, g, b):
        mu = jnp.mean(y, axis=-1, keepdims=True)
        var = jnp.mean((y - mu) ** 2, axis=-1, keepdims=True)
        return (y - mu) / jnp.sqrt(var + LN_EPS) * g + b

    for p in blocks:
        q = x @ p["wq"] + p["bq"]
        k = x @ p["wk"] + p["bk"]
        v = x @ p["wv"] + p["bv"]
        qh = q.reshape(B, S, H, DH).transpose(0, 2, 1, 3)
        kh = k.reshape(B, S, H, DH).transpose(0, 2, 1, 3)
        vh = v.reshape(B, S, H, DH).transpose(0, 2, 1, 3)
        s = jnp.einsum("bhqd,bhkd->bhqk", qh, kh) / math.sqrt(DH)
        pattn = jax.nn.softmax(s, axis=-1)
        o = jnp.einsum("bhqk,bhkd->bhqd", pattn, vh)
        o = o.transpose(0, 2, 1, 3).reshape(B, S, D)
        x = ln(x + o @ p["wo"] + p["bo"], p["g1"], p["b1ln"])
        h = jax.nn.relu(x @ p["w1"] + p["bf1"])
        x = ln(x + h @ p["w2"] + p["bf2"], p["g2"], p["b2ln"])
    return x


# ------------------------------ params ---------------------------------------
def init_params(key):
    blocks = []
    for _ in range(NUM_BLOCKS):
        key, *ks = jax.random.split(key, 17)

        def nrm(k, shape, s=0.02):
            return s * jax.random.normal(k, shape, jnp.float32)

        p = {
            "wq": nrm(ks[0], (D, D)), "wk": nrm(ks[1], (D, D)),
            "wv": nrm(ks[2], (D, D)), "wo": nrm(ks[3], (D, D)),
            "bq": nrm(ks[4], (1, D)), "bk": nrm(ks[5], (1, D)),
            "bv": nrm(ks[6], (1, D)), "bo": nrm(ks[7], (1, D)),
            "g1": jnp.ones((1, D), jnp.float32) + nrm(ks[8], (1, D)),
            "b1ln": nrm(ks[9], (1, D)),
            "w1": nrm(ks[10], (D, HID)), "bf1": nrm(ks[11], (1, HID)),
            "w2": nrm(ks[12], (HID, D)), "bf2": nrm(ks[13], (1, D)),
            "g2": jnp.ones((1, D), jnp.float32) + nrm(ks[14], (1, D)),
            "b2ln": nrm(ks[15], (1, D)),
        }
        blocks.append(p)
    return blocks


def stack_params(blocks):
    """Pack per-block params into 4 stacked VMEM slabs; fold 1/sqrt(DH) into Q."""
    scale = 1.0 / math.sqrt(DH)
    w96, w64, w32, vecs = [], [], [], []
    for b in blocks:
        wqkv = jnp.concatenate([b["wq"] * scale, b["wk"], b["wv"]], axis=1)  # (32, 96)
        bqkv = jnp.concatenate([b["bq"] * scale, b["bk"], b["bv"]], axis=1)  # (1, 96)
        w96.append(jnp.concatenate(
            [wqkv, bqkv, jnp.zeros((7, 3 * D), jnp.float32)], axis=0))       # (40, 96)
        w64.append(jnp.concatenate(
            [b["w1"], b["bf1"], jnp.zeros((7, HID), jnp.float32)], axis=0))  # (40, 64)
        w32.append(jnp.concatenate([b["wo"], b["w2"]], axis=0))              # (96, 32)
        vecs.append(jnp.concatenate(
            [b["bo"], b["g1"], b["b1ln"], b["bf2"], b["g2"], b["b2ln"],
             jnp.zeros((2, D), jnp.float32)], axis=0))                       # (8, 32)
    return {
        "w96": jnp.stack(w96, axis=0),   # (NB, 40, 96)
        "w64": jnp.stack(w64, axis=0),   # (NB, 40, 64)
        "w32": jnp.stack(w32, axis=0),   # (NB, 96, 32)
        "vec": jnp.stack(vecs, axis=0),  # (NB,  8, 32)
    }


# ------------------------------ main ------------------------------------------
if __name__ == "__main__":
    key = jax.random.PRNGKey(0)
    k_x, k_p = jax.random.split(key)
    x = jax.random.normal(k_x, (B, S, D), jnp.float32)

    blocks = init_params(k_p)
    stacked = stack_params(blocks)

    out = jax.block_until_ready(encoder_forward(x, stacked))
    ref = encoder_reference(x, blocks)

    assert out.shape == (B, S, D)
    # 1e-3 tolerance: only deviation from pure-f32 math is the EUP approx
    # reciprocal in the softmax denominator (error contribution << 1e-3 here).
    assert jnp.allclose(out, ref, atol=1e-3, rtol=1e-3), "mismatch vs reference"

    print("KERNEL_OK")
</pallas_src>

<mosaic_0001>
module attributes {stable_mosaic.version = 11 : i64} {
  func.func @encoder_kernel(%arg0: memref<16x32xf32, #tpu.memory_space<vmem>>, %arg1: memref<2x40x96xf32, #tpu.memory_space<vmem>>, %arg2: memref<2x40x64xf32, #tpu.memory_space<vmem>>, %arg3: memref<2x96x32xf32, #tpu.memory_space<vmem>>, %arg4: memref<2x8x32xf32, #tpu.memory_space<vmem>>, %arg5: memref<16x32xf32, #tpu.memory_space<vmem>>) attributes {dimension_semantics = [], scalar_prefetch = 0 : i64, scratch_operands = 0 : i64, tpu.core_type = #tpu.core_type<tc>} {
    %c0 = arith.constant 0 : index
    %c0_0 = arith.constant 0 : index
    %0 = vector.load %arg0[%c0, %c0_0] : memref<16x32xf32, #tpu.memory_space<vmem>>, vector<16x32xf32>
    %c0_1 = arith.constant 0 : index
    %c0_2 = arith.constant 0 : index
    %c0_3 = arith.constant 0 : index
    %1 = vector.load %arg1[%c0_1, %c0_2, %c0_3] : memref<2x40x96xf32, #tpu.memory_space<vmem>>, vector<1x40x96xf32>
    %2 = vector.shape_cast %1 : vector<1x40x96xf32> to vector<40x96xf32>
    %c0_4 = arith.constant 0 : index
    %c0_5 = arith.constant 0 : index
    %c0_6 = arith.constant 0 : index
    %3 = vector.load %arg2[%c0_4, %c0_5, %c0_6] : memref<2x40x64xf32, #tpu.memory_space<vmem>>, vector<1x40x64xf32>
    %4 = vector.shape_cast %3 : vector<1x40x64xf32> to vector<40x64xf32>
    %c0_7 = arith.constant 0 : index
    %c0_8 = arith.constant 0 : index
    %c0_9 = arith.constant 0 : index
    %5 = vector.load %arg3[%c0_7, %c0_8, %c0_9] : memref<2x96x32xf32, #tpu.memory_space<vmem>>, vector<1x96x32xf32>
    %6 = vector.shape_cast %5 : vector<1x96x32xf32> to vector<96x32xf32>
    %c0_10 = arith.constant 0 : index
    %c0_11 = arith.constant 0 : index
    %c0_12 = arith.constant 0 : index
    %7 = vector.load %arg4[%c0_10, %c0_11, %c0_12] : memref<2x8x32xf32, #tpu.memory_space<vmem>>, vector<1x8x32xf32>
    %8 = vector.shape_cast %7 : vector<1x8x32xf32> to vector<8x32xf32>
    %9 = vector.extract_strided_slice %2 {offsets = [0, 0], sizes = [32, 96], strides = [1, 1]} : vector<40x96xf32> to vector<32x96xf32>
    %10 = vector.extract_strided_slice %2 {offsets = [32, 0], sizes = [1, 96], strides = [1, 1]} : vector<40x96xf32> to vector<1x96xf32>
    %11 = vector.extract_strided_slice %4 {offsets = [0, 0], sizes = [32, 64], strides = [1, 1]} : vector<40x64xf32> to vector<32x64xf32>
    %12 = vector.extract_strided_slice %4 {offsets = [32, 0], sizes = [1, 64], strides = [1, 1]} : vector<40x64xf32> to vector<1x64xf32>
    %13 = vector.extract_strided_slice %6 {offsets = [0, 0], sizes = [32, 32], strides = [1, 1]} : vector<96x32xf32> to vector<32x32xf32>
    %14 = vector.extract_strided_slice %6 {offsets = [32, 0], sizes = [64, 32], strides = [1, 1]} : vector<96x32xf32> to vector<64x32xf32>
    %15 = vector.extract_strided_slice %8 {offsets = [0, 0], sizes = [1, 32], strides = [1, 1]} : vector<8x32xf32> to vector<1x32xf32>
    %16 = vector.extract_strided_slice %8 {offsets = [1, 0], sizes = [1, 32], strides = [1, 1]} : vector<8x32xf32> to vector<1x32xf32>
    %17 = vector.extract_strided_slice %8 {offsets = [2, 0], sizes = [1, 32], strides = [1, 1]} : vector<8x32xf32> to vector<1x32xf32>
    %18 = vector.extract_strided_slice %8 {offsets = [3, 0], sizes = [1, 32], strides = [1, 1]} : vector<8x32xf32> to vector<1x32xf32>
    %19 = vector.extract_strided_slice %8 {offsets = [4, 0], sizes = [1, 32], strides = [1, 1]} : vector<8x32xf32> to vector<1x32xf32>
    %20 = vector.extract_strided_slice %8 {offsets = [5, 0], sizes = [1, 32], strides = [1, 1]} : vector<8x32xf32> to vector<1x32xf32>
    %cst = arith.constant dense<0.000000e+00> : vector<16x96xf32>
    %21 = tpu.matmul %0, %9, %cst {dimension_numbers = #tpu.dot_dimension_numbers<[1], [0], [0], [1], [0, 0, 1, 1], [], []>} : vector<16x32xf32>, vector<32x96xf32>, vector<16x96xf32> -> vector<16x96xf32>
    %22 = vector.broadcast %10 : vector<1x96xf32> to vector<16x96xf32>
    %23 = arith.addf %21, %22 : vector<16x96xf32>
    %24 = vector.extract_strided_slice %23 {offsets = [0, 0], sizes = [16, 8], strides = [1, 1]} : vector<16x96xf32> to vector<16x8xf32>
    %25 = vector.shape_cast %24 : vector<16x8xf32> to vector<2x8x8xf32>
    %26 = vector.extract_strided_slice %23 {offsets = [0, 8], sizes = [16, 8], strides = [1, 1]} : vector<16x96xf32> to vector<16x8xf32>
    %27 = vector.shape_cast %26 : vector<16x8xf32> to vector<2x8x8xf32>
    %28 = vector.extract_strided_slice %23 {offsets = [0, 16], sizes = [16, 8], strides = [1, 1]} : vector<16x96xf32> to vector<16x8xf32>
    %29 = vector.shape_cast %28 : vector<16x8xf32> to vector<2x8x8xf32>
    %30 = vector.extract_strided_slice %23 {offsets = [0, 24], sizes = [16, 8], strides = [1, 1]} : vector<16x96xf32> to vector<16x8xf32>
    %31 = vector.shape_cast %30 : vector<16x8xf32> to vector<2x8x8xf32>
    %32 = tpu.concatenate %25, %27, %29, %31 in 0 : vector<2x8x8xf32>, vector<2x8x8xf32>, vector<2x8x8xf32>, vector<2x8x8xf32> -> vector<8x8x8xf32>
    %33 = vector.extract_strided_slice %23 {offsets = [0, 32], sizes = [16, 8], strides = [1, 1]} : vector<16x96xf32> to vector<16x8xf32>
    %34 = vector.shape_cast %33 : vector<16x8xf32> to vector<2x8x8xf32>
    %35 = vector.extract_strided_slice %23 {offsets = [0, 40], sizes = [16, 8], strides = [1, 1]} : vector<16x96xf32> to vector<16x8xf32>
    %36 = vector.shape_cast %35 : vector<16x8xf32> to vector<2x8x8xf32>
    %37 = vector.extract_strided_slice %23 {offsets = [0, 48], sizes = [16, 8], strides = [1, 1]} : vector<16x96xf32> to vector<16x8xf32>
    %38 = vector.shape_cast %37 : vector<16x8xf32> to vector<2x8x8xf32>
    %39 = vector.extract_strided_slice %23 {offsets = [0, 56], sizes = [16, 8], strides = [1, 1]} : vector<16x96xf32> to vector<16x8xf32>
    %40 = vector.shape_cast %39 : vector<16x8xf32> to vector<2x8x8xf32>
    %41 = tpu.concatenate %34, %36, %38, %40 in 0 : vector<2x8x8xf32>, vector<2x8x8xf32>, vector<2x8x8xf32>, vector<2x8x8xf32> -> vector<8x8x8xf32>
    %42 = vector.extract_strided_slice %23 {offsets = [0, 64], sizes = [16, 8], strides = [1, 1]} : vector<16x96xf32> to vector<16x8xf32>
    %43 = vector.shape_cast %42 : vector<16x8xf32> to vector<2x8x8xf32>
    %44 = vector.extract_strided_slice %23 {offsets = [0, 72], sizes = [16, 8], strides = [1, 1]} : vector<16x96xf32> to vector<16x8xf32>
    %45 = vector.shape_cast %44 : vector<16x8xf32> to vector<2x8x8xf32>
    %46 = vector.extract_strided_slice %23 {offsets = [0, 80], sizes = [16, 8], strides = [1, 1]} : vector<16x96xf32> to vector<16x8xf32>
    %47 = vector.shape_cast %46 : vector<16x8xf32> to vector<2x8x8xf32>
    %48 = vector.extract_strided_slice %23 {offsets = [0, 88], sizes = [16, 8], strides = [1, 1]} : vector<16x96xf32> to vector<16x8xf32>
    %49 = vector.shape_cast %48 : vector<16x8xf32> to vector<2x8x8xf32>
    %50 = tpu.concatenate %43, %45, %47, %49 in 0 : vector<2x8x8xf32>, vector<2x8x8xf32>, vector<2x8x8xf32>, vector<2x8x8xf32> -> vector<8x8x8xf32>
    "tpu.trace_start"() <{level = 10 : i32, message = "bqd,bkd->bqk"}> : () -> ()
    %cst_13 = arith.constant dense<0.000000e+00> : vector<8x8x8xf32>
    %51 = tpu.matmul %32, %41, %cst_13 {dimension_numbers = #tpu.dot_dimension_numbers<[2], [2], [1], [1], [0, 0, 0, 1, 1, 1], [0], [0]>} : vector<8x8x8xf32>, vector<8x8x8xf32>, vector<8x8x8xf32> -> vector<8x8x8xf32>
    "tpu.trace_stop"() : () -> ()
    %cst_14 = arith.constant dense<0xFF800000> : vector<8x8xf32>
    %52 = vector.multi_reduction <maximumf>, %51, %cst_14 [2] : vector<8x8x8xf32> to vector<8x8xf32>
    %53 = vector.shape_cast %52 : vector<8x8xf32> to vector<8x8x1xf32>
    %54 = vector.broadcast %53 : vector<8x8x1xf32> to vector<8x8x8xf32>
    %55 = arith.subf %51, %54 : vector<8x8x8xf32>
    %56 = math.exp %55 : vector<8x8x8xf32>
    %cst_15 = arith.constant dense<0.000000e+00> : vector<8x8xf32>
    %57 = vector.multi_reduction <add>, %56, %cst_15 [2] : vector<8x8x8xf32> to vector<8x8xf32>
    %58 = vector.shape_cast %57 : vector<8x8xf32> to vector<8x8x1xf32>
    %59 = tpu.reciprocal %58 {approx = true} : vector<8x8x1xf32> -> vector<8x8x1xf32>
    %60 = vector.broadcast %59 : vector<8x8x1xf32> to vector<8x8x8xf32>
    %61 = arith.mulf %56, %60 : vector<8x8x8xf32>
    "tpu.trace_start"() <{level = 10 : i32, message = "bqk,bkd->bqd"}> : () -> ()
    %cst_16 = arith.constant dense<0.000000e+00> : vector<8x8x8xf32>
    %62 = tpu.matmul %61, %50, %cst_16 {dimension_numbers = #tpu.dot_dimension_numbers<[2], [1], [1], [2], [0, 0, 0, 1, 1, 2], [0], [0]>} : vector<8x8x8xf32>, vector<8x8x8xf32>, vector<8x8x8xf32> -> vector<8x8x8xf32>
    "tpu.trace_stop"() : () -> ()
    %63 = vector.extract_strided_slice %62 {offsets = [0, 0, 0], sizes = [2, 8, 8], strides = [1, 1, 1]} : vector<8x8x8xf32> to vector<2x8x8xf32>
    %64 = vector.extract_strided_slice %62 {offsets = [2, 0, 0], sizes = [2, 8, 8], strides = [1, 1, 1]} : vector<8x8x8xf32> to vector<2x8x8xf32>
    %65 = vector.extract_strided_slice %62 {offsets = [4, 0, 0], sizes = [2, 8, 8], strides = [1, 1, 1]} : vector<8x8x8xf32> to vector<2x8x8xf32>
    %66 = vector.extract_strided_slice %62 {offsets = [6, 0, 0], sizes = [2, 8, 8], strides = [1, 1, 1]} : vector<8x8x8xf32> to vector<2x8x8xf32>
    %67 = tpu.concatenate %63, %64, %65, %66 in 2 : vector<2x8x8xf32>, vector<2x8x8xf32>, vector<2x8x8xf32>, vector<2x8x8xf32> -> vector<2x8x32xf32>
    %68 = vector.shape_cast %67 : vector<2x8x32xf32> to vector<16x32xf32>
    %cst_17 = arith.constant dense<0.000000e+00> : vector<16x32xf32>
    %69 = tpu.matmul %68, %13, %cst_17 {dimension_numbers = #tpu.dot_dimension_numbers<[1], [0], [0], [1], [0, 0, 1, 1], [], []>} : vector<16x32xf32>, vector<32x32xf32>, vector<16x32xf32> -> vector<16x32xf32>
    %70 = vector.broadcast %15 : vector<1x32xf32> to vector<16x32xf32>
    %71 = arith.addf %69, %70 : vector<16x32xf32>
    %72 = arith.addf %0, %71 : vector<16x32xf32>
    %cst_18 = arith.constant dense<0.000000e+00> : vector<16xf32>
    %73 = vector.multi_reduction <add>, %72, %cst_18 [1] : vector<16x32xf32> to vector<16xf32>
    %74 = vector.shape_cast %73 : vector<16xf32> to vector<16x1xf32>
    %cst_19 = arith.constant 3.200000e+01 : f32
    %75 = vector.broadcast %cst_19 : f32 to vector<16x1xf32>
    %76 = arith.divf %74, %75 : vector<16x1xf32>
    %77 = vector.broadcast %76 : vector<16x1xf32> to vector<16x32xf32>
    %78 = arith.subf %72, %77 : vector<16x32xf32>
    %79 = arith.mulf %78, %78 : vector<16x32xf32>
    %cst_20 = arith.constant dense<0.000000e+00> : vector<16xf32>
    %80 = vector.multi_reduction <add>, %79, %cst_20 [1] : vector<16x32xf32> to vector<16xf32>
    %81 = vector.shape_cast %80 : vector<16xf32> to vector<16x1xf32>
    %cst_21 = arith.constant 3.200000e+01 : f32
    %82 = vector.broadcast %cst_21 : f32 to vector<16x1xf32>
    %83 = arith.divf %81, %82 : vector<16x1xf32>
    %84 = vector.broadcast %76 : vector<16x1xf32> to vector<16x32xf32>
    %85 = arith.subf %72, %84 : vector<16x32xf32>
    %cst_22 = arith.constant 9.99999974E-6 : f32
    %86 = vector.broadcast %cst_22 : f32 to vector<16x1xf32>
    %87 = arith.addf %83, %86 : vector<16x1xf32>
    %88 = math.rsqrt %87 : vector<16x1xf32>
    %89 = vector.broadcast %88 : vector<16x1xf32> to vector<16x32xf32>
    %90 = arith.mulf %85, %89 : vector<16x32xf32>
    %91 = vector.broadcast %16 : vector<1x32xf32> to vector<16x32xf32>
    %92 = arith.mulf %90, %91 : vector<16x32xf32>
    %93 = vector.broadcast %17 : vector<1x32xf32> to vector<16x32xf32>
    %94 = arith.addf %92, %93 : vector<16x32xf32>
    %cst_23 = arith.constant dense<0.000000e+00> : vector<16x64xf32>
    %95 = tpu.matmul %94, %11, %cst_23 {dimension_numbers = #tpu.dot_dimension_numbers<[1], [0], [0], [1], [0, 0, 1, 1], [], []>} : vector<16x32xf32>, vector<32x64xf32>, vector<16x64xf32> -> vector<16x64xf32>
    %96 = vector.broadcast %12 : vector<1x64xf32> to vector<16x64xf32>
    %97 = arith.addf %95, %96 : vector<16x64xf32>
    %cst_24 = arith.constant 0.000000e+00 : f32
    %98 = vector.broadcast %cst_24 : f32 to vector<16x64xf32>
    %99 = arith.maximumf %97, %98 : vector<16x64xf32>
    %cst_25 = arith.constant dense<0.000000e+00> : vector<16x32xf32>
    %100 = tpu.matmul %99, %14, %cst_25 {dimension_numbers = #tpu.dot_dimension_numbers<[1], [0], [0], [1], [0, 0, 1, 1], [], []>} : vector<16x64xf32>, vector<64x32xf32>, vector<16x32xf32> -> vector<16x32xf32>
    %101 = vector.broadcast %18 : vector<1x32xf32> to vector<16x32xf32>
    %102 = arith.addf %100, %101 : vector<16x32xf32>
    %103 = arith.addf %94, %102 : vector<16x32xf32>
    %cst_26 = arith.constant dense<0.000000e+00> : vector<16xf32>
    %104 = vector.multi_reduction <add>, %103, %cst_26 [1] : vector<16x32xf32> to vector<16xf32>
    %105 = vector.shape_cast %104 : vector<16xf32> to vector<16x1xf32>
    %cst_27 = arith.constant 3.200000e+01 : f32
    %106 = vector.broadcast %cst_27 : f32 to vector<16x1xf32>
    %107 = arith.divf %105, %106 : vector<16x1xf32>
    %108 = vector.broadcast %107 : vector<16x1xf32> to vector<16x32xf32>
    %109 = arith.subf %103, %108 : vector<16x32xf32>
    %110 = arith.mulf %109, %109 : vector<16x32xf32>
    %cst_28 = arith.constant dense<0.000000e+00> : vector<16xf32>
    %111 = vector.multi_reduction <add>, %110, %cst_28 [1] : vector<16x32xf32> to vector<16xf32>
    %112 = vector.shape_cast %111 : vector<16xf32> to vector<16x1xf32>
    %cst_29 = arith.constant 3.200000e+01 : f32
    %113 = vector.broadcast %cst_29 : f32 to vector<16x1xf32>
    %114 = arith.divf %112, %113 : vector<16x1xf32>
    %115 = vector.broadcast %107 : vector<16x1xf32> to vector<16x32xf32>
    %116 = arith.subf %103, %115 : vector<16x32xf32>
    %cst_30 = arith.constant 9.99999974E-6 : f32
    %117 = vector.broadcast %cst_30 : f32 to vector<16x1xf32>
    %118 = arith.addf %114, %117 : vector<16x1xf32>
    %119 = math.rsqrt %118 : vector<16x1xf32>
    %120 = vector.broadcast %119 : vector<16x1xf32> to vector<16x32xf32>
    %121 = arith.mulf %116, %120 : vector<16x32xf32>
    %122 = vector.broadcast %19 : vector<1x32xf32> to vector<16x32xf32>
    %123 = arith.mulf %121, %122 : vector<16x32xf32>
    %124 = vector.broadcast %20 : vector<1x32xf32> to vector<16x32xf32>
    %125 = arith.addf %123, %124 : vector<16x32xf32>
    %c1 = arith.constant 1 : index
    %c0_31 = arith.constant 0 : index
    %c0_32 = arith.constant 0 : index
    %126 = vector.load %arg1[%c1, %c0_31, %c0_32] : memref<2x40x96xf32, #tpu.memory_space<vmem>>, vector<1x40x96xf32>
    %127 = vector.shape_cast %126 : vector<1x40x96xf32> to vector<40x96xf32>
    %c1_33 = arith.constant 1 : index
    %c0_34 = arith.constant 0 : index
    %c0_35 = arith.constant 0 : index
    %128 = vector.load %arg2[%c1_33, %c0_34, %c0_35] : memref<2x40x64xf32, #tpu.memory_space<vmem>>, vector<1x40x64xf32>
    %129 = vector.shape_cast %128 : vector<1x40x64xf32> to vector<40x64xf32>
    %c1_36 = arith.constant 1 : index
    %c0_37 = arith.constant 0 : index
    %c0_38 = arith.constant 0 : index
    %130 = vector.load %arg3[%c1_36, %c0_37, %c0_38] : memref<2x96x32xf32, #tpu.memory_space<vmem>>, vector<1x96x32xf32>
    %131 = vector.shape_cast %130 : vector<1x96x32xf32> to vector<96x32xf32>
    %c1_39 = arith.constant 1 : index
    %c0_40 = arith.constant 0 : index
    %c0_41 = arith.constant 0 : index
    %132 = vector.load %arg4[%c1_39, %c0_40, %c0_41] : memref<2x8x32xf32, #tpu.memory_space<vmem>>, vector<1x8x32xf32>
    %133 = vector.shape_cast %132 : vector<1x8x32xf32> to vector<8x32xf32>
    %134 = vector.extract_strided_slice %127 {offsets = [0, 0], sizes = [32, 96], strides = [1, 1]} : vector<40x96xf32> to vector<32x96xf32>
    %135 = vector.extract_strided_slice %127 {offsets = [32, 0], sizes = [1, 96], strides = [1, 1]} : vector<40x96xf32> to vector<1x96xf32>
    %136 = vector.extract_strided_slice %129 {offsets = [0, 0], sizes = [32, 64], strides = [1, 1]} : vector<40x64xf32> to vector<32x64xf32>
    %137 = vector.extract_strided_slice %129 {offsets = [32, 0], sizes = [1, 64], strides = [1, 1]} : vector<40x64xf32> to vector<1x64xf32>
    %138 = vector.extract_strided_slice %131 {offsets = [0, 0], sizes = [32, 32], strides = [1, 1]} : vector<96x32xf32> to vector<32x32xf32>
    %139 = vector.extract_strided_slice %131 {offsets = [32, 0], sizes = [64, 32], strides = [1, 1]} : vector<96x32xf32> to vector<64x32xf32>
    %140 = vector.extract_strided_slice %133 {offsets = [0, 0], sizes = [1, 32], strides = [1, 1]} : vector<8x32xf32> to vector<1x32xf32>
    %141 = vector.extract_strided_slice %133 {offsets = [1, 0], sizes = [1, 32], strides = [1, 1]} : vector<8x32xf32> to vector<1x32xf32>
    %142 = vector.extract_strided_slice %133 {offsets = [2, 0], sizes = [1, 32], strides = [1, 1]} : vector<8x32xf32> to vector<1x32xf32>
    %143 = vector.extract_strided_slice %133 {offsets = [3, 0], sizes = [1, 32], strides = [1, 1]} : vector<8x32xf32> to vector<1x32xf32>
    %144 = vector.extract_strided_slice %133 {offsets = [4, 0], sizes = [1, 32], strides = [1, 1]} : vector<8x32xf32> to vector<1x32xf32>
    %145 = vector.extract_strided_slice %133 {offsets = [5, 0], sizes = [1, 32], strides = [1, 1]} : vector<8x32xf32> to vector<1x32xf32>
    %cst_42 = arith.constant dense<0.000000e+00> : vector<16x96xf32>
    %146 = tpu.matmul %125, %134, %cst_42 {dimension_numbers = #tpu.dot_dimension_numbers<[1], [0], [0], [1], [0, 0, 1, 1], [], []>} : vector<16x32xf32>, vector<32x96xf32>, vector<16x96xf32> -> vector<16x96xf32>
    %147 = vector.broadcast %135 : vector<1x96xf32> to vector<16x96xf32>
    %148 = arith.addf %146, %147 : vector<16x96xf32>
    %149 = vector.extract_strided_slice %148 {offsets = [0, 0], sizes = [16, 8], strides = [1, 1]} : vector<16x96xf32> to vector<16x8xf32>
    %150 = vector.shape_cast %149 : vector<16x8xf32> to vector<2x8x8xf32>
    %151 = vector.extract_strided_slice %148 {offsets = [0, 8], sizes = [16, 8], strides = [1, 1]} : vector<16x96xf32> to vector<16x8xf32>
    %152 = vector.shape_cast %151 : vector<16x8xf32> to vector<2x8x8xf32>
    %153 = vector.extract_strided_slice %148 {offsets = [0, 16], sizes = [16, 8], strides = [1, 1]} : vector<16x96xf32> to vector<16x8xf32>
    %154 = vector.shape_cast %153 : vector<16x8xf32> to vector<2x8x8xf32>
    %155 = vector.extract_strided_slice %148 {offsets = [0, 24], sizes = [16, 8], strides = [1, 1]} : vector<16x96xf32> to vector<16x8xf32>
    %156 = vector.shape_cast %155 : vector<16x8xf32> to vector<2x8x8xf32>
    %157 = tpu.concatenate %150, %152, %154, %156 in 0 : vector<2x8x8xf32>, vector<2x8x8xf32>, vector<2x8x8xf32>, vector<2x8x8xf32> -> vector<8x8x8xf32>
    %158 = vector.extract_strided_slice %148 {offsets = [0, 32], sizes = [16, 8], strides = [1, 1]} : vector<16x96xf32> to vector<16x8xf32>
    %159 = vector.shape_cast %158 : vector<16x8xf32> to vector<2x8x8xf32>
    %160 = vector.extract_strided_slice %148 {offsets = [0, 40], sizes = [16, 8], strides = [1, 1]} : vector<16x96xf32> to vector<16x8xf32>
    %161 = vector.shape_cast %160 : vector<16x8xf32> to vector<2x8x8xf32>
    %162 = vector.extract_strided_slice %148 {offsets = [0, 48], sizes = [16, 8], strides = [1, 1]} : vector<16x96xf32> to vector<16x8xf32>
    %163 = vector.shape_cast %162 : vector<16x8xf32> to vector<2x8x8xf32>
    %164 = vector.extract_strided_slice %148 {offsets = [0, 56], sizes = [16, 8], strides = [1, 1]} : vector<16x96xf32> to vector<16x8xf32>
    %165 = vector.shape_cast %164 : vector<16x8xf32> to vector<2x8x8xf32>
    %166 = tpu.concatenate %159, %161, %163, %165 in 0 : vector<2x8x8xf32>, vector<2x8x8xf32>, vector<2x8x8xf32>, vector<2x8x8xf32> -> vector<8x8x8xf32>
    %167 = vector.extract_strided_slice %148 {offsets = [0, 64], sizes = [16, 8], strides = [1, 1]} : vector<16x96xf32> to vector<16x8xf32>
    %168 = vector.shape_cast %167 : vector<16x8xf32> to vector<2x8x8xf32>
    %169 = vector.extract_strided_slice %148 {offsets = [0, 72], sizes = [16, 8], strides = [1, 1]} : vector<16x96xf32> to vector<16x8xf32>
    %170 = vector.shape_cast %169 : vector<16x8xf32> to vector<2x8x8xf32>
    %171 = vector.extract_strided_slice %148 {offsets = [0, 80], sizes = [16, 8], strides = [1, 1]} : vector<16x96xf32> to vector<16x8xf32>
    %172 = vector.shape_cast %171 : vector<16x8xf32> to vector<2x8x8xf32>
    %173 = vector.extract_strided_slice %148 {offsets = [0, 88], sizes = [16, 8], strides = [1, 1]} : vector<16x96xf32> to vector<16x8xf32>
    %174 = vector.shape_cast %173 : vector<16x8xf32> to vector<2x8x8xf32>
    %175 = tpu.concatenate %168, %170, %172, %174 in 0 : vector<2x8x8xf32>, vector<2x8x8xf32>, vector<2x8x8xf32>, vector<2x8x8xf32> -> vector<8x8x8xf32>
    "tpu.trace_start"() <{level = 10 : i32, message = "bqd,bkd->bqk"}> : () -> ()
    %cst_43 = arith.constant dense<0.000000e+00> : vector<8x8x8xf32>
    %176 = tpu.matmul %157, %166, %cst_43 {dimension_numbers = #tpu.dot_dimension_numbers<[2], [2], [1], [1], [0, 0, 0, 1, 1, 1], [0], [0]>} : vector<8x8x8xf32>, vector<8x8x8xf32>, vector<8x8x8xf32> -> vector<8x8x8xf32>
    "tpu.trace_stop"() : () -> ()
    %cst_44 = arith.constant dense<0xFF800000> : vector<8x8xf32>
    %177 = vector.multi_reduction <maximumf>, %176, %cst_44 [2] : vector<8x8x8xf32> to vector<8x8xf32>
    %178 = vector.shape_cast %177 : vector<8x8xf32> to vector<8x8x1xf32>
    %179 = vector.broadcast %178 : vector<8x8x1xf32> to vector<8x8x8xf32>
    %180 = arith.subf %176, %179 : vector<8x8x8xf32>
    %181 = math.exp %180 : vector<8x8x8xf32>
    %cst_45 = arith.constant dense<0.000000e+00> : vector<8x8xf32>
    %182 = vector.multi_reduction <add>, %181, %cst_45 [2] : vector<8x8x8xf32> to vector<8x8xf32>
    %183 = vector.shape_cast %182 : vector<8x8xf32> to vector<8x8x1xf32>
    %184 = tpu.reciprocal %183 {approx = true} : vector<8x8x1xf32> -> vector<8x8x1xf32>
    %185 = vector.broadcast %184 : vector<8x8x1xf32> to vector<8x8x8xf32>
    %186 = arith.mulf %181, %185 : vector<8x8x8xf32>
    "tpu.trace_start"() <{level = 10 : i32, message = "bqk,bkd->bqd"}> : () -> ()
    %cst_46 = arith.constant dense<0.000000e+00> : vector<8x8x8xf32>
    %187 = tpu.matmul %186, %175, %cst_46 {dimension_numbers = #tpu.dot_dimension_numbers<[2], [1], [1], [2], [0, 0, 0, 1, 1, 2], [0], [0]>} : vector<8x8x8xf32>, vector<8x8x8xf32>, vector<8x8x8xf32> -> vector<8x8x8xf32>
    "tpu.trace_stop"() : () -> ()
    %188 = vector.extract_strided_slice %187 {offsets = [0, 0, 0], sizes = [2, 8, 8], strides = [1, 1, 1]} : vector<8x8x8xf32> to vector<2x8x8xf32>
    %189 = vector.extract_strided_slice %187 {offsets = [2, 0, 0], sizes = [2, 8, 8], strides = [1, 1, 1]} : vector<8x8x8xf32> to vector<2x8x8xf32>
    %190 = vector.extract_strided_slice %187 {offsets = [4, 0, 0], sizes = [2, 8, 8], strides = [1, 1, 1]} : vector<8x8x8xf32> to vector<2x8x8xf32>
    %191 = vector.extract_strided_slice %187 {offsets = [6, 0, 0], sizes = [2, 8, 8], strides = [1, 1, 1]} : vector<8x8x8xf32> to vector<2x8x8xf32>
    %192 = tpu.concatenate %188, %189, %190, %191 in 2 : vector<2x8x8xf32>, vector<2x8x8xf32>, vector<2x8x8xf32>, vector<2x8x8xf32> -> vector<2x8x32xf32>
    %193 = vector.shape_cast %192 : vector<2x8x32xf32> to vector<16x32xf32>
    %cst_47 = arith.constant dense<0.000000e+00> : vector<16x32xf32>
    %194 = tpu.matmul %193, %138, %cst_47 {dimension_numbers = #tpu.dot_dimension_numbers<[1], [0], [0], [1], [0, 0, 1, 1], [], []>} : vector<16x32xf32>, vector<32x32xf32>, vector<16x32xf32> -> vector<16x32xf32>
    %195 = vector.broadcast %140 : vector<1x32xf32> to vector<16x32xf32>
    %196 = arith.addf %194, %195 : vector<16x32xf32>
    %197 = arith.addf %125, %196 : vector<16x32xf32>
    %cst_48 = arith.constant dense<0.000000e+00> : vector<16xf32>
    %198 = vector.multi_reduction <add>, %197, %cst_48 [1] : vector<16x32xf32> to vector<16xf32>
    %199 = vector.shape_cast %198 : vector<16xf32> to vector<16x1xf32>
    %cst_49 = arith.constant 3.200000e+01 : f32
    %200 = vector.broadcast %cst_49 : f32 to vector<16x1xf32>
    %201 = arith.divf %199, %200 : vector<16x1xf32>
    %202 = vector.broadcast %201 : vector<16x1xf32> to vector<16x32xf32>
    %203 = arith.subf %197, %202 : vector<16x32xf32>
    %204 = arith.mulf %203, %203 : vector<16x32xf32>
    %cst_50 = arith.constant dense<0.000000e+00> : vector<16xf32>
    %205 = vector.multi_reduction <add>, %204, %cst_50 [1] : vector<16x32xf32> to vector<16xf32>
    %206 = vector.shape_cast %205 : vector<16xf32> to vector<16x1xf32>
    %cst_51 = arith.constant 3.200000e+01 : f32
    %207 = vector.broadcast %cst_51 : f32 to vector<16x1xf32>
    %208 = arith.divf %206, %207 : vector<16x1xf32>
    %209 = vector.broadcast %201 : vector<16x1xf32> to vector<16x32xf32>
    %210 = arith.subf %197, %209 : vector<16x32xf32>
    %cst_52 = arith.constant 9.99999974E-6 : f32
    %211 = vector.broadcast %cst_52 : f32 to vector<16x1xf32>
    %212 = arith.addf %208, %211 : vector<16x1xf32>
    %213 = math.rsqrt %212 : vector<16x1xf32>
    %214 = vector.broadcast %213 : vector<16x1xf32> to vector<16x32xf32>
    %215 = arith.mulf %210, %214 : vector<16x32xf32>
    %216 = vector.broadcast %141 : vector<1x32xf32> to vector<16x32xf32>
    %217 = arith.mulf %215, %216 : vector<16x32xf32>
    %218 = vector.broadcast %142 : vector<1x32xf32> to vector<16x32xf32>
    %219 = arith.addf %217, %218 : vector<16x32xf32>
    %cst_53 = arith.constant dense<0.000000e+00> : vector<16x64xf32>
    %220 = tpu.matmul %219, %136, %cst_53 {dimension_numbers = #tpu.dot_dimension_numbers<[1], [0], [0], [1], [0, 0, 1, 1], [], []>} : vector<16x32xf32>, vector<32x64xf32>, vector<16x64xf32> -> vector<16x64xf32>
    %221 = vector.broadcast %137 : vector<1x64xf32> to vector<16x64xf32>
    %222 = arith.addf %220, %221 : vector<16x64xf32>
    %cst_54 = arith.constant 0.000000e+00 : f32
    %223 = vector.broadcast %cst_54 : f32 to vector<16x64xf32>
    %224 = arith.maximumf %222, %223 : vector<16x64xf32>
    %cst_55 = arith.constant dense<0.000000e+00> : vector<16x32xf32>
    %225 = tpu.matmul %224, %139, %cst_55 {dimension_numbers = #tpu.dot_dimension_numbers<[1], [0], [0], [1], [0, 0, 1, 1], [], []>} : vector<16x64xf32>, vector<64x32xf32>, vector<16x32xf32> -> vector<16x32xf32>
    %226 = vector.broadcast %143 : vector<1x32xf32> to vector<16x32xf32>
    %227 = arith.addf %225, %226 : vector<16x32xf32>
    %228 = arith.addf %219, %227 : vector<16x32xf32>
    %cst_56 = arith.constant dense<0.000000e+00> : vector<16xf32>
    %229 = vector.multi_reduction <add>, %228, %cst_56 [1] : vector<16x32xf32> to vector<16xf32>
    %230 = vector.shape_cast %229 : vector<16xf32> to vector<16x1xf32>
    %cst_57 = arith.constant 3.200000e+01 : f32
    %231 = vector.broadcast %cst_57 : f32 to vector<16x1xf32>
    %232 = arith.divf %230, %231 : vector<16x1xf32>
    %233 = vector.broadcast %232 : vector<16x1xf32> to vector<16x32xf32>
    %234 = arith.subf %228, %233 : vector<16x32xf32>
    %235 = arith.mulf %234, %234 : vector<16x32xf32>
    %cst_58 = arith.constant dense<0.000000e+00> : vector<16xf32>
    %236 = vector.multi_reduction <add>, %235, %cst_58 [1] : vector<16x32xf32> to vector<16xf32>
    %237 = vector.shape_cast %236 : vector<16xf32> to vector<16x1xf32>
    %cst_59 = arith.constant 3.200000e+01 : f32
    %238 = vector.broadcast %cst_59 : f32 to vector<16x1xf32>
    %239 = arith.divf %237, %238 : vector<16x1xf32>
    %240 = vector.broadcast %232 : vector<16x1xf32> to vector<16x32xf32>
    %241 = arith.subf %228, %240 : vector<16x32xf32>
    %cst_60 = arith.constant 9.99999974E-6 : f32
    %242 = vector.broadcast %cst_60 : f32 to vector<16x1xf32>
    %243 = arith.addf %239, %242 : vector<16x1xf32>
    %244 = math.rsqrt %243 : vector<16x1xf32>
    %245 = vector.broadcast %244 : vector<16x1xf32> to vector<16x32xf32>
    %246 = arith.mulf %241, %245 : vector<16x32xf32>
    %247 = vector.broadcast %144 : vector<1x32xf32> to vector<16x32xf32>
    %248 = arith.mulf %246, %247 : vector<16x32xf32>
    %249 = vector.broadcast %145 : vector<1x32xf32> to vector<16x32xf32>
    %250 = arith.addf %248, %249 : vector<16x32xf32>
    %c0_61 = arith.constant 0 : index
    %c0_62 = arith.constant 0 : index
    %251 = vector.load %arg5[%c0_61, %c0_62] : memref<16x32xf32, #tpu.memory_space<vmem>>, vector<16x32xf32>
    tpu.vector_store %arg5[%c0_61, %c0_62], %250 {strides = array<i32>} : memref<16x32xf32, #tpu.memory_space<vmem>>, vector<16x32xf32>,
    return
  }
}

</mosaic_0001>

<llo_original>
// kernel: encoder_forward.1
$region0: #{encoder_forward.1}
  #allocation0 [shape = 'u32[]', space=smem, size = 0x4, offset = 0x4, fixed_abs, tag = 'smem constant byte address 0x4 - core index']
  #allocation1 [shape = 'u32[144,128]{1,0:T(1,128)}', space=vmem, size = 0x12000, scoped, tag = 'internal scratch']
  %s0 = inlined_call_operand.vmem [shape: f32[16,32], index: 0, kind: input, shape index: {}]
  %s1 = inlined_call_operand.vmem [shape: f32[2,40,96], index: 1, kind: input, shape index: {}]
  %s2 = inlined_call_operand.vmem [shape: f32[2,40,64], index: 2, kind: input, shape index: {}]
  %s3 = inlined_call_operand.vmem [shape: f32[2,96,32], index: 3, kind: input, shape index: {}]
  %s4 = inlined_call_operand.vmem [shape: f32[2,8,32], index: 4, kind: input, shape index: {}]
  %s5 = inlined_call_operand.hbm [shape: f32[16,32], index: 5, kind: output, shape index: {}]
  %s6 = sld [smem:[#allocation0]]
  $region30: #{encoder_forward.1} parent=0
    _
  %s8 = ssub.s32 1, %s6
  %s9 = scalar_select 0, %s8, %s6
  $region1: #{encoder_forward.1} parent=0
    #allocation2 [shape = 'u8[8192]{0}', space=vmem, size = 0x2000, scoped, tag = 'output window, operand 0, single buffered']
    #allocation3 [shape = 's32[1]{0}', space=sflag, size = 0x4, scoped, tag = 'scoped memory for encoder_forward.1']
    %10 = vsyncpa [#allocation3], 0
    // Predicated region
    $region2: #{encoder_forward.1} parent=1 // pred_check
      _
    $region3: #{encoder_forward.1} parent=1 // pred_check_branch
      %12 = sbr.rel (0) target = $region5
    $region4: #{encoder_forward.1} parent=1 // pred_region
      _
    $region5: #{encoder_forward.1} parent=1 // pred_fallthru
      _
    // Predicated region
    $region6: #{encoder_forward.1} parent=1 // pred_check
      _
    $region7: #{encoder_forward.1} parent=1 // pred_check_branch
      %14 = sbr.rel (0) target = $region9
    $region8: #{encoder_forward.1} parent=1 // pred_region
      _
    $region9: #{encoder_forward.1} parent=1 // pred_fallthru
      _
    // Predicated region
    $region10: #{encoder_forward.1} parent=1 // pred_check
      _
    $region11: #{encoder_forward.1} parent=1 // pred_check_branch
      %16 = sbr.rel (0) target = $region13
    $region12: #{encoder_forward.1} parent=1 // pred_region
      _
    $region13: #{encoder_forward.1} parent=1 // pred_fallthru
      _
    // Predicated region
    $region14: #{encoder_forward.1} parent=1 // pred_check
      _
    $region15: #{encoder_forward.1} parent=1 // pred_check_branch
      %18 = sbr.rel (0) target = $region17
    $region16: #{encoder_forward.1} parent=1 // pred_region
      _
    $region17: #{encoder_forward.1} parent=1 // pred_fallthru
      _
    // Predicated region
    $region18: #{encoder_forward.1} parent=1 // pred_check
      _
    $region19: #{encoder_forward.1} parent=1 // pred_check_branch
      %20 = sbr.rel (0) target = $region21
    $region20: #{encoder_forward.1} parent=1 // pred_region
      _
    $region21: #{encoder_forward.1} parent=1 // pred_fallthru
      _
    %v21 = vld [vmem:[%s0] sm:$0xff]
    %v22 = vld [vmem:[%s0 + $0x8] sm:$0xff]
    %v23 = vld [vmem:[%s1] sm:$0xff]
    %v24 = vld [vmem:[%s1 + $0x8] sm:$0xff]
    %v25 = vld [vmem:[%s1 + $0x10] sm:$0xff]
    %v26 = vld [vmem:[%s1 + $0x18] sm:$0xff]
    %v27 = vld [vmem:[%s1 + $0x20] sm:$0xff]
    %v28 = vld [vmem:[%s2] sm:$0xff]
    %v29 = vld [vmem:[%s2 + $0x8] sm:$0xff]
    %v30 = vld [vmem:[%s2 + $0x10] sm:$0xff]
    %v31 = vld [vmem:[%s2 + $0x18] sm:$0xff]
    %v32 = vld [vmem:[%s2 + $0x20] sm:$0xff]
    %v33 = vld [vmem:[%s3] sm:$0xff]
    %v34 = vld [vmem:[%s3 + $0x8] sm:$0xff]
    %v35 = vld [vmem:[%s3 + $0x10] sm:$0xff]
    %v36 = vld [vmem:[%s3 + $0x18] sm:$0xff]
    %v37 = vld [vmem:[%s3 + $0x20] sm:$0xff]
    %v38 = vld [vmem:[%s3 + $0x28] sm:$0xff]
    %v39 = vld [vmem:[%s3 + $0x30] sm:$0xff]
    %v40 = vld [vmem:[%s3 + $0x38] sm:$0xff]
    %v41 = vld [vmem:[%s3 + $0x40] sm:$0xff]
    %v42 = vld [vmem:[%s3 + $0x48] sm:$0xff]
    %v43 = vld [vmem:[%s3 + $0x50] sm:$0xff]
    %v44 = vld [vmem:[%s3 + $0x58] sm:$0xff]
    %v45 = vld [vmem:[%s4] sm:$0xff]
    %v46 = vlaneseq
    %v47 = vshrl.u32 %v46, 7
    %v48 = vsub.s32 0, %v47
    %v49 = vrot.slane %v27, %v48
    %vm50 = vcmask 261120
    %v52 = vsel %vm50, %v21, 0
    %v55 = vsel %vm50, %v22, 0
    %57 = vmatprep.subr.mxu0 0.0
    %58 = vmatpush1.msra.mxu0 0.0
    %59 = vmatprep.subr.mxu0 0.0
    %60 = vmatpush1.msra.mxu0 0.0
    %61 = vmatprep.subr.mxu0 0.0
    %62 = vmatpush1.msra.mxu0 0.0
    %63 = vmatprep.subr.mxu0 0.0
    %64 = vmatpush1.msra.mxu0 0.0
    %65 = vmatprep.subr.mxu0 0.0
    %66 = vmatpush1.msra.mxu0 0.0
    %67 = vmatprep.subr.mxu0 0.0
    %68 = vmatpush1.msra.mxu0 0.0
    %69 = vmatprep.subr.mxu0 0.0
    %70 = vmatpush1.msra.mxu0 0.0
    %71 = vmatprep.subr.mxu0 0.0
    %72 = vmatpush1.msra.mxu0 0.0
    %73 = vmatprep.subr.mxu0 0.0
    %74 = vmatpush1.msra.mxu0 0.0
    %75 = vmatprep.subr.mxu0 0.0
    %76 = vmatpush1.msra.mxu0 0.0
    %77 = vmatprep.subr.mxu0 0.0
    %78 = vmatpush1.msra.mxu0 0.0
    %79 = vmatprep.subr.mxu0 0.0
    %80 = vmatpush1.msra.mxu0 0.0
    %81 = vmatprep.subr.mxu0 0.0
    %82 = vmatpush1.msra.mxu0 %v26
    %83 = vmatprep.subr.mxu0 0.0
    %84 = vmatpush1.msra.mxu0 %v25
    %85 = vmatprep.subr.mxu0 0.0
    %86 = vmatpush1.msra.mxu0 %v24
    %87 = vmatprep.subr.mxu0 0.0
    %88 = vmatpush1.msra.mxu0 %v23
    %89 = vmatprep.subr.mxu0 0.0
    %90 = vmatpush2.msra.mxu0 0.0
    %91 = vmatprep.subr.mxu0 0.0
    %92 = vmatpush2.msra.mxu0 0.0
    %93 = vmatprep.subr.mxu0 0.0
    %94 = vmatpush2.msra.mxu0 0.0
    %95 = vmatprep.subr.mxu0 0.0
    %96 = vmatpush2.msra.mxu0 0.0
    %97 = vmatprep.subr.mxu0 0.0
    %98 = vmatpush2.msra.mxu0 0.0
    %99 = vmatprep.subr.mxu0 0.0
    %100 = vmatpush2.msra.mxu0 0.0
    %101 = vmatprep.subr.mxu0 0.0
    %102 = vmatpush2.msra.mxu0 0.0
    %103 = vmatprep.subr.mxu0 0.0
    %104 = vmatpush2.msra.mxu0 0.0
    %105 = vmatprep.subr.mxu0 0.0
    %106 = vmatpush2.msra.mxu0 0.0
    %107 = vmatprep.subr.mxu0 0.0
    %108 = vmatpush2.msra.mxu0 0.0
    %109 = vmatprep.subr.mxu0 0.0
    %110 = vmatpush2.msra.mxu0 0.0
    %111 = vmatprep.subr.mxu0 0.0
    %112 = vmatpush2.msra.mxu0 0.0
    %113 = vmatprep.subr.mxu0 0.0
    %114 = vmatpush2.msra.mxu0 0.0
    %115 = vmatprep.subr.mxu0 0.0
    %116 = vmatpush2.msra.mxu0 0.0
    %117 = vmatprep.subr.mxu0 0.0
    %118 = vmatpush2.msra.mxu0 0.0
    %119 = vmatprep.subr.mxu0 0.0
    %120 = vmatpush2.msra.mxu0 0.0
    %121 = vmatprep.mubr.f32.mxu0 0.0
    %122 = vmatmul.mubr.f32.gmra.mxu0 %v52
    %v123 = vpop.f32.mrf.mxu0
    %v124 = vadd.f32 %v49, %v123
    %v125 = vpop.f32.mrf.mxu0
    %126 = vmatprep.mubr.f32.mxu0 0.0
    %127 = vmatmul.mubr.f32.gmra.mxu0 %v55
    %v128 = vpop.f32.mrf.mxu0
    %v129 = vadd.f32 %v49, %v128
    %v130 = vpop.f32.mrf.mxu0
    %131 = vdwg.mxu0
    %134 = vrot.lane.b32.xlu0 %v124, 120
    %v135 = vpop.permute.xlu0 %134
    %136 = vrot.lane.b32.xlu0 %v129, 120
    %v137 = vpop.permute.xlu0 %136
    %138 = vrot.lane.b32.xlu0 %v124, 112
    %v139 = vpop.permute.xlu0 %138
    %140 = vrot.lane.b32.xlu0 %v129, 112
    %v141 = vpop.permute.xlu0 %140
    %142 = vrot.lane.b32.xlu0 %v124, 104
    %v143 = vpop.permute.xlu0 %142
    %144 = vrot.lane.b32.xlu0 %v129, 104
    %v145 = vpop.permute.xlu0 %144
    %146 = vrot.lane.b32.xlu0 %v124, 96
    %v147 = vpop.permute.xlu0 %146
    %vm148 = vcmask 64512
    %v149 = vsel %vm148, %v124, 0
    %v151 = vsel %vm148, %v147, 0
    %153 = vmatprep.subr.mxu0 0.0
    %154 = vmatpush1.xpose.msra.mxu0 0.0
    %155 = vmatprep.subr.mxu0 0.0
    %156 = vmatpush1.xpose.msra.mxu0 0.0
    %157 = vmatprep.subr.mxu0 0.0
    %158 = vmatpush1.xpose.msra.mxu0 0.0
    %159 = vmatprep.subr.mxu0 0.0
    %160 = vmatpush1.xpose.msra.mxu0 0.0
    %161 = vmatprep.subr.mxu0 0.0
    %162 = vmatpush1.xpose.msra.mxu0 0.0
    %163 = vmatprep.subr.mxu0 0.0
    %164 = vmatpush1.xpose.msra.mxu0 0.0
    %165 = vmatprep.subr.mxu0 0.0
    %166 = vmatpush1.xpose.msra.mxu0 0.0
    %167 = vmatprep.subr.mxu0 0.0
    %168 = vmatpush1.xpose.msra.mxu0 0.0
    %169 = vmatprep.subr.mxu0 0.0
    %170 = vmatpush1.xpose.msra.mxu0 0.0
    %171 = vmatprep.subr.mxu0 0.0
    %172 = vmatpush1.xpose.msra.mxu0 0.0
    %173 = vmatprep.subr.mxu0 0.0
    %174 = vmatpush1.xpose.msra.mxu0 0.0
    %175 = vmatprep.subr.mxu0 0.0
    %176 = vmatpush1.xpose.msra.mxu0 0.0
    %177 = vmatprep.subr.mxu0 0.0
    %178 = vmatpush1.xpose.msra.mxu0 0.0
    %179 = vmatprep.subr.mxu0 0.0
    %180 = vmatpush1.xpose.msra.mxu0 0.0
    %181 = vmatprep.subr.mxu0 0.0
    %182 = vmatpush1.xpose.msra.mxu0 0.0
    %183 = vmatprep.subr.mxu0 0.0
    %184 = vmatpush1.xpose.msra.mxu0 %v151
    %185 = vmatprep.subr.mxu0 0.0
    %186 = vmatpush2.xpose.msra.mxu0 0.0
    %187 = vmatprep.subr.mxu0 0.0
    %188 = vmatpush2.xpose.msra.mxu0 0.0
    %189 = vmatprep.subr.mxu0 0.0
    %190 = vmatpush2.xpose.msra.mxu0 0.0
    %191 = vmatprep.subr.mxu0 0.0
    %192 = vmatpush2.xpose.msra.mxu0 0.0
    %193 = vmatprep.subr.mxu0 0.0
    %194 = vmatpush2.xpose.msra.mxu0 0.0
    %195 = vmatprep.subr.mxu0 0.0
    %196 = vmatpush2.xpose.msra.mxu0 0.0
    %197 = vmatprep.subr.mxu0 0.0
    %198 = vmatpush2.xpose.msra.mxu0 0.0
    %199 = vmatprep.subr.mxu0 0.0
    %200 = vmatpush2.xpose.msra.mxu0 0.0
    %201 = vmatprep.subr.mxu0 0.0
    %202 = vmatpush2.xpose.msra.mxu0 0.0
    %203 = vmatprep.subr.mxu0 0.0
    %204 = vmatpush2.xpose.msra.mxu0 0.0
    %205 = vmatprep.subr.mxu0 0.0
    %206 = vmatpush2.xpose.msra.mxu0 0.0
    %207 = vmatprep.subr.mxu0 0.0
    %208 = vmatpush2.xpose.msra.mxu0 0.0
    %209 = vmatprep.subr.mxu0 0.0
    %210 = vmatpush2.xpose.msra.mxu0 0.0
    %211 = vmatprep.subr.mxu0 0.0
    %212 = vmatpush2.xpose.msra.mxu0 0.0
    %213 = vmatprep.subr.mxu0 0.0
    %214 = vmatpush2.xpose.msra.mxu0 0.0
    %215 = vmatprep.subr.mxu0 0.0
    %216 = vmatpush2.xpose.msra.mxu0 0.0
    %217 = vmatprep.mubr.f32.mxu0 0.0
    %218 = vmatmul.mubr.f32.gmra.mxu0 %v149
    %v219 = vpop.f32.mrf.mxu0
    %v220 = vadd.f32 0.0, %v219
    %v221 = vpop.f32.mrf.mxu0
    %222 = vdwg.mxu0
    %223 = vrot.lane.b32.xlu0 %v129, 96
    %v224 = vpop.permute.xlu0 %223
    %v225 = vsel %vm148, %v129, 0
    %v227 = vsel %vm148, %v224, 0
    %229 = vmatprep.subr.mxu0 0.0
    %230 = vmatpush1.xpose.msra.mxu0 0.0
    %231 = vmatprep.subr.mxu0 0.0
    %232 = vmatpush1.xpose.msra.mxu0 0.0
    %233 = vmatprep.subr.mxu0 0.0
    %234 = vmatpush1.xpose.msra.mxu0 0.0
    %235 = vmatprep.subr.mxu0 0.0
    %236 = vmatpush1.xpose.msra.mxu0 0.0
    %237 = vmatprep.subr.mxu0 0.0
    %238 = vmatpush1.xpose.msra.mxu0 0.0
    %239 = vmatprep.subr.mxu0 0.0
    %240 = vmatpush1.xpose.msra.mxu0 0.0
    %241 = vmatprep.subr.mxu0 0.0
    %242 = vmatpush1.xpose.msra.mxu0 0.0
    %243 = vmatprep.subr.mxu0 0.0
    %244 = vmatpush1.xpose.msra.mxu0 0.0
    %245 = vmatprep.subr.mxu0 0.0
    %246 = vmatpush1.xpose.msra.mxu0 0.0
    %247 = vmatprep.subr.mxu0 0.0
    %248 = vmatpush1.xpose.msra.mxu0 0.0
    %249 = vmatprep.subr.mxu0 0.0
    %250 = vmatpush1.xpose.msra.mxu0 0.0
    %251 = vmatprep.subr.mxu0 0.0
    %252 = vmatpush1.xpose.msra.mxu0 0.0
    %253 = vmatprep.subr.mxu0 0.0
    %254 = vmatpush1.xpose.msra.mxu0 0.0
    %255 = vmatprep.subr.mxu0 0.0
    %256 = vmatpush1.xpose.msra.mxu0 0.0
    %257 = vmatprep.subr.mxu0 0.0
    %258 = vmatpush1.xpose.msra.mxu0 0.0
    %259 = vmatprep.subr.mxu0 0.0
    %260 = vmatpush1.xpose.msra.mxu0 %v227
    %261 = vmatprep.subr.mxu0 0.0
    %262 = vmatpush2.xpose.msra.mxu0 0.0
    %263 = vmatprep.subr.mxu0 0.0
    %264 = vmatpush2.xpose.msra.mxu0 0.0
    %265 = vmatprep.subr.mxu0 0.0
    %266 = vmatpush2.xpose.msra.mxu0 0.0
    %267 = vmatprep.subr.mxu0 0.0
    %268 = vmatpush2.xpose.msra.mxu0 0.0
    %269 = vmatprep.subr.mxu0 0.0
    %270 = vmatpush2.xpose.msra.mxu0 0.0
    %271 = vmatprep.subr.mxu0 0.0
    %272 = vmatpush2.xpose.msra.mxu0 0.0
    %273 = vmatprep.subr.mxu0 0.0
    %274 = vmatpush2.xpose.msra.mxu0 0.0
    %275 = vmatprep.subr.mxu0 0.0
    %276 = vmatpush2.xpose.msra.mxu0 0.0
    %277 = vmatprep.subr.mxu0 0.0
    %278 = vmatpush2.xpose.msra.mxu0 0.0
    %279 = vmatprep.subr.mxu0 0.0
    %280 = vmatpush2.xpose.msra.mxu0 0.0
    %281 = vmatprep.subr.mxu0 0.0
    %282 = vmatpush2.xpose.msra.mxu0 0.0
    %283 = vmatprep.subr.mxu0 0.0
    %284 = vmatpush2.xpose.msra.mxu0 0.0
    %285 = vmatprep.subr.mxu0 0.0
    %286 = vmatpush2.xpose.msra.mxu0 0.0
    %287 = vmatprep.subr.mxu0 0.0
    %288 = vmatpush2.xpose.msra.mxu0 0.0
    %289 = vmatprep.subr.mxu0 0.0
    %290 = vmatpush2.xpose.msra.mxu0 0.0
    %291 = vmatprep.subr.mxu0 0.0
    %292 = vmatpush2.xpose.msra.mxu0 0.0
    %293 = vmatprep.mubr.f32.mxu0 0.0
    %294 = vmatmul.mubr.f32.gmra.mxu0 %v225
    %v295 = vpop.f32.mrf.mxu0
    %v296 = vadd.f32 0.0, %v295
    %v297 = vpop.f32.mrf.mxu0
    %298 = vdwg.mxu0
    %299 = vrot.lane.b32.xlu0 %v135, 96
    %v300 = vpop.permute.xlu0 %299
    %v301 = vsel %vm148, %v135, 0
    %v303 = vsel %vm148, %v300, 0
    %305 = vmatprep.subr.mxu0 0.0
    %306 = vmatpush1.xpose.msra.mxu0 0.0
    %307 = vmatprep.subr.mxu0 0.0
    %308 = vmatpush1.xpose.msra.mxu0 0.0
    %309 = vmatprep.subr.mxu0 0.0
    %310 = vmatpush1.xpose.msra.mxu0 0.0
    %311 = vmatprep.subr.mxu0 0.0
    %312 = vmatpush1.xpose.msra.mxu0 0.0
    %313 = vmatprep.subr.mxu0 0.0
    %314 = vmatpush1.xpose.msra.mxu0 0.0
    %315 = vmatprep.subr.mxu0 0.0
    %316 = vmatpush1.xpose.msra.mxu0 0.0
    %317 = vmatprep.subr.mxu0 0.0
    %318 = vmatpush1.xpose.msra.mxu0 0.0
    %319 = vmatprep.subr.mxu0 0.0
    %320 = vmatpush1.xpose.msra.mxu0 0.0
    %321 = vmatprep.subr.mxu0 0.0
    %322 = vmatpush1.xpose.msra.mxu0 0.0
    %323 = vmatprep.subr.mxu0 0.0
    %324 = vmatpush1.xpose.msra.mxu0 0.0
    %325 = vmatprep.subr.mxu0 0.0
    %326 = vmatpush1.xpose.msra.mxu0 0.0
    %327 = vmatprep.subr.mxu0 0.0
    %328 = vmatpush1.xpose.msra.mxu0 0.0
    %329 = vmatprep.subr.mxu0 0.0
    %330 = vmatpush1.xpose.msra.mxu0 0.0
    %331 = vmatprep.subr.mxu0 0.0
    %332 = vmatpush1.xpose.msra.mxu0 0.0
    %333 = vmatprep.subr.mxu0 0.0
    %334 = vmatpush1.xpose.msra.mxu0 0.0
    %335 = vmatprep.subr.mxu0 0.0
    %336 = vmatpush1.xpose.msra.mxu0 %v303
    %337 = vmatprep.subr.mxu0 0.0
    %338 = vmatpush2.xpose.msra.mxu0 0.0
    %339 = vmatprep.subr.mxu0 0.0
    %340 = vmatpush2.xpose.msra.mxu0 0.0
    %341 = vmatprep.subr.mxu0 0.0
    %342 = vmatpush2.xpose.msra.mxu0 0.0
    %343 = vmatprep.subr.mxu0 0.0
    %344 = vmatpush2.xpose.msra.mxu0 0.0
    %345 = vmatprep.subr.mxu0 0.0
    %346 = vmatpush2.xpose.msra.mxu0 0.0
    %347 = vmatprep.subr.mxu0 0.0
    %348 = vmatpush2.xpose.msra.mxu0 0.0
    %349 = vmatprep.subr.mxu0 0.0
    %350 = vmatpush2.xpose.msra.mxu0 0.0
    %351 = vmatprep.subr.mxu0 0.0
    %352 = vmatpush2.xpose.msra.mxu0 0.0
    %353 = vmatprep.subr.mxu0 0.0
    %354 = vmatpush2.xpose.msra.mxu0 0.0
    %355 = vmatprep.subr.mxu0 0.0
    %356 = vmatpush2.xpose.msra.mxu0 0.0
    %357 = vmatprep.subr.mxu0 0.0
    %358 = vmatpush2.xpose.msra.mxu0 0.0
    %359 = vmatprep.subr.mxu0 0.0
    %360 = vmatpush2.xpose.msra.mxu0 0.0
    %361 = vmatprep.subr.mxu0 0.0
    %362 = vmatpush2.xpose.msra.mxu0 0.0
    %363 = vmatprep.subr.mxu0 0.0
    %364 = vmatpush2.xpose.msra.mxu0 0.0
    %365 = vmatprep.subr.mxu0 0.0
    %366 = vmatpush2.xpose.msra.mxu0 0.0
    %367 = vmatprep.subr.mxu0 0.0
    %368 = vmatpush2.xpose.msra.mxu0 0.0
    %369 = vmatprep.mubr.f32.mxu0 0.0
    %370 = vmatmul.mubr.f32.gmra.mxu0 %v301
    %v371 = vpop.f32.mrf.mxu0
    %v372 = vadd.f32 0.0, %v371
    %v373 = vpop.f32.mrf.mxu0
    %374 = vdwg.mxu0
    %375 = vrot.lane.b32.xlu0 %v137, 96
    %v376 = vpop.permute.xlu0 %375
    %v377 = vsel %vm148, %v137, 0
    %v379 = vsel %vm148, %v376, 0
    %381 = vmatprep.subr.mxu0 0.0
    %382 = vmatpush1.xpose.msra.mxu0 0.0
    %383 = vmatprep.subr.mxu0 0.0
    %384 = vmatpush1.xpose.msra.mxu0 0.0
    %385 = vmatprep.subr.mxu0 0.0
    %386 = vmatpush1.xpose.msra.mxu0 0.0
    %387 = vmatprep.subr.mxu0 0.0
    %388 = vmatpush1.xpose.msra.mxu0 0.0
    %389 = vmatprep.subr.mxu0 0.0
    %390 = vmatpush1.xpose.msra.mxu0 0.0
    %391 = vmatprep.subr.mxu0 0.0
    %392 = vmatpush1.xpose.msra.mxu0 0.0
    %393 = vmatprep.subr.mxu0 0.0
    %394 = vmatpush1.xpose.msra.mxu0 0.0
    %395 = vmatprep.subr.mxu0 0.0
    %396 = vmatpush1.xpose.msra.mxu0 0.0
    %397 = vmatprep.subr.mxu0 0.0
    %398 = vmatpush1.xpose.msra.mxu0 0.0
    %399 = vmatprep.subr.mxu0 0.0
    %400 = vmatpush1.xpose.msra.mxu0 0.0
    %401 = vmatprep.subr.mxu0 0.0
    %402 = vmatpush1.xpose.msra.mxu0 0.0
    %403 = vmatprep.subr.mxu0 0.0
    %404 = vmatpush1.xpose.msra.mxu0 0.0
    %405 = vmatprep.subr.mxu0 0.0
    %406 = vmatpush1.xpose.msra.mxu0 0.0
    %407 = vmatprep.subr.mxu0 0.0
    %408 = vmatpush1.xpose.msra.mxu0 0.0
    %409 = vmatprep.subr.mxu0 0.0
    %410 = vmatpush1.xpose.msra.mxu0 0.0
    %411 = vmatprep.subr.mxu0 0.0
    %412 = vmatpush1.xpose.msra.mxu0 %v379
    %413 = vmatprep.subr.mxu0 0.0
    %414 = vmatpush2.xpose.msra.mxu0 0.0
    %415 = vmatprep.subr.mxu0 0.0
    %416 = vmatpush2.xpose.msra.mxu0 0.0
    %417 = vmatprep.subr.mxu0 0.0
    %418 = vmatpush2.xpose.msra.mxu0 0.0
    %419 = vmatprep.subr.mxu0 0.0
    %420 = vmatpush2.xpose.msra.mxu0 0.0
    %421 = vmatprep.subr.mxu0 0.0
    %422 = vmatpush2.xpose.msra.mxu0 0.0
    %423 = vmatprep.subr.mxu0 0.0
    %424 = vmatpush2.xpose.msra.mxu0 0.0
    %425 = vmatprep.subr.mxu0 0.0
    %426 = vmatpush2.xpose.msra.mxu0 0.0
    %427 = vmatprep.subr.mxu0 0.0
    %428 = vmatpush2.xpose.msra.mxu0 0.0
    %429 = vmatprep.subr.mxu0 0.0
    %430 = vmatpush2.xpose.msra.mxu0 0.0
    %431 = vmatprep.subr.mxu0 0.0
    %432 = vmatpush2.xpose.msra.mxu0 0.0
    %433 = vmatprep.subr.mxu0 0.0
    %434 = vmatpush2.xpose.msra.mxu0 0.0
    %435 = vmatprep.subr.mxu0 0.0
    %436 = vmatpush2.xpose.msra.mxu0 0.0
    %437 = vmatprep.subr.mxu0 0.0
    %438 = vmatpush2.xpose.msra.mxu0 0.0
    %439 = vmatprep.subr.mxu0 0.0
    %440 = vmatpush2.xpose.msra.mxu0 0.0
    %441 = vmatprep.subr.mxu0 0.0
    %442 = vmatpush2.xpose.msra.mxu0 0.0
    %443 = vmatprep.subr.mxu0 0.0
    %444 = vmatpush2.xpose.msra.mxu0 0.0
    %445 = vmatprep.mubr.f32.mxu0 0.0
    %446 = vmatmul.mubr.f32.gmra.mxu0 %v377
    %v447 = vpop.f32.mrf.mxu0
    %v448 = vadd.f32 0.0, %v447
    %v449 = vpop.f32.mrf.mxu0
    %450 = vdwg.mxu0
    %451 = vrot.lane.b32.xlu0 %v139, 96
    %v452 = vpop.permute.xlu0 %451
    %v453 = vsel %vm148, %v139, 0
    %v455 = vsel %vm148, %v452, 0
    %457 = vmatprep.subr.mxu0 0.0
    %458 = vmatpush1.xpose.msra.mxu0 0.0
    %459 = vmatprep.subr.mxu0 0.0
    %460 = vmatpush1.xpose.msra.mxu0 0.0
    %461 = vmatprep.subr.mxu0 0.0
    %462 = vmatpush1.xpose.msra.mxu0 0.0
    %463 = vmatprep.subr.mxu0 0.0
    %464 = vmatpush1.xpose.msra.mxu0 0.0
    %465 = vmatprep.subr.mxu0 0.0
    %466 = vmatpush1.xpose.msra.mxu0 0.0
    %467 = vmatprep.subr.mxu0 0.0
    %468 = vmatpush1.xpose.msra.mxu0 0.0
    %469 = vmatprep.subr.mxu0 0.0
    %470 = vmatpush1.xpose.msra.mxu0 0.0
    %471 = vmatprep.subr.mxu0 0.0
    %472 = vmatpush1.xpose.msra.mxu0 0.0
    %473 = vmatprep.subr.mxu0 0.0
    %474 = vmatpush1.xpose.msra.mxu0 0.0
    %475 = vmatprep.subr.mxu0 0.0
    %476 = vmatpush1.xpose.msra.mxu0 0.0
    %477 = vmatprep.subr.mxu0 0.0
    %478 = vmatpush1.xpose.msra.mxu0 0.0
    %479 = vmatprep.subr.mxu0 0.0
    %480 = vmatpush1.xpose.msra.mxu0 0.0
    %481 = vmatprep.subr.mxu0 0.0
    %482 = vmatpush1.xpose.msra.mxu0 0.0
    %483 = vmatprep.subr.mxu0 0.0
    %484 = vmatpush1.xpose.msra.mxu0 0.0
    %485 = vmatprep.subr.mxu0 0.0
    %486 = vmatpush1.xpose.msra.mxu0 0.0
    %487 = vmatprep.subr.mxu0 0.0
    %488 = vmatpush1.xpose.msra.mxu0 %v455
    %489 = vmatprep.subr.mxu0 0.0
    %490 = vmatpush2.xpose.msra.mxu0 0.0
    %491 = vmatprep.subr.mxu0 0.0
    %492 = vmatpush2.xpose.msra.mxu0 0.0
    %493 = vmatprep.subr.mxu0 0.0
    %494 = vmatpush2.xpose.msra.mxu0 0.0
    %495 = vmatprep.subr.mxu0 0.0
    %496 = vmatpush2.xpose.msra.mxu0 0.0
    %497 = vmatprep.subr.mxu0 0.0
    %498 = vmatpush2.xpose.msra.mxu0 0.0
    %499 = vmatprep.subr.mxu0 0.0
    %500 = vmatpush2.xpose.msra.mxu0 0.0
    %501 = vmatprep.subr.mxu0 0.0
    %502 = vmatpush2.xpose.msra.mxu0 0.0
    %503 = vmatprep.subr.mxu0 0.0
    %504 = vmatpush2.xpose.msra.mxu0 0.0
    %505 = vmatprep.subr.mxu0 0.0
    %506 = vmatpush2.xpose.msra.mxu0 0.0
    %507 = vmatprep.subr.mxu0 0.0
    %508 = vmatpush2.xpose.msra.mxu0 0.0
    %509 = vmatprep.subr.mxu0 0.0
    %510 = vmatpush2.xpose.msra.mxu0 0.0
    %511 = vmatprep.subr.mxu0 0.0
    %512 = vmatpush2.xpose.msra.mxu0 0.0
    %513 = vmatprep.subr.mxu0 0.0
    %514 = vmatpush2.xpose.msra.mxu0 0.0
    %515 = vmatprep.subr.mxu0 0.0
    %516 = vmatpush2.xpose.msra.mxu0 0.0
    %517 = vmatprep.subr.mxu0 0.0
    %518 = vmatpush2.xpose.msra.mxu0 0.0
    %519 = vmatprep.subr.mxu0 0.0
    %520 = vmatpush2.xpose.msra.mxu0 0.0
    %521 = vmatprep.mubr.f32.mxu0 0.0
    %522 = vmatmul.mubr.f32.gmra.mxu0 %v453
    %v523 = vpop.f32.mrf.mxu0
    %v524 = vadd.f32 0.0, %v523
    %v525 = vpop.f32.mrf.mxu0
    %526 = vdwg.mxu0
    %527 = vrot.lane.b32.xlu0 %v141, 96
    %v528 = vpop.permute.xlu0 %527
    %v529 = vsel %vm148, %v141, 0
    %v531 = vsel %vm148, %v528, 0
    %533 = vmatprep.subr.mxu0 0.0
    %534 = vmatpush1.xpose.msra.mxu0 0.0
    %535 = vmatprep.subr.mxu0 0.0
    %536 = vmatpush1.xpose.msra.mxu0 0.0
    %537 = vmatprep.subr.mxu0 0.0
    %538 = vmatpush1.xpose.msra.mxu0 0.0
    %539 = vmatprep.subr.mxu0 0.0
    %540 = vmatpush1.xpose.msra.mxu0 0.0
    %541 = vmatprep.subr.mxu0 0.0
    %542 = vmatpush1.xpose.msra.mxu0 0.0
    %543 = vmatprep.subr.mxu0 0.0
    %544 = vmatpush1.xpose.msra.mxu0 0.0
    %545 = vmatprep.subr.mxu0 0.0
    %546 = vmatpush1.xpose.msra.mxu0 0.0
    %547 = vmatprep.subr.mxu0 0.0
    %548 = vmatpush1.xpose.msra.mxu0 0.0
    %549 = vmatprep.subr.mxu0 0.0
    %550 = vmatpush1.xpose.msra.mxu0 0.0
    %551 = vmatprep.subr.mxu0 0.0
    %552 = vmatpush1.xpose.msra.mxu0 0.0
    %553 = vmatprep.subr.mxu0 0.0
    %554 = vmatpush1.xpose.msra.mxu0 0.0
    %555 = vmatprep.subr.mxu0 0.0
    %556 = vmatpush1.xpose.msra.mxu0 0.0
    %557 = vmatprep.subr.mxu0 0.0
    %558 = vmatpush1.xpose.msra.mxu0 0.0
    %559 = vmatprep.subr.mxu0 0.0
    %560 = vmatpush1.xpose.msra.mxu0 0.0
    %561 = vmatprep.subr.mxu0 0.0
    %562 = vmatpush1.xpose.msra.mxu0 0.0
    %563 = vmatprep.subr.mxu0 0.0
    %564 = vmatpush1.xpose.msra.mxu0 %v531
    %565 = vmatprep.subr.mxu0 0.0
    %566 = vmatpush2.xpose.msra.mxu0 0.0
    %567 = vmatprep.subr.mxu0 0.0
    %568 = vmatpush2.xpose.msra.mxu0 0.0
    %569 = vmatprep.subr.mxu0 0.0
    %570 = vmatpush2.xpose.msra.mxu0 0.0
    %571 = vmatprep.subr.mxu0 0.0
    %572 = vmatpush2.xpose.msra.mxu0 0.0
    %573 = vmatprep.subr.mxu0 0.0
    %574 = vmatpush2.xpose.msra.mxu0 0.0
    %575 = vmatprep.subr.mxu0 0.0
    %576 = vmatpush2.xpose.msra.mxu0 0.0
    %577 = vmatprep.subr.mxu0 0.0
    %578 = vmatpush2.xpose.msra.mxu0 0.0
    %579 = vmatprep.subr.mxu0 0.0
    %580 = vmatpush2.xpose.msra.mxu0 0.0
    %581 = vmatprep.subr.mxu0 0.0
    %582 = vmatpush2.xpose.msra.mxu0 0.0
    %583 = vmatprep.subr.mxu0 0.0
    %584 = vmatpush2.xpose.msra.mxu0 0.0
    %585 = vmatprep.subr.mxu0 0.0
    %586 = vmatpush2.xpose.msra.mxu0 0.0
    %587 = vmatprep.subr.mxu0 0.0
    %588 = vmatpush2.xpose.msra.mxu0 0.0
    %589 = vmatprep.subr.mxu0 0.0
    %590 = vmatpush2.xpose.msra.mxu0 0.0
    %591 = vmatprep.subr.mxu0 0.0
    %592 = vmatpush2.xpose.msra.mxu0 0.0
    %593 = vmatprep.subr.mxu0 0.0
    %594 = vmatpush2.xpose.msra.mxu0 0.0
    %595 = vmatprep.subr.mxu0 0.0
    %596 = vmatpush2.xpose.msra.mxu0 0.0
    %597 = vmatprep.mubr.f32.mxu0 0.0
    %598 = vmatmul.mubr.f32.gmra.mxu0 %v529
    %v599 = vpop.f32.mrf.mxu0
    %v600 = vadd.f32 0.0, %v599
    %v601 = vpop.f32.mrf.mxu0
    %602 = vdwg.mxu0
    %603 = vrot.lane.b32.xlu0 %v143, 96
    %v604 = vpop.permute.xlu0 %603
    %v605 = vsel %vm148, %v143, 0
    %v607 = vsel %vm148, %v604, 0
    %609 = vmatprep.subr.mxu0 0.0
    %610 = vmatpush1.xpose.msra.mxu0 0.0
    %611 = vmatprep.subr.mxu0 0.0
    %612 = vmatpush1.xpose.msra.mxu0 0.0
    %613 = vmatprep.subr.mxu0 0.0
    %614 = vmatpush1.xpose.msra.mxu0 0.0
    %615 = vmatprep.subr.mxu0 0.0
    %616 = vmatpush1.xpose.msra.mxu0 0.0
    %617 = vmatprep.subr.mxu0 0.0
    %618 = vmatpush1.xpose.msra.mxu0 0.0
    %619 = vmatprep.subr.mxu0 0.0
    %620 = vmatpush1.xpose.msra.mxu0 0.0
    %621 = vmatprep.subr.mxu0 0.0
    %622 = vmatpush1.xpose.msra.mxu0 0.0
    %623 = vmatprep.subr.mxu0 0.0
    %624 = vmatpush1.xpose.msra.mxu0 0.0
    %625 = vmatprep.subr.mxu0 0.0
    %626 = vmatpush1.xpose.msra.mxu0 0.0
    %627 = vmatprep.subr.mxu0 0.0
    %628 = vmatpush1.xpose.msra.mxu0 0.0
    %629 = vmatprep.subr.mxu0 0.0
    %630 = vmatpush1.xpose.msra.mxu0 0.0
    %631 = vmatprep.subr.mxu0 0.0
    %632 = vmatpush1.xpose.msra.mxu0 0.0
    %633 = vmatprep.subr.mxu0 0.0
    %634 = vmatpush1.xpose.msra.mxu0 0.0
    %635 = vmatprep.subr.mxu0 0.0
    %636 = vmatpush1.xpose.msra.mxu0 0.0
    %637 = vmatprep.subr.mxu0 0.0
    %638 = vmatpush1.xpose.msra.mxu0 0.0
    %639 = vmatprep.subr.mxu0 0.0
    %640 = vmatpush1.xpose.msra.mxu0 %v607
    %641 = vmatprep.subr.mxu0 0.0
    %642 = vmatpush2.xpose.msra.mxu0 0.0
    %643 = vmatprep.subr.mxu0 0.0
    %644 = vmatpush2.xpose.msra.mxu0 0.0
    %645 = vmatprep.subr.mxu0 0.0
    %646 = vmatpush2.xpose.msra.mxu0 0.0
    %647 = vmatprep.subr.mxu0 0.0
    %648 = vmatpush2.xpose.msra.mxu0 0.0
    %649 = vmatprep.subr.mxu0 0.0
    %650 = vmatpush2.xpose.msra.mxu0 0.0
    %651 = vmatprep.subr.mxu0 0.0
    %652 = vmatpush2.xpose.msra.mxu0 0.0
    %653 = vmatprep.subr.mxu0 0.0
    %654 = vmatpush2.xpose.msra.mxu0 0.0
    %655 = vmatprep.subr.mxu0 0.0
    %656 = vmatpush2.xpose.msra.mxu0 0.0
    %657 = vmatprep.subr.mxu0 0.0
    %658 = vmatpush2.xpose.msra.mxu0 0.0
    %659 = vmatprep.subr.mxu0 0.0
    %660 = vmatpush2.xpose.msra.mxu0 0.0
    %661 = vmatprep.subr.mxu0 0.0
    %662 = vmatpush2.xpose.msra.mxu0 0.0
    %663 = vmatprep.subr.mxu0 0.0
    %664 = vmatpush2.xpose.msra.mxu0 0.0
    %665 = vmatprep.subr.mxu0 0.0
    %666 = vmatpush2.xpose.msra.mxu0 0.0
    %667 = vmatprep.subr.mxu0 0.0
    %668 = vmatpush2.xpose.msra.mxu0 0.0
    %669 = vmatprep.subr.mxu0 0.0
    %670 = vmatpush2.xpose.msra.mxu0 0.0
    %671 = vmatprep.subr.mxu0 0.0
    %672 = vmatpush2.xpose.msra.mxu0 0.0
    %673 = vmatprep.mubr.f32.mxu0 0.0
    %674 = vmatmul.mubr.f32.gmra.mxu0 %v605
    %v675 = vpop.f32.mrf.mxu0
    %v676 = vadd.f32 0.0, %v675
    %v677 = vpop.f32.mrf.mxu0
    %678 = vdwg.mxu0
    %679 = vrot.lane.b32.xlu0 %v145, 96
    %v680 = vpop.permute.xlu0 %679
    %v681 = vsel %vm148, %v145, 0
    %v683 = vsel %vm148, %v680, 0
    %685 = vmatprep.subr.mxu0 0.0
    %686 = vmatpush1.xpose.msra.mxu0 0.0
    %687 = vmatprep.subr.mxu0 0.0
    %688 = vmatpush1.xpose.msra.mxu0 0.0
    %689 = vmatprep.subr.mxu0 0.0
    %690 = vmatpush1.xpose.msra.mxu0 0.0
    %691 = vmatprep.subr.mxu0 0.0
    %692 = vmatpush1.xpose.msra.mxu0 0.0
    %693 = vmatprep.subr.mxu0 0.0
    %694 = vmatpush1.xpose.msra.mxu0 0.0
    %695 = vmatprep.subr.mxu0 0.0
    %696 = vmatpush1.xpose.msra.mxu0 0.0
    %697 = vmatprep.subr.mxu0 0.0
    %698 = vmatpush1.xpose.msra.mxu0 0.0
    %699 = vmatprep.subr.mxu0 0.0
    %700 = vmatpush1.xpose.msra.mxu0 0.0
    %701 = vmatprep.subr.mxu0 0.0
    %702 = vmatpush1.xpose.msra.mxu0 0.0
    %703 = vmatprep.subr.mxu0 0.0
    %704 = vmatpush1.xpose.msra.mxu0 0.0
    %705 = vmatprep.subr.mxu0 0.0
    %706 = vmatpush1.xpose.msra.mxu0 0.0
    %707 = vmatprep.subr.mxu0 0.0
    %708 = vmatpush1.xpose.msra.mxu0 0.0
    %709 = vmatprep.subr.mxu0 0.0
    %710 = vmatpush1.xpose.msra.mxu0 0.0
    %711 = vmatprep.subr.mxu0 0.0
    %712 = vmatpush1.xpose.msra.mxu0 0.0
    %713 = vmatprep.subr.mxu0 0.0
    %714 = vmatpush1.xpose.msra.mxu0 0.0
    %715 = vmatprep.subr.mxu0 0.0
    %716 = vmatpush1.xpose.msra.mxu0 %v683
    %717 = vmatprep.subr.mxu0 0.0
    %718 = vmatpush2.xpose.msra.mxu0 0.0
    %719 = vmatprep.subr.mxu0 0.0
    %720 = vmatpush2.xpose.msra.mxu0 0.0
    %721 = vmatprep.subr.mxu0 0.0
    %722 = vmatpush2.xpose.msra.mxu0 0.0
    %723 = vmatprep.subr.mxu0 0.0
    %724 = vmatpush2.xpose.msra.mxu0 0.0
    %725 = vmatprep.subr.mxu0 0.0
    %726 = vmatpush2.xpose.msra.mxu0 0.0
    %727 = vmatprep.subr.mxu0 0.0
    %728 = vmatpush2.xpose.msra.mxu0 0.0
    %729 = vmatprep.subr.mxu0 0.0
    %730 = vmatpush2.xpose.msra.mxu0 0.0
    %731 = vmatprep.subr.mxu0 0.0
    %732 = vmatpush2.xpose.msra.mxu0 0.0
    %733 = vmatprep.subr.mxu0 0.0
    %734 = vmatpush2.xpose.msra.mxu0 0.0
    %735 = vmatprep.subr.mxu0 0.0
    %736 = vmatpush2.xpose.msra.mxu0 0.0
    %737 = vmatprep.subr.mxu0 0.0
    %738 = vmatpush2.xpose.msra.mxu0 0.0
    %739 = vmatprep.subr.mxu0 0.0
    %740 = vmatpush2.xpose.msra.mxu0 0.0
    %741 = vmatprep.subr.mxu0 0.0
    %742 = vmatpush2.xpose.msra.mxu0 0.0
    %743 = vmatprep.subr.mxu0 0.0
    %744 = vmatpush2.xpose.msra.mxu0 0.0
    %745 = vmatprep.subr.mxu0 0.0
    %746 = vmatpush2.xpose.msra.mxu0 0.0
    %747 = vmatprep.subr.mxu0 0.0
    %748 = vmatpush2.xpose.msra.mxu0 0.0
    %749 = vmatprep.mubr.f32.mxu0 0.0
    %750 = vmatmul.mubr.f32.gmra.mxu0 %v681
    %v751 = vpop.f32.mrf.mxu0
    %v752 = vadd.f32 0.0, %v751
    %v753 = vpop.f32.mrf.mxu0
    %754 = vdwg.mxu0
    %v755 = vsel %vm148, %v220, -inf
    %756 = vmax.xlane.f32.xlu0 %v755
    %v757 = vpop.xlane.xlu0 %756
    %v758 = vsel %vm148, %v296, -inf
    %759 = vmax.xlane.f32.xlu0 %v758
    %v760 = vpop.xlane.xlu0 %759
    %v761 = vsel %vm148, %v372, -inf
    %762 = vmax.xlane.f32.xlu0 %v761
    %v763 = vpop.xlane.xlu0 %762
    %v764 = vsel %vm148, %v448, -inf
    %765 = vmax.xlane.f32.xlu0 %v764
    %v766 = vpop.xlane.xlu0 %765
    %v767 = vsel %vm148, %v524, -inf
    %768 = vmax.xlane.f32.xlu0 %v767
    %v769 = vpop.xlane.xlu0 %768
    %v770 = vsel %vm148, %v600, -inf
    %771 = vmax.xlane.f32.xlu0 %v770
    %v772 = vpop.xlane.xlu0 %771
    %v773 = vsel %vm148, %v676, -inf
    %774 = vmax.xlane.f32.xlu0 %v773
    %v775 = vpop.xlane.xlu0 %774
    %v776 = vsel %vm148, %v752, -inf
    %777 = vmax.xlane.f32.xlu0 %v776
    %v778 = vpop.xlane.xlu0 %777
    %v779 = vsub.f32 %v220, %v757
    %v780 = vsub.f32 %v296, %v760
    %v781 = vsub.f32 %v372, %v763
    %v782 = vsub.f32 %v448, %v766
    %v783 = vsub.f32 %v524, %v769
    %v784 = vsub.f32 %v600, %v772
    %v785 = vsub.f32 %v676, %v775
    %v786 = vsub.f32 %v752, %v778
    %v787 = vmul.f32 %v779, 1.442695
    %v788 = vpow.pop %v787
    %v789 = vmul.f32 %v780, 1.442695
    %v790 = vpow.pop %v789
    %v791 = vmul.f32 %v781, 1.442695
    %v792 = vpow.pop %v791
    %v793 = vmul.f32 %v782, 1.442695
    %v794 = vpow.pop %v793
    %v795 = vmul.f32 %v783, 1.442695
    %v796 = vpow.pop %v795
    %v797 = vmul.f32 %v784, 1.442695
    %v798 = vpow.pop %v797
    %v799 = vmul.f32 %v785, 1.442695
    %v800 = vpow.pop %v799
    %v801 = vmul.f32 %v786, 1.442695
    %v802 = vpow.pop %v801
    %v803 = vsel %vm148, %v788, 0.0
    %804 = vadd.xlane.f32.xlu0 %v803
    %v805 = vpop.xlane.xlu0 %804
    %v806 = vsel %vm148, %v790, 0.0
    %807 = vadd.xlane.f32.xlu0 %v806
    %v808 = vpop.xlane.xlu0 %807
    %v809 = vsel %vm148, %v792, 0.0
    %810 = vadd.xlane.f32.xlu0 %v809
    %v811 = vpop.xlane.xlu0 %810
    %v812 = vsel %vm148, %v794, 0.0
    %813 = vadd.xlane.f32.xlu0 %v812
    %v814 = vpop.xlane.xlu0 %813
    %v815 = vsel %vm148, %v796, 0.0
    %816 = vadd.xlane.f32.xlu0 %v815
    %v817 = vpop.xlane.xlu0 %816
    %v818 = vsel %vm148, %v798, 0.0
    %819 = vadd.xlane.f32.xlu0 %v818
    %v820 = vpop.xlane.xlu0 %819
    %v821 = vsel %vm148, %v800, 0.0
    %822 = vadd.xlane.f32.xlu0 %v821
    %v823 = vpop.xlane.xlu0 %822
    %v824 = vsel %vm148, %v802, 0.0
    %825 = vadd.xlane.f32.xlu0 %v824
    %v826 = vpop.xlane.xlu0 %825
    %v827 = vrcp.pop %v805
    %v828 = vrcp.pop %v808
    %v829 = vrcp.pop %v811
    %v830 = vrcp.pop %v814
    %v831 = vrcp.pop %v817
    %v832 = vrcp.pop %v820
    %v833 = vrcp.pop %v823
    %v834 = vrcp.pop %v826
    %v835 = vmul.f32 %v788, %v827
    %v836 = vmul.f32 %v790, %v828
    %v837 = vmul.f32 %v792, %v829
    %v838 = vmul.f32 %v794, %v830
    %v839 = vmul.f32 %v796, %v831
    %v840 = vmul.f32 %v798, %v832
    %v841 = vmul.f32 %v800, %v833
    %v842 = vmul.f32 %v802, %v834
    %843 = vrot.lane.b32.xlu0 %v124, 64
    %v844 = vpop.permute.xlu0 %843
    %v847 = vsel %vm148, %v835, 0
    %849 = vmatprep.subr.mxu0 0.0
    %850 = vmatpush1.msra.mxu0 0.0
    %851 = vmatprep.subr.mxu0 0.0
    %852 = vmatpush1.msra.mxu0 0.0
    %853 = vmatprep.subr.mxu0 0.0
    %854 = vmatpush1.msra.mxu0 0.0
    %855 = vmatprep.subr.mxu0 0.0
    %856 = vmatpush1.msra.mxu0 0.0
    %857 = vmatprep.subr.mxu0 0.0
    %858 = vmatpush1.msra.mxu0 0.0
    %859 = vmatprep.subr.mxu0 0.0
    %860 = vmatpush1.msra.mxu0 0.0
    %861 = vmatprep.subr.mxu0 0.0
    %862 = vmatpush1.msra.mxu0 0.0
    %863 = vmatprep.subr.mxu0 0.0
    %864 = vmatpush1.msra.mxu0 0.0
    %865 = vmatprep.subr.mxu0 0.0
    %866 = vmatpush1.msra.mxu0 0.0
    %867 = vmatprep.subr.mxu0 0.0
    %868 = vmatpush1.msra.mxu0 0.0
    %869 = vmatprep.subr.mxu0 0.0
    %870 = vmatpush1.msra.mxu0 0.0
    %871 = vmatprep.subr.mxu0 0.0
    %872 = vmatpush1.msra.mxu0 0.0
    %873 = vmatprep.subr.mxu0 0.0
    %874 = vmatpush1.msra.mxu0 0.0
    %875 = vmatprep.subr.mxu0 0.0
    %876 = vmatpush1.msra.mxu0 0.0
    %877 = vmatprep.subr.mxu0 0.0
    %878 = vmatpush1.msra.mxu0 0.0
    %879 = vmatprep.subr.mxu0 0.0
    %880 = vmatpush1.msra.mxu0 %v844
    %881 = vmatprep.subr.mxu0 0.0
    %882 = vmatpush2.msra.mxu0 0.0
    %883 = vmatprep.subr.mxu0 0.0
    %884 = vmatpush2.msra.mxu0 0.0
    %885 = vmatprep.subr.mxu0 0.0
    %886 = vmatpush2.msra.mxu0 0.0
    %887 = vmatprep.subr.mxu0 0.0
    %888 = vmatpush2.msra.mxu0 0.0
    %889 = vmatprep.subr.mxu0 0.0
    %890 = vmatpush2.msra.mxu0 0.0
    %891 = vmatprep.subr.mxu0 0.0
    %892 = vmatpush2.msra.mxu0 0.0
    %893 = vmatprep.subr.mxu0 0.0
    %894 = vmatpush2.msra.mxu0 0.0
    %895 = vmatprep.subr.mxu0 0.0
    %896 = vmatpush2.msra.mxu0 0.0
    %897 = vmatprep.subr.mxu0 0.0
    %898 = vmatpush2.msra.mxu0 0.0
    %899 = vmatprep.subr.mxu0 0.0
    %900 = vmatpush2.msra.mxu0 0.0
    %901 = vmatprep.subr.mxu0 0.0
    %902 = vmatpush2.msra.mxu0 0.0
    %903 = vmatprep.subr.mxu0 0.0
    %904 = vmatpush2.msra.mxu0 0.0
    %905 = vmatprep.subr.mxu0 0.0
    %906 = vmatpush2.msra.mxu0 0.0
    %907 = vmatprep.subr.mxu0 0.0
    %908 = vmatpush2.msra.mxu0 0.0
    %909 = vmatprep.subr.mxu0 0.0
    %910 = vmatpush2.msra.mxu0 0.0
    %911 = vmatprep.subr.mxu0 0.0
    %912 = vmatpush2.msra.mxu0 0.0
    %913 = vmatprep.mubr.f32.mxu0 0.0
    %914 = vmatmul.mubr.f32.gmra.mxu0 %v847
    %v915 = vpop.f32.mrf.mxu0
    %v916 = vadd.f32 0.0, %v915
    %v917 = vpop.f32.mrf.mxu0
    %918 = vdwg.mxu0
    %919 = vrot.lane.b32.xlu0 %v129, 64
    %v920 = vpop.permute.xlu0 %919
    %v923 = vsel %vm148, %v836, 0
    %925 = vmatprep.subr.mxu0 0.0
    %926 = vmatpush1.msra.mxu0 0.0
    %927 = vmatprep.subr.mxu0 0.0
    %928 = vmatpush1.msra.mxu0 0.0
    %929 = vmatprep.subr.mxu0 0.0
    %930 = vmatpush1.msra.mxu0 0.0
    %931 = vmatprep.subr.mxu0 0.0
    %932 = vmatpush1.msra.mxu0 0.0
    %933 = vmatprep.subr.mxu0 0.0
    %934 = vmatpush1.msra.mxu0 0.0
    %935 = vmatprep.subr.mxu0 0.0
    %936 = vmatpush1.msra.mxu0 0.0
    %937 = vmatprep.subr.mxu0 0.0
    %938 = vmatpush1.msra.mxu0 0.0
    %939 = vmatprep.subr.mxu0 0.0
    %940 = vmatpush1.msra.mxu0 0.0
    %941 = vmatprep.subr.mxu0 0.0
    %942 = vmatpush1.msra.mxu0 0.0
    %943 = vmatprep.subr.mxu0 0.0
    %944 = vmatpush1.msra.mxu0 0.0
    %945 = vmatprep.subr.mxu0 0.0
    %946 = vmatpush1.msra.mxu0 0.0
    %947 = vmatprep.subr.mxu0 0.0
    %948 = vmatpush1.msra.mxu0 0.0
    %949 = vmatprep.subr.mxu0 0.0
    %950 = vmatpush1.msra.mxu0 0.0
    %951 = vmatprep.subr.mxu0 0.0
    %952 = vmatpush1.msra.mxu0 0.0
    %953 = vmatprep.subr.mxu0 0.0
    %954 = vmatpush1.msra.mxu0 0.0
    %955 = vmatprep.subr.mxu0 0.0
    %956 = vmatpush1.msra.mxu0 %v920
    %957 = vmatprep.subr.mxu0 0.0
    %958 = vmatpush2.msra.mxu0 0.0
    %959 = vmatprep.subr.mxu0 0.0
    %960 = vmatpush2.msra.mxu0 0.0
    %961 = vmatprep.subr.mxu0 0.0
    %962 = vmatpush2.msra.mxu0 0.0
    %963 = vmatprep.subr.mxu0 0.0
    %964 = vmatpush2.msra.mxu0 0.0
    %965 = vmatprep.subr.mxu0 0.0
    %966 = vmatpush2.msra.mxu0 0.0
    %967 = vmatprep.subr.mxu0 0.0
    %968 = vmatpush2.msra.mxu0 0.0
    %969 = vmatprep.subr.mxu0 0.0
    %970 = vmatpush2.msra.mxu0 0.0
    %971 = vmatprep.subr.mxu0 0.0
    %972 = vmatpush2.msra.mxu0 0.0
    %973 = vmatprep.subr.mxu0 0.0
    %974 = vmatpush2.msra.mxu0 0.0
    %975 = vmatprep.subr.mxu0 0.0
    %976 = vmatpush2.msra.mxu0 0.0
    %977 = vmatprep.subr.mxu0 0.0
    %978 = vmatpush2.msra.mxu0 0.0
    %979 = vmatprep.subr.mxu0 0.0
    %980 = vmatpush2.msra.mxu0 0.0
    %981 = vmatprep.subr.mxu0 0.0
    %982 = vmatpush2.msra.mxu0 0.0
    %983 = vmatprep.subr.mxu0 0.0
    %984 = vmatpush2.msra.mxu0 0.0
    %985 = vmatprep.subr.mxu0 0.0
    %986 = vmatpush2.msra.mxu0 0.0
    %987 = vmatprep.subr.mxu0 0.0
    %988 = vmatpush2.msra.mxu0 0.0
    %989 = vmatprep.mubr.f32.mxu0 0.0
    %990 = vmatmul.mubr.f32.gmra.mxu0 %v923
    %v991 = vpop.f32.mrf.mxu0
    %v992 = vadd.f32 0.0, %v991
    %v993 = vpop.f32.mrf.mxu0
    %994 = vdwg.mxu0
    %995 = vrot.lane.b32.xlu0 %v135, 64
    %v996 = vpop.permute.xlu0 %995
    %v999 = vsel %vm148, %v837, 0
    %1001 = vmatprep.subr.mxu0 0.0
    %1002 = vmatpush1.msra.mxu0 0.0
    %1003 = vmatprep.subr.mxu0 0.0
    %1004 = vmatpush1.msra.mxu0 0.0
    %1005 = vmatprep.subr.mxu0 0.0
    %1006 = vmatpush1.msra.mxu0 0.0
    %1007 = vmatprep.subr.mxu0 0.0
    %1008 = vmatpush1.msra.mxu0 0.0
    %1009 = vmatprep.subr.mxu0 0.0
    %1010 = vmatpush1.msra.mxu0 0.0
    %1011 = vmatprep.subr.mxu0 0.0
    %1012 = vmatpush1.msra.mxu0 0.0
    %1013 = vmatprep.subr.mxu0 0.0
    %1014 = vmatpush1.msra.mxu0 0.0
    %1015 = vmatprep.subr.mxu0 0.0
    %1016 = vmatpush1.msra.mxu0 0.0
    %1017 = vmatprep.subr.mxu0 0.0
    %1018 = vmatpush1.msra.mxu0 0.0
    %1019 = vmatprep.subr.mxu0 0.0
    %1020 = vmatpush1.msra.mxu0 0.0
    %1021 = vmatprep.subr.mxu0 0.0
    %1022 = vmatpush1.msra.mxu0 0.0
    %1023 = vmatprep.subr.mxu0 0.0
    %1024 = vmatpush1.msra.mxu0 0.0
    %1025 = vmatprep.subr.mxu0 0.0
    %1026 = vmatpush1.msra.mxu0 0.0
    %1027 = vmatprep.subr.mxu0 0.0
    %1028 = vmatpush1.msra.mxu0 0.0
    %1029 = vmatprep.subr.mxu0 0.0
    %1030 = vmatpush1.msra.mxu0 0.0
    %1031 = vmatprep.subr.mxu0 0.0
    %1032 = vmatpush1.msra.mxu0 %v996
    %1033 = vmatprep.subr.mxu0 0.0
    %1034 = vmatpush2.msra.mxu0 0.0
    %1035 = vmatprep.subr.mxu0 0.0
    %1036 = vmatpush2.msra.mxu0 0.0
    %1037 = vmatprep.subr.mxu0 0.0
    %1038 = vmatpush2.msra.mxu0 0.0
    %1039 = vmatprep.subr.mxu0 0.0
    %1040 = vmatpush2.msra.mxu0 0.0
    %1041 = vmatprep.subr.mxu0 0.0
    %1042 = vmatpush2.msra.mxu0 0.0
    %1043 = vmatprep.subr.mxu0 0.0
    %1044 = vmatpush2.msra.mxu0 0.0
    %1045 = vmatprep.subr.mxu0 0.0
    %1046 = vmatpush2.msra.mxu0 0.0
    %1047 = vmatprep.subr.mxu0 0.0
    %1048 = vmatpush2.msra.mxu0 0.0
    %1049 = vmatprep.subr.mxu0 0.0
    %1050 = vmatpush2.msra.mxu0 0.0
    %1051 = vmatprep.subr.mxu0 0.0
    %1052 = vmatpush2.msra.mxu0 0.0
    %1053 = vmatprep.subr.mxu0 0.0
    %1054 = vmatpush2.msra.mxu0 0.0
    %1055 = vmatprep.subr.mxu0 0.0
    %1056 = vmatpush2.msra.mxu0 0.0
    %1057 = vmatprep.subr.mxu0 0.0
    %1058 = vmatpush2.msra.mxu0 0.0
    %1059 = vmatprep.subr.mxu0 0.0
    %1060 = vmatpush2.msra.mxu0 0.0
    %1061 = vmatprep.subr.mxu0 0.0
    %1062 = vmatpush2.msra.mxu0 0.0
    %1063 = vmatprep.subr.mxu0 0.0
    %1064 = vmatpush2.msra.mxu0 0.0
    %1065 = vmatprep.mubr.f32.mxu0 0.0
    %1066 = vmatmul.mubr.f32.gmra.mxu0 %v999
    %v1067 = vpop.f32.mrf.mxu0
    %v1068 = vadd.f32 0.0, %v1067
    %v1069 = vpop.f32.mrf.mxu0
    %1070 = vdwg.mxu0
    %1071 = vrot.lane.b32.xlu0 %v137, 64
    %v1072 = vpop.permute.xlu0 %1071
    %v1075 = vsel %vm148, %v838, 0
    %1077 = vmatprep.subr.mxu0 0.0
    %1078 = vmatpush1.msra.mxu0 0.0
    %1079 = vmatprep.subr.mxu0 0.0
    %1080 = vmatpush1.msra.mxu0 0.0
    %1081 = vmatprep.subr.mxu0 0.0
    %1082 = vmatpush1.msra.mxu0 0.0
    %1083 = vmatprep.subr.mxu0 0.0
    %1084 = vmatpush1.msra.mxu0 0.0
    %1085 = vmatprep.subr.mxu0 0.0
    %1086 = vmatpush1.msra.mxu0 0.0
    %1087 = vmatprep.subr.mxu0 0.0
    %1088 = vmatpush1.msra.mxu0 0.0
    %1089 = vmatprep.subr.mxu0 0.0
    %1090 = vmatpush1.msra.mxu0 0.0
    %1091 = vmatprep.subr.mxu0 0.0
    %1092 = vmatpush1.msra.mxu0 0.0
    %1093 = vmatprep.subr.mxu0 0.0
    %1094 = vmatpush1.msra.mxu0 0.0
    %1095 = vmatprep.subr.mxu0 0.0
    %1096 = vmatpush1.msra.mxu0 0.0
    %1097 = vmatprep.subr.mxu0 0.0
    %1098 = vmatpush1.msra.mxu0 0.0
    %1099 = vmatprep.subr.mxu0 0.0
    %1100 = vmatpush1.msra.mxu0 0.0
    %1101 = vmatprep.subr.mxu0 0.0
    %1102 = vmatpush1.msra.mxu0 0.0
    %1103 = vmatprep.subr.mxu0 0.0
    %1104 = vmatpush1.msra.mxu0 0.0
    %1105 = vmatprep.subr.mxu0 0.0
    %1106 = vmatpush1.msra.mxu0 0.0
    %1107 = vmatprep.subr.mxu0 0.0
    %1108 = vmatpush1.msra.mxu0 %v1072
    %1109 = vmatprep.subr.mxu0 0.0
    %1110 = vmatpush2.msra.mxu0 0.0
    %1111 = vmatprep.subr.mxu0 0.0
    %1112 = vmatpush2.msra.mxu0 0.0
    %1113 = vmatprep.subr.mxu0 0.0
    %1114 = vmatpush2.msra.mxu0 0.0
    %1115 = vmatprep.subr.mxu0 0.0
    %1116 = vmatpush2.msra.mxu0 0.0
    %1117 = vmatprep.subr.mxu0 0.0
    %1118 = vmatpush2.msra.mxu0 0.0
    %1119 = vmatprep.subr.mxu0 0.0
    %1120 = vmatpush2.msra.mxu0 0.0
    %1121 = vmatprep.subr.mxu0 0.0
    %1122 = vmatpush2.msra.mxu0 0.0
    %1123 = vmatprep.subr.mxu0 0.0
    %1124 = vmatpush2.msra.mxu0 0.0
    %1125 = vmatprep.subr.mxu0 0.0
    %1126 = vmatpush2.msra.mxu0 0.0
    %1127 = vmatprep.subr.mxu0 0.0
    %1128 = vmatpush2.msra.mxu0 0.0
    %1129 = vmatprep.subr.mxu0 0.0
    %1130 = vmatpush2.msra.mxu0 0.0
    %1131 = vmatprep.subr.mxu0 0.0
    %1132 = vmatpush2.msra.mxu0 0.0
    %1133 = vmatprep.subr.mxu0 0.0
    %1134 = vmatpush2.msra.mxu0 0.0
    %1135 = vmatprep.subr.mxu0 0.0
    %1136 = vmatpush2.msra.mxu0 0.0
    %1137 = vmatprep.subr.mxu0 0.0
    %1138 = vmatpush2.msra.mxu0 0.0
    %1139 = vmatprep.subr.mxu0 0.0
    %1140 = vmatpush2.msra.mxu0 0.0
    %1141 = vmatprep.mubr.f32.mxu0 0.0
    %1142 = vmatmul.mubr.f32.gmra.mxu0 %v1075
    %v1143 = vpop.f32.mrf.mxu0
    %v1144 = vadd.f32 0.0, %v1143
    %v1145 = vpop.f32.mrf.mxu0
    %1146 = vdwg.mxu0
    %1147 = vrot.lane.b32.xlu0 %v139, 64
    %v1148 = vpop.permute.xlu0 %1147
    %v1151 = vsel %vm148, %v839, 0
    %1153 = vmatprep.subr.mxu0 0.0
    %1154 = vmatpush1.msra.mxu0 0.0
    %1155 = vmatprep.subr.mxu0 0.0
    %1156 = vmatpush1.msra.mxu0 0.0
    %1157 = vmatprep.subr.mxu0 0.0
    %1158 = vmatpush1.msra.mxu0 0.0
    %1159 = vmatprep.subr.mxu0 0.0
    %1160 = vmatpush1.msra.mxu0 0.0
    %1161 = vmatprep.subr.mxu0 0.0
    %1162 = vmatpush1.msra.mxu0 0.0
    %1163 = vmatprep.subr.mxu0 0.0
    %1164 = vmatpush1.msra.mxu0 0.0
    %1165 = vmatprep.subr.mxu0 0.0
    %1166 = vmatpush1.msra.mxu0 0.0
    %1167 = vmatprep.subr.mxu0 0.0
    %1168 = vmatpush1.msra.mxu0 0.0
    %1169 = vmatprep.subr.mxu0 0.0
    %1170 = vmatpush1.msra.mxu0 0.0
    %1171 = vmatprep.subr.mxu0 0.0
    %1172 = vmatpush1.msra.mxu0 0.0
    %1173 = vmatprep.subr.mxu0 0.0
    %1174 = vmatpush1.msra.mxu0 0.0
    %1175 = vmatprep.subr.mxu0 0.0
    %1176 = vmatpush1.msra.mxu0 0.0
    %1177 = vmatprep.subr.mxu0 0.0
    %1178 = vmatpush1.msra.mxu0 0.0
    %1179 = vmatprep.subr.mxu0 0.0
    %1180 = vmatpush1.msra.mxu0 0.0
    %1181 = vmatprep.subr.mxu0 0.0
    %1182 = vmatpush1.msra.mxu0 0.0
    %1183 = vmatprep.subr.mxu0 0.0
    %1184 = vmatpush1.msra.mxu0 %v1148
    %1185 = vmatprep.subr.mxu0 0.0
    %1186 = vmatpush2.msra.mxu0 0.0
    %1187 = vmatprep.subr.mxu0 0.0
    %1188 = vmatpush2.msra.mxu0 0.0
    %1189 = vmatprep.subr.mxu0 0.0
    %1190 = vmatpush2.msra.mxu0 0.0
    %1191 = vmatprep.subr.mxu0 0.0
    %1192 = vmatpush2.msra.mxu0 0.0
    %1193 = vmatprep.subr.mxu0 0.0
    %1194 = vmatpush2.msra.mxu0 0.0
    %1195 = vmatprep.subr.mxu0 0.0
    %1196 = vmatpush2.msra.mxu0 0.0
    %1197 = vmatprep.subr.mxu0 0.0
    %1198 = vmatpush2.msra.mxu0 0.0
    %1199 = vmatprep.subr.mxu0 0.0
    %1200 = vmatpush2.msra.mxu0 0.0
    %1201 = vmatprep.subr.mxu0 0.0
    %1202 = vmatpush2.msra.mxu0 0.0
    %1203 = vmatprep.subr.mxu0 0.0
    %1204 = vmatpush2.msra.mxu0 0.0
    %1205 = vmatprep.subr.mxu0 0.0
    %1206 = vmatpush2.msra.mxu0 0.0
    %1207 = vmatprep.subr.mxu0 0.0
    %1208 = vmatpush2.msra.mxu0 0.0
    %1209 = vmatprep.subr.mxu0 0.0
    %1210 = vmatpush2.msra.mxu0 0.0
    %1211 = vmatprep.subr.mxu0 0.0
    %1212 = vmatpush2.msra.mxu0 0.0
    %1213 = vmatprep.subr.mxu0 0.0
    %1214 = vmatpush2.msra.mxu0 0.0
    %1215 = vmatprep.subr.mxu0 0.0
    %1216 = vmatpush2.msra.mxu0 0.0
    %1217 = vmatprep.mubr.f32.mxu0 0.0
    %1218 = vmatmul.mubr.f32.gmra.mxu0 %v1151
    %v1219 = vpop.f32.mrf.mxu0
    %v1220 = vadd.f32 0.0, %v1219
    %v1221 = vpop.f32.mrf.mxu0
    %1222 = vdwg.mxu0
    %1223 = vrot.lane.b32.xlu0 %v141, 64
    %v1224 = vpop.permute.xlu0 %1223
    %v1227 = vsel %vm148, %v840, 0
    %1229 = vmatprep.subr.mxu0 0.0
    %1230 = vmatpush1.msra.mxu0 0.0
    %1231 = vmatprep.subr.mxu0 0.0
    %1232 = vmatpush1.msra.mxu0 0.0
    %1233 = vmatprep.subr.mxu0 0.0
    %1234 = vmatpush1.msra.mxu0 0.0
    %1235 = vmatprep.subr.mxu0 0.0
    %1236 = vmatpush1.msra.mxu0 0.0
    %1237 = vmatprep.subr.mxu0 0.0
    %1238 = vmatpush1.msra.mxu0 0.0
    %1239 = vmatprep.subr.mxu0 0.0
    %1240 = vmatpush1.msra.mxu0 0.0
    %1241 = vmatprep.subr.mxu0 0.0
    %1242 = vmatpush1.msra.mxu0 0.0
    %1243 = vmatprep.subr.mxu0 0.0
    %1244 = vmatpush1.msra.mxu0 0.0
    %1245 = vmatprep.subr.mxu0 0.0
    %1246 = vmatpush1.msra.mxu0 0.0
    %1247 = vmatprep.subr.mxu0 0.0
    %1248 = vmatpush1.msra.mxu0 0.0
    %1249 = vmatprep.subr.mxu0 0.0
    %1250 = vmatpush1.msra.mxu0 0.0
    %1251 = vmatprep.subr.mxu0 0.0
    %1252 = vmatpush1.msra.mxu0 0.0
    %1253 = vmatprep.subr.mxu0 0.0
    %1254 = vmatpush1.msra.mxu0 0.0
    %1255 = vmatprep.subr.mxu0 0.0
    %1256 = vmatpush1.msra.mxu0 0.0
    %1257 = vmatprep.subr.mxu0 0.0
    %1258 = vmatpush1.msra.mxu0 0.0
    %1259 = vmatprep.subr.mxu0 0.0
    %1260 = vmatpush1.msra.mxu0 %v1224
    %1261 = vmatprep.subr.mxu0 0.0
    %1262 = vmatpush2.msra.mxu0 0.0
    %1263 = vmatprep.subr.mxu0 0.0
    %1264 = vmatpush2.msra.mxu0 0.0
    %1265 = vmatprep.subr.mxu0 0.0
    %1266 = vmatpush2.msra.mxu0 0.0
    %1267 = vmatprep.subr.mxu0 0.0
    %1268 = vmatpush2.msra.mxu0 0.0
    %1269 = vmatprep.subr.mxu0 0.0
    %1270 = vmatpush2.msra.mxu0 0.0
    %1271 = vmatprep.subr.mxu0 0.0
    %1272 = vmatpush2.msra.mxu0 0.0
    %1273 = vmatprep.subr.mxu0 0.0
    %1274 = vmatpush2.msra.mxu0 0.0
    %1275 = vmatprep.subr.mxu0 0.0
    %1276 = vmatpush2.msra.mxu0 0.0
    %1277 = vmatprep.subr.mxu0 0.0
    %1278 = vmatpush2.msra.mxu0 0.0
    %1279 = vmatprep.subr.mxu0 0.0
    %1280 = vmatpush2.msra.mxu0 0.0
    %1281 = vmatprep.subr.mxu0 0.0
    %1282 = vmatpush2.msra.mxu0 0.0
    %1283 = vmatprep.subr.mxu0 0.0
    %1284 = vmatpush2.msra.mxu0 0.0
    %1285 = vmatprep.subr.mxu0 0.0
    %1286 = vmatpush2.msra.mxu0 0.0
    %1287 = vmatprep.subr.mxu0 0.0
    %1288 = vmatpush2.msra.mxu0 0.0
    %1289 = vmatprep.subr.mxu0 0.0
    %1290 = vmatpush2.msra.mxu0 0.0
    %1291 = vmatprep.subr.mxu0 0.0
    %1292 = vmatpush2.msra.mxu0 0.0
    %1293 = vmatprep.mubr.f32.mxu0 0.0
    %1294 = vmatmul.mubr.f32.gmra.mxu0 %v1227
    %v1295 = vpop.f32.mrf.mxu0
    %v1296 = vadd.f32 0.0, %v1295
    %v1297 = vpop.f32.mrf.mxu0
    %1298 = vdwg.mxu0
    %1299 = vrot.lane.b32.xlu0 %v143, 64
    %v1300 = vpop.permute.xlu0 %1299
    %v1303 = vsel %vm148, %v841, 0
    %1305 = vmatprep.subr.mxu0 0.0
    %1306 = vmatpush1.msra.mxu0 0.0
    %1307 = vmatprep.subr.mxu0 0.0
    %1308 = vmatpush1.msra.mxu0 0.0
    %1309 = vmatprep.subr.mxu0 0.0
    %1310 = vmatpush1.msra.mxu0 0.0
    %1311 = vmatprep.subr.mxu0 0.0
    %1312 = vmatpush1.msra.mxu0 0.0
    %1313 = vmatprep.subr.mxu0 0.0
    %1314 = vmatpush1.msra.mxu0 0.0
    %1315 = vmatprep.subr.mxu0 0.0
    %1316 = vmatpush1.msra.mxu0 0.0
    %1317 = vmatprep.subr.mxu0 0.0
    %1318 = vmatpush1.msra.mxu0 0.0
    %1319 = vmatprep.subr.mxu0 0.0
    %1320 = vmatpush1.msra.mxu0 0.0
    %1321 = vmatprep.subr.mxu0 0.0
    %1322 = vmatpush1.msra.mxu0 0.0
    %1323 = vmatprep.subr.mxu0 0.0
    %1324 = vmatpush1.msra.mxu0 0.0
    %1325 = vmatprep.subr.mxu0 0.0
    %1326 = vmatpush1.msra.mxu0 0.0
    %1327 = vmatprep.subr.mxu0 0.0
    %1328 = vmatpush1.msra.mxu0 0.0
    %1329 = vmatprep.subr.mxu0 0.0
    %1330 = vmatpush1.msra.mxu0 0.0
    %1331 = vmatprep.subr.mxu0 0.0
    %1332 = vmatpush1.msra.mxu0 0.0
    %1333 = vmatprep.subr.mxu0 0.0
    %1334 = vmatpush1.msra.mxu0 0.0
    %1335 = vmatprep.subr.mxu0 0.0
    %1336 = vmatpush1.msra.mxu0 %v1300
    %1337 = vmatprep.subr.mxu0 0.0
    %1338 = vmatpush2.msra.mxu0 0.0
    %1339 = vmatprep.subr.mxu0 0.0
    %1340 = vmatpush2.msra.mxu0 0.0
    %1341 = vmatprep.subr.mxu0 0.0
    %1342 = vmatpush2.msra.mxu0 0.0
    %1343 = vmatprep.subr.mxu0 0.0
    %1344 = vmatpush2.msra.mxu0 0.0
    %1345 = vmatprep.subr.mxu0 0.0
    %1346 = vmatpush2.msra.mxu0 0.0
    %1347 = vmatprep.subr.mxu0 0.0
    %1348 = vmatpush2.msra.mxu0 0.0
    %1349 = vmatprep.subr.mxu0 0.0
    %1350 = vmatpush2.msra.mxu0 0.0
    %1351 = vmatprep.subr.mxu0 0.0
    %1352 = vmatpush2.msra.mxu0 0.0
    %1353 = vmatprep.subr.mxu0 0.0
    %1354 = vmatpush2.msra.mxu0 0.0
    %1355 = vmatprep.subr.mxu0 0.0
    %1356 = vmatpush2.msra.mxu0 0.0
    %1357 = vmatprep.subr.mxu0 0.0
    %1358 = vmatpush2.msra.mxu0 0.0
    %1359 = vmatprep.subr.mxu0 0.0
    %1360 = vmatpush2.msra.mxu0 0.0
    %1361 = vmatprep.subr.mxu0 0.0
    %1362 = vmatpush2.msra.mxu0 0.0
    %1363 = vmatprep.subr.mxu0 0.0
    %1364 = vmatpush2.msra.mxu0 0.0
    %1365 = vmatprep.subr.mxu0 0.0
    %1366 = vmatpush2.msra.mxu0 0.0
    %1367 = vmatprep.subr.mxu0 0.0
    %1368 = vmatpush2.msra.mxu0 0.0
    %1369 = vmatprep.mubr.f32.mxu0 0.0
    %1370 = vmatmul.mubr.f32.gmra.mxu0 %v1303
    %v1371 = vpop.f32.mrf.mxu0
    %v1372 = vadd.f32 0.0, %v1371
    %v1373 = vpop.f32.mrf.mxu0
    %1374 = vdwg.mxu0
    %1375 = vrot.lane.b32.xlu0 %v145, 64
    %v1376 = vpop.permute.xlu0 %1375
    %v1379 = vsel %vm148, %v842, 0
    %1381 = vmatprep.subr.mxu0 0.0
    %1382 = vmatpush1.msra.mxu0 0.0
    %1383 = vmatprep.subr.mxu0 0.0
    %1384 = vmatpush1.msra.mxu0 0.0
    %1385 = vmatprep.subr.mxu0 0.0
    %1386 = vmatpush1.msra.mxu0 0.0
    %1387 = vmatprep.subr.mxu0 0.0
    %1388 = vmatpush1.msra.mxu0 0.0
    %1389 = vmatprep.subr.mxu0 0.0
    %1390 = vmatpush1.msra.mxu0 0.0
    %1391 = vmatprep.subr.mxu0 0.0
    %1392 = vmatpush1.msra.mxu0 0.0
    %1393 = vmatprep.subr.mxu0 0.0
    %1394 = vmatpush1.msra.mxu0 0.0
    %1395 = vmatprep.subr.mxu0 0.0
    %1396 = vmatpush1.msra.mxu0 0.0
    %1397 = vmatprep.subr.mxu0 0.0
    %1398 = vmatpush1.msra.mxu0 0.0
    %1399 = vmatprep.subr.mxu0 0.0
    %1400 = vmatpush1.msra.mxu0 0.0
    %1401 = vmatprep.subr.mxu0 0.0
    %1402 = vmatpush1.msra.mxu0 0.0
    %1403 = vmatprep.subr.mxu0 0.0
    %1404 = vmatpush1.msra.mxu0 0.0
    %1405 = vmatprep.subr.mxu0 0.0
    %1406 = vmatpush1.msra.mxu0 0.0
    %1407 = vmatprep.subr.mxu0 0.0
    %1408 = vmatpush1.msra.mxu0 0.0
    %1409 = vmatprep.subr.mxu0 0.0
    %1410 = vmatpush1.msra.mxu0 0.0
    %1411 = vmatprep.subr.mxu0 0.0
    %1412 = vmatpush1.msra.mxu0 %v1376
    %1413 = vmatprep.subr.mxu0 0.0
    %1414 = vmatpush2.msra.mxu0 0.0
    %1415 = vmatprep.subr.mxu0 0.0
    %1416 = vmatpush2.msra.mxu0 0.0
    %1417 = vmatprep.subr.mxu0 0.0
    %1418 = vmatpush2.msra.mxu0 0.0
    %1419 = vmatprep.subr.mxu0 0.0
    %1420 = vmatpush2.msra.mxu0 0.0
    %1421 = vmatprep.subr.mxu0 0.0
    %1422 = vmatpush2.msra.mxu0 0.0
    %1423 = vmatprep.subr.mxu0 0.0
    %1424 = vmatpush2.msra.mxu0 0.0
    %1425 = vmatprep.subr.mxu0 0.0
    %1426 = vmatpush2.msra.mxu0 0.0
    %1427 = vmatprep.subr.mxu0 0.0
    %1428 = vmatpush2.msra.mxu0 0.0
    %1429 = vmatprep.subr.mxu0 0.0
    %1430 = vmatpush2.msra.mxu0 0.0
    %1431 = vmatprep.subr.mxu0 0.0
    %1432 = vmatpush2.msra.mxu0 0.0
    %1433 = vmatprep.subr.mxu0 0.0
    %1434 = vmatpush2.msra.mxu0 0.0
    %1435 = vmatprep.subr.mxu0 0.0
    %1436 = vmatpush2.msra.mxu0 0.0
    %1437 = vmatprep.subr.mxu0 0.0
    %1438 = vmatpush2.msra.mxu0 0.0
    %1439 = vmatprep.subr.mxu0 0.0
    %1440 = vmatpush2.msra.mxu0 0.0
    %1441 = vmatprep.subr.mxu0 0.0
    %1442 = vmatpush2.msra.mxu0 0.0
    %1443 = vmatprep.subr.mxu0 0.0
    %1444 = vmatpush2.msra.mxu0 0.0
    %1445 = vmatprep.mubr.f32.mxu0 0.0
    %1446 = vmatmul.mubr.f32.gmra.mxu0 %v1379
    %v1447 = vpop.f32.mrf.mxu0
    %v1448 = vadd.f32 0.0, %v1447
    %v1449 = vpop.f32.mrf.mxu0
    %1450 = vdwg.mxu0
    %1453 = vrot.lane.b32.xlu0 %v1068, 8
    %v1454 = vpop.permute.xlu0 %1453
    %1455 = vrot.lane.b32.xlu0 %v1144, 8
    %v1456 = vpop.permute.xlu0 %1455
    %1461 = vrot.lane.b32.xlu0 %v1220, 16
    %v1462 = vpop.permute.xlu0 %1461
    %1463 = vrot.lane.b32.xlu0 %v1296, 16
    %v1464 = vpop.permute.xlu0 %1463
    %1469 = vrot.lane.b32.xlu0 %v1372, 24
    %v1470 = vpop.permute.xlu0 %1469
    %1471 = vrot.lane.b32.xlu0 %v1448, 24
    %v1472 = vpop.permute.xlu0 %1471
    %v1475 = vsel %vm148, %v916, %v1454
    %v1476 = vsel %vm148, %v992, %v1456
    %vm1477 = vcmask 130048
    %v1478 = vsel %vm1477, %v1475, %v1462
    %v1479 = vsel %vm1477, %v1476, %v1464
    %vm1480 = vcmask 195584
    %v1481 = vsel %vm1480, %v1478, %v1470
    %v1482 = vsel %vm1480, %v1479, %v1472
    %v1483 = vlaneseq
    %v1484 = vshrl.u32 %v1483, 7
    %v1485 = vsub.s32 0, %v1484
    %v1486 = vrot.slane %v45, %v1485
    %v1488 = vsel %vm50, %v1481, 0
    %v1491 = vsel %vm50, %v1482, 0
    %1493 = vmatprep.subr.mxu0 0.0
    %1494 = vmatpush1.msra.mxu0 0.0
    %1495 = vmatprep.subr.mxu0 0.0
    %1496 = vmatpush1.msra.mxu0 0.0
    %1497 = vmatprep.subr.mxu0 0.0
    %1498 = vmatpush1.msra.mxu0 0.0
    %1499 = vmatprep.subr.mxu0 0.0
    %1500 = vmatpush1.msra.mxu0 0.0
    %1501 = vmatprep.subr.mxu0 0.0
    %1502 = vmatpush1.msra.mxu0 0.0
    %1503 = vmatprep.subr.mxu0 0.0
    %1504 = vmatpush1.msra.mxu0 0.0
    %1505 = vmatprep.subr.mxu0 0.0
    %1506 = vmatpush1.msra.mxu0 0.0
    %1507 = vmatprep.subr.mxu0 0.0
    %1508 = vmatpush1.msra.mxu0 0.0
    %1509 = vmatprep.subr.mxu0 0.0
    %1510 = vmatpush1.msra.mxu0 0.0
    %1511 = vmatprep.subr.mxu0 0.0
    %1512 = vmatpush1.msra.mxu0 0.0
    %1513 = vmatprep.subr.mxu0 0.0
    %1514 = vmatpush1.msra.mxu0 0.0
    %1515 = vmatprep.subr.mxu0 0.0
    %1516 = vmatpush1.msra.mxu0 0.0
    %1517 = vmatprep.subr.mxu0 0.0
    %1518 = vmatpush1.msra.mxu0 %v36
    %1519 = vmatprep.subr.mxu0 0.0
    %1520 = vmatpush1.msra.mxu0 %v35
    %1521 = vmatprep.subr.mxu0 0.0
    %1522 = vmatpush1.msra.mxu0 %v34
    %1523 = vmatprep.subr.mxu0 0.0
    %1524 = vmatpush1.msra.mxu0 %v33
    %1525 = vmatprep.subr.mxu0 0.0
    %1526 = vmatpush2.msra.mxu0 0.0
    %1527 = vmatprep.subr.mxu0 0.0
    %1528 = vmatpush2.msra.mxu0 0.0
    %1529 = vmatprep.subr.mxu0 0.0
    %1530 = vmatpush2.msra.mxu0 0.0
    %1531 = vmatprep.subr.mxu0 0.0
    %1532 = vmatpush2.msra.mxu0 0.0
    %1533 = vmatprep.subr.mxu0 0.0
    %1534 = vmatpush2.msra.mxu0 0.0
    %1535 = vmatprep.subr.mxu0 0.0
    %1536 = vmatpush2.msra.mxu0 0.0
    %1537 = vmatprep.subr.mxu0 0.0
    %1538 = vmatpush2.msra.mxu0 0.0
    %1539 = vmatprep.subr.mxu0 0.0
    %1540 = vmatpush2.msra.mxu0 0.0
    %1541 = vmatprep.subr.mxu0 0.0
    %1542 = vmatpush2.msra.mxu0 0.0
    %1543 = vmatprep.subr.mxu0 0.0
    %1544 = vmatpush2.msra.mxu0 0.0
    %1545 = vmatprep.subr.mxu0 0.0
    %1546 = vmatpush2.msra.mxu0 0.0
    %1547 = vmatprep.subr.mxu0 0.0
    %1548 = vmatpush2.msra.mxu0 0.0
    %1549 = vmatprep.subr.mxu0 0.0
    %1550 = vmatpush2.msra.mxu0 0.0
    %1551 = vmatprep.subr.mxu0 0.0
    %1552 = vmatpush2.msra.mxu0 0.0
    %1553 = vmatprep.subr.mxu0 0.0
    %1554 = vmatpush2.msra.mxu0 0.0
    %1555 = vmatprep.subr.mxu0 0.0
    %1556 = vmatpush2.msra.mxu0 0.0
    %1557 = vmatprep.mubr.f32.mxu0 0.0
    %1558 = vmatmul.mubr.f32.gmra.mxu0 %v1488
    %v1559 = vpop.f32.mrf.mxu0
    %v1560 = vadd.f32 %v1486, %v1559
    %v1561 = vpop.f32.mrf.mxu0
    %1562 = vmatprep.mubr.f32.mxu0 0.0
    %1563 = vmatmul.mubr.f32.gmra.mxu0 %v1491
    %v1564 = vpop.f32.mrf.mxu0
    %v1565 = vadd.f32 %v1486, %v1564
    %v1566 = vpop.f32.mrf.mxu0
    %1567 = vdwg.mxu0
    %v1568 = vadd.f32 %v21, %v1560
    %v1569 = vadd.f32 %v22, %v1565
    %v1570 = vsel %vm50, %v1568, 0.0
    %1571 = vadd.xlane.f32.xlu0 %v1570
    %v1572 = vpop.xlane.xlu0 %1571
    %v1573 = vsel %vm50, %v1569, 0.0
    %1574 = vadd.xlane.f32.xlu0 %v1573
    %v1575 = vpop.xlane.xlu0 %1574
    %v1576 = vrcp.pop 32.0
    %v1577 = vmul.f32 %v1572, %v1576
    %v1578 = vmul.f32 %v1575, %v1576
    %v1579 = vsub.f32 %v1568, %v1577
    %v1580 = vsub.f32 %v1569, %v1578
    %v1581 = vmul.f32 %v1579, %v1579
    %v1582 = vmul.f32 %v1580, %v1580
    %v1583 = vsel %vm50, %v1581, 0.0
    %1584 = vadd.xlane.f32.xlu0 %v1583
    %v1585 = vpop.xlane.xlu0 %1584
    %v1586 = vsel %vm50, %v1582, 0.0
    %1587 = vadd.xlane.f32.xlu0 %v1586
    %v1588 = vpop.xlane.xlu0 %1587
    %v1589 = vmul.f32 %v1585, %v1576
    %v1590 = vmul.f32 %v1588, %v1576
    %v1591 = vadd.f32 %v1589, 1e-05
    %v1592 = vadd.f32 %v1590, 1e-05
    %v1593 = vrsqrt.pop %v1591
    %v1594 = vrsqrt.pop %v1592
    %v1595 = vmul.f32 %v1579, %v1593
    %v1596 = vmul.f32 %v1580, %v1594
    %v1597 = vlaneseq
    %v1598 = vshrl.u32 %v1597, 7
    %v1599 = vsub.s32 1, %v1598
    %v1600 = vrot.slane %v45, %v1599
    %v1601 = vmul.f32 %v1595, %v1600
    %v1602 = vmul.f32 %v1596, %v1600
    %v1603 = vlaneseq
    %v1604 = vshrl.u32 %v1603, 7
    %v1605 = vsub.s32 2, %v1604
    %v1606 = vrot.slane %v45, %v1605
    %v1607 = vadd.f32 %v1601, %v1606
    %v1608 = vadd.f32 %v1602, %v1606
    %v1609 = vlaneseq
    %v1610 = vshrl.u32 %v1609, 7
    %v1611 = vsub.s32 0, %v1610
    %v1612 = vrot.slane %v32, %v1611
    %v1614 = vsel %vm50, %v1607, 0
    %v1617 = vsel %vm50, %v1608, 0
    %1619 = vmatprep.subr.mxu0 0.0
    %1620 = vmatpush1.msra.mxu0 0.0
    %1621 = vmatprep.subr.mxu0 0.0
    %1622 = vmatpush1.msra.mxu0 0.0
    %1623 = vmatprep.subr.mxu0 0.0
    %1624 = vmatpush1.msra.mxu0 0.0
    %1625 = vmatprep.subr.mxu0 0.0
    %1626 = vmatpush1.msra.mxu0 0.0
    %1627 = vmatprep.subr.mxu0 0.0
    %1628 = vmatpush1.msra.mxu0 0.0
    %1629 = vmatprep.subr.mxu0 0.0
    %1630 = vmatpush1.msra.mxu0 0.0
    %1631 = vmatprep.subr.mxu0 0.0
    %1632 = vmatpush1.msra.mxu0 0.0
    %1633 = vmatprep.subr.mxu0 0.0
    %1634 = vmatpush1.msra.mxu0 0.0
    %1635 = vmatprep.subr.mxu0 0.0
    %1636 = vmatpush1.msra.mxu0 0.0
    %1637 = vmatprep.subr.mxu0 0.0
    %1638 = vmatpush1.msra.mxu0 0.0
    %1639 = vmatprep.subr.mxu0 0.0
    %1640 = vmatpush1.msra.mxu0 0.0
    %1641 = vmatprep.subr.mxu0 0.0
    %1642 = vmatpush1.msra.mxu0 0.0
    %1643 = vmatprep.subr.mxu0 0.0
    %1644 = vmatpush1.msra.mxu0 %v31
    %1645 = vmatprep.subr.mxu0 0.0
    %1646 = vmatpush1.msra.mxu0 %v30
    %1647 = vmatprep.subr.mxu0 0.0
    %1648 = vmatpush1.msra.mxu0 %v29
    %1649 = vmatprep.subr.mxu0 0.0
    %1650 = vmatpush1.msra.mxu0 %v28
    %1651 = vmatprep.subr.mxu0 0.0
    %1652 = vmatpush2.msra.mxu0 0.0
    %1653 = vmatprep.subr.mxu0 0.0
    %1654 = vmatpush2.msra.mxu0 0.0
    %1655 = vmatprep.subr.mxu0 0.0
    %1656 = vmatpush2.msra.mxu0 0.0
    %1657 = vmatprep.subr.mxu0 0.0
    %1658 = vmatpush2.msra.mxu0 0.0
    %1659 = vmatprep.subr.mxu0 0.0
    %1660 = vmatpush2.msra.mxu0 0.0
    %1661 = vmatprep.subr.mxu0 0.0
    %1662 = vmatpush2.msra.mxu0 0.0
    %1663 = vmatprep.subr.mxu0 0.0
    %1664 = vmatpush2.msra.mxu0 0.0
    %1665 = vmatprep.subr.mxu0 0.0
    %1666 = vmatpush2.msra.mxu0 0.0
    %1667 = vmatprep.subr.mxu0 0.0
    %1668 = vmatpush2.msra.mxu0 0.0
    %1669 = vmatprep.subr.mxu0 0.0
    %1670 = vmatpush2.msra.mxu0 0.0
    %1671 = vmatprep.subr.mxu0 0.0
    %1672 = vmatpush2.msra.mxu0 0.0
    %1673 = vmatprep.subr.mxu0 0.0
    %1674 = vmatpush2.msra.mxu0 0.0
    %1675 = vmatprep.subr.mxu0 0.0
    %1676 = vmatpush2.msra.mxu0 0.0
    %1677 = vmatprep.subr.mxu0 0.0
    %1678 = vmatpush2.msra.mxu0 0.0
    %1679 = vmatprep.subr.mxu0 0.0
    %1680 = vmatpush2.msra.mxu0 0.0
    %1681 = vmatprep.subr.mxu0 0.0
    %1682 = vmatpush2.msra.mxu0 0.0
    %1683 = vmatprep.mubr.f32.mxu0 0.0
    %1684 = vmatmul.mubr.f32.gmra.mxu0 %v1614
    %v1685 = vpop.f32.mrf.mxu0
    %v1686 = vadd.f32 %v1612, %v1685
    %v1687 = vpop.f32.mrf.mxu0
    %1688 = vmatprep.mubr.f32.mxu0 0.0
    %1689 = vmatmul.mubr.f32.gmra.mxu0 %v1617
    %v1690 = vpop.f32.mrf.mxu0
    %v1691 = vadd.f32 %v1612, %v1690
    %v1692 = vpop.f32.mrf.mxu0
    %1693 = vdwg.mxu0
    %v1694 = vmax.f32 %v1686, 0.0
    %v1695 = vmax.f32 %v1691, 0.0
    %v1696 = vlaneseq
    %v1697 = vshrl.u32 %v1696, 7
    %v1698 = vsub.s32 3, %v1697
    %v1699 = vrot.slane %v45, %v1698
    %vm1700 = vcmask 523264
    %v1702 = vsel %vm1700, %v1694, 0
    %v1705 = vsel %vm1700, %v1695, 0
    %1707 = vmatprep.subr.mxu0 0.0
    %1708 = vmatpush1.msra.mxu0 0.0
    %1709 = vmatprep.subr.mxu0 0.0
    %1710 = vmatpush1.msra.mxu0 0.0
    %1711 = vmatprep.subr.mxu0 0.0
    %1712 = vmatpush1.msra.mxu0 0.0
    %1713 = vmatprep.subr.mxu0 0.0
    %1714 = vmatpush1.msra.mxu0 0.0
    %1715 = vmatprep.subr.mxu0 0.0
    %1716 = vmatpush1.msra.mxu0 0.0
    %1717 = vmatprep.subr.mxu0 0.0
    %1718 = vmatpush1.msra.mxu0 0.0
    %1719 = vmatprep.subr.mxu0 0.0
    %1720 = vmatpush1.msra.mxu0 0.0
    %1721 = vmatprep.subr.mxu0 0.0
    %1722 = vmatpush1.msra.mxu0 0.0
    %1723 = vmatprep.subr.mxu0 0.0
    %1724 = vmatpush1.msra.mxu0 %v44
    %1725 = vmatprep.subr.mxu0 0.0
    %1726 = vmatpush1.msra.mxu0 %v43
    %1727 = vmatprep.subr.mxu0 0.0
    %1728 = vmatpush1.msra.mxu0 %v42
    %1729 = vmatprep.subr.mxu0 0.0
    %1730 = vmatpush1.msra.mxu0 %v41
    %1731 = vmatprep.subr.mxu0 0.0
    %1732 = vmatpush1.msra.mxu0 %v40
    %1733 = vmatprep.subr.mxu0 0.0
    %1734 = vmatpush1.msra.mxu0 %v39
    %1735 = vmatprep.subr.mxu0 0.0
    %1736 = vmatpush1.msra.mxu0 %v38
    %1737 = vmatprep.subr.mxu0 0.0
    %1738 = vmatpush1.msra.mxu0 %v37
    %1739 = vmatprep.subr.mxu0 0.0
    %1740 = vmatpush2.msra.mxu0 0.0
    %1741 = vmatprep.subr.mxu0 0.0
    %1742 = vmatpush2.msra.mxu0 0.0
    %1743 = vmatprep.subr.mxu0 0.0
    %1744 = vmatpush2.msra.mxu0 0.0
    %1745 = vmatprep.subr.mxu0 0.0
    %1746 = vmatpush2.msra.mxu0 0.0
    %1747 = vmatprep.subr.mxu0 0.0
    %1748 = vmatpush2.msra.mxu0 0.0
    %1749 = vmatprep.subr.mxu0 0.0
    %1750 = vmatpush2.msra.mxu0 0.0
    %1751 = vmatprep.subr.mxu0 0.0
    %1752 = vmatpush2.msra.mxu0 0.0
    %1753 = vmatprep.subr.mxu0 0.0
    %1754 = vmatpush2.msra.mxu0 0.0
    %1755 = vmatprep.subr.mxu0 0.0
    %1756 = vmatpush2.msra.mxu0 0.0
    %1757 = vmatprep.subr.mxu0 0.0
    %1758 = vmatpush2.msra.mxu0 0.0
    %1759 = vmatprep.subr.mxu0 0.0
    %1760 = vmatpush2.msra.mxu0 0.0
    %1761 = vmatprep.subr.mxu0 0.0
    %1762 = vmatpush2.msra.mxu0 0.0
    %1763 = vmatprep.subr.mxu0 0.0
    %1764 = vmatpush2.msra.mxu0 0.0
    %1765 = vmatprep.subr.mxu0 0.0
    %1766 = vmatpush2.msra.mxu0 0.0
    %1767 = vmatprep.subr.mxu0 0.0
    %1768 = vmatpush2.msra.mxu0 0.0
    %1769 = vmatprep.subr.mxu0 0.0
    %1770 = vmatpush2.msra.mxu0 0.0
    %1771 = vmatprep.mubr.f32.mxu0 0.0
    %1772 = vmatmul.mubr.f32.gmra.mxu0 %v1702
    %v1773 = vpop.f32.mrf.mxu0
    %v1774 = vadd.f32 %v1699, %v1773
    %v1775 = vpop.f32.mrf.mxu0
    %1776 = vmatprep.mubr.f32.mxu0 0.0
    %1777 = vmatmul.mubr.f32.gmra.mxu0 %v1705
    %v1778 = vpop.f32.mrf.mxu0
    %v1779 = vadd.f32 %v1699, %v1778
    %v1780 = vpop.f32.mrf.mxu0
    %1781 = vdwg.mxu0
    %v1782 = vadd.f32 %v1607, %v1774
    %v1783 = vadd.f32 %v1608, %v1779
    %v1784 = vsel %vm50, %v1782, 0.0
    %1785 = vadd.xlane.f32.xlu0 %v1784
    %v1786 = vpop.xlane.xlu0 %1785
    %v1787 = vsel %vm50, %v1783, 0.0
    %1788 = vadd.xlane.f32.xlu0 %v1787
    %v1789 = vpop.xlane.xlu0 %1788
    %v1790 = vmul.f32 %v1786, %v1576
    %v1791 = vmul.f32 %v1789, %v1576
    %v1792 = vsub.f32 %v1782, %v1790
    %v1793 = vsub.f32 %v1783, %v1791
    %v1794 = vmul.f32 %v1792, %v1792
    %v1795 = vmul.f32 %v1793, %v1793
    %v1796 = vsel %vm50, %v1794, 0.0
    %1797 = vadd.xlane.f32.xlu0 %v1796
    %v1798 = vpop.xlane.xlu0 %1797
    %v1799 = vsel %vm50, %v1795, 0.0
    %1800 = vadd.xlane.f32.xlu0 %v1799
    %v1801 = vpop.xlane.xlu0 %1800
    %v1802 = vmul.f32 %v1798, %v1576
    %v1803 = vmul.f32 %v1801, %v1576
    %v1804 = vadd.f32 %v1802, 1e-05
    %v1805 = vadd.f32 %v1803, 1e-05
    %v1806 = vrsqrt.pop %v1804
    %v1807 = vrsqrt.pop %v1805
    %v1808 = vmul.f32 %v1792, %v1806
    %v1809 = vmul.f32 %v1793, %v1807
    %v1810 = vlaneseq
    %v1811 = vshrl.u32 %v1810, 7
    %v1812 = vsub.s32 4, %v1811
    %v1813 = vrot.slane %v45, %v1812
    %v1814 = vmul.f32 %v1808, %v1813
    %v1815 = vmul.f32 %v1809, %v1813
    %v1816 = vlaneseq
    %v1817 = vshrl.u32 %v1816, 7
    %v1818 = vsub.s32 5, %v1817
    %v1819 = vrot.slane %v45, %v1818
    %v1820 = vadd.f32 %v1814, %v1819
    %v1821 = vadd.f32 %v1815, %v1819
    %s1822 = scalar_lea.vmem %s1, 40
    %v1823 = vld [vmem:[%s1822] sm:$0xff]
    %v1824 = vld [vmem:[%s1822 + $0x8] sm:$0xff]
    %v1825 = vld [vmem:[%s1822 + $0x10] sm:$0xff]
    %v1826 = vld [vmem:[%s1822 + $0x18] sm:$0xff]
    %v1827 = vld [vmem:[%s1822 + $0x20] sm:$0xff]
    %s1828 = scalar_lea.vmem %s2, 40
    %v1829 = vld [vmem:[%s1828] sm:$0xff]
    %v1830 = vld [vmem:[%s1828 + $0x8] sm:$0xff]
    %v1831 = vld [vmem:[%s1828 + $0x10] sm:$0xff]
    %v1832 = vld [vmem:[%s1828 + $0x18] sm:$0xff]
    %v1833 = vld [vmem:[%s1828 + $0x20] sm:$0xff]
    %s1834 = scalar_lea.vmem %s3, 96
    %v1835 = vld [vmem:[%s1834] sm:$0xff]
    %v1836 = vld [vmem:[%s1834 + $0x8] sm:$0xff]
    %v1837 = vld [vmem:[%s1834 + $0x10] sm:$0xff]
    %v1838 = vld [vmem:[%s1834 + $0x18] sm:$0xff]
    %v1839 = vld [vmem:[%s1834 + $0x20] sm:$0xff]
    %v1840 = vld [vmem:[%s1834 + $0x28] sm:$0xff]
    %v1841 = vld [vmem:[%s1834 + $0x30] sm:$0xff]
    %v1842 = vld [vmem:[%s1834 + $0x38] sm:$0xff]
    %v1843 = vld [vmem:[%s1834 + $0x40] sm:$0xff]
    %v1844 = vld [vmem:[%s1834 + $0x48] sm:$0xff]
    %v1845 = vld [vmem:[%s1834 + $0x50] sm:$0xff]
    %v1846 = vld [vmem:[%s1834 + $0x58] sm:$0xff]
    %s1847 = scalar_lea.vmem %s4, 8
    %v1848 = vld [vmem:[%s1847] sm:$0xff]
    %v1849 = vlaneseq
    %v1850 = vshrl.u32 %v1849, 7
    %v1851 = vsub.s32 0, %v1850
    %v1852 = vrot.slane %v1827, %v1851
    %v1854 = vsel %vm50, %v1820, 0
    %v1857 = vsel %vm50, %v1821, 0
    %1859 = vmatprep.subr.mxu0 0.0
    %1860 = vmatpush1.msra.mxu0 0.0
    %1861 = vmatprep.subr.mxu0 0.0
    %1862 = vmatpush1.msra.mxu0 0.0
    %1863 = vmatprep.subr.mxu0 0.0
    %1864 = vmatpush1.msra.mxu0 0.0
    %1865 = vmatprep.subr.mxu0 0.0
    %1866 = vmatpush1.msra.mxu0 0.0
    %1867 = vmatprep.subr.mxu0 0.0
    %1868 = vmatpush1.msra.mxu0 0.0
    %1869 = vmatprep.subr.mxu0 0.0
    %1870 = vmatpush1.msra.mxu0 0.0
    %1871 = vmatprep.subr.mxu0 0.0
    %1872 = vmatpush1.msra.mxu0 0.0
    %1873 = vmatprep.subr.mxu0 0.0
    %1874 = vmatpush1.msra.mxu0 0.0
    %1875 = vmatprep.subr.mxu0 0.0
    %1876 = vmatpush1.msra.mxu0 0.0
    %1877 = vmatprep.subr.mxu0 0.0
    %1878 = vmatpush1.msra.mxu0 0.0
    %1879 = vmatprep.subr.mxu0 0.0
    %1880 = vmatpush1.msra.mxu0 0.0
    %1881 = vmatprep.subr.mxu0 0.0
    %1882 = vmatpush1.msra.mxu0 0.0
    %1883 = vmatprep.subr.mxu0 0.0
    %1884 = vmatpush1.msra.mxu0 %v1826
    %1885 = vmatprep.subr.mxu0 0.0
    %1886 = vmatpush1.msra.mxu0 %v1825
    %1887 = vmatprep.subr.mxu0 0.0
    %1888 = vmatpush1.msra.mxu0 %v1824
    %1889 = vmatprep.subr.mxu0 0.0
    %1890 = vmatpush1.msra.mxu0 %v1823
    %1891 = vmatprep.subr.mxu0 0.0
    %1892 = vmatpush2.msra.mxu0 0.0
    %1893 = vmatprep.subr.mxu0 0.0
    %1894 = vmatpush2.msra.mxu0 0.0
    %1895 = vmatprep.subr.mxu0 0.0
    %1896 = vmatpush2.msra.mxu0 0.0
    %1897 = vmatprep.subr.mxu0 0.0
    %1898 = vmatpush2.msra.mxu0 0.0
    %1899 = vmatprep.subr.mxu0 0.0
    %1900 = vmatpush2.msra.mxu0 0.0
    %1901 = vmatprep.subr.mxu0 0.0
    %1902 = vmatpush2.msra.mxu0 0.0
    %1903 = vmatprep.subr.mxu0 0.0
    %1904 = vmatpush2.msra.mxu0 0.0
    %1905 = vmatprep.subr.mxu0 0.0
    %1906 = vmatpush2.msra.mxu0 0.0
    %1907 = vmatprep.subr.mxu0 0.0
    %1908 = vmatpush2.msra.mxu0 0.0
    %1909 = vmatprep.subr.mxu0 0.0
    %1910 = vmatpush2.msra.mxu0 0.0
    %1911 = vmatprep.subr.mxu0 0.0
    %1912 = vmatpush2.msra.mxu0 0.0
    %1913 = vmatprep.subr.mxu0 0.0
    %1914 = vmatpush2.msra.mxu0 0.0
    %1915 = vmatprep.subr.mxu0 0.0
    %1916 = vmatpush2.msra.mxu0 0.0
    %1917 = vmatprep.subr.mxu0 0.0
    %1918 = vmatpush2.msra.mxu0 0.0
    %1919 = vmatprep.subr.mxu0 0.0
    %1920 = vmatpush2.msra.mxu0 0.0
    %1921 = vmatprep.subr.mxu0 0.0
    %1922 = vmatpush2.msra.mxu0 0.0
    %1923 = vmatprep.mubr.f32.mxu0 0.0
    %1924 = vmatmul.mubr.f32.gmra.mxu0 %v1854
    %v1925 = vpop.f32.mrf.mxu0
    %v1926 = vadd.f32 %v1852, %v1925
    %v1927 = vpop.f32.mrf.mxu0
    %1928 = vmatprep.mubr.f32.mxu0 0.0
    %1929 = vmatmul.mubr.f32.gmra.mxu0 %v1857
    %v1930 = vpop.f32.mrf.mxu0
    %v1931 = vadd.f32 %v1852, %v1930
    %v1932 = vpop.f32.mrf.mxu0
    %1933 = vdwg.mxu0
    %1936 = vrot.lane.b32.xlu0 %v1926, 120
    %v1937 = vpop.permute.xlu0 %1936
    %1938 = vrot.lane.b32.xlu0 %v1931, 120
    %v1939 = vpop.permute.xlu0 %1938
    %1940 = vrot.lane.b32.xlu0 %v1926, 112
    %v1941 = vpop.permute.xlu0 %1940
    %1942 = vrot.lane.b32.xlu0 %v1931, 112
    %v1943 = vpop.permute.xlu0 %1942
    %1944 = vrot.lane.b32.xlu0 %v1926, 104
    %v1945 = vpop.permute.xlu0 %1944
    %1946 = vrot.lane.b32.xlu0 %v1931, 104
    %v1947 = vpop.permute.xlu0 %1946
    %1948 = vrot.lane.b32.xlu0 %v1926, 96
    %v1949 = vpop.permute.xlu0 %1948
    %v1950 = vsel %vm148, %v1926, 0
    %v1952 = vsel %vm148, %v1949, 0
    %1954 = vmatprep.subr.mxu0 0.0
    %1955 = vmatpush1.xpose.msra.mxu0 0.0
    %1956 = vmatprep.subr.mxu0 0.0
    %1957 = vmatpush1.xpose.msra.mxu0 0.0
    %1958 = vmatprep.subr.mxu0 0.0
    %1959 = vmatpush1.xpose.msra.mxu0 0.0
    %1960 = vmatprep.subr.mxu0 0.0
    %1961 = vmatpush1.xpose.msra.mxu0 0.0
    %1962 = vmatprep.subr.mxu0 0.0
    %1963 = vmatpush1.xpose.msra.mxu0 0.0
    %1964 = vmatprep.subr.mxu0 0.0
    %1965 = vmatpush1.xpose.msra.mxu0 0.0
    %1966 = vmatprep.subr.mxu0 0.0
    %1967 = vmatpush1.xpose.msra.mxu0 0.0
    %1968 = vmatprep.subr.mxu0 0.0
    %1969 = vmatpush1.xpose.msra.mxu0 0.0
    %1970 = vmatprep.subr.mxu0 0.0
    %1971 = vmatpush1.xpose.msra.mxu0 0.0
    %1972 = vmatprep.subr.mxu0 0.0
    %1973 = vmatpush1.xpose.msra.mxu0 0.0
    %1974 = vmatprep.subr.mxu0 0.0
    %1975 = vmatpush1.xpose.msra.mxu0 0.0
    %1976 = vmatprep.subr.mxu0 0.0
    %1977 = vmatpush1.xpose.msra.mxu0 0.0
    %1978 = vmatprep.subr.mxu0 0.0
    %1979 = vmatpush1.xpose.msra.mxu0 0.0
    %1980 = vmatprep.subr.mxu0 0.0
    %1981 = vmatpush1.xpose.msra.mxu0 0.0
    %1982 = vmatprep.subr.mxu0 0.0
    %1983 = vmatpush1.xpose.msra.mxu0 0.0
    %1984 = vmatprep.subr.mxu0 0.0
    %1985 = vmatpush1.xpose.msra.mxu0 %v1952
    %1986 = vmatprep.subr.mxu0 0.0
    %1987 = vmatpush2.xpose.msra.mxu0 0.0
    %1988 = vmatprep.subr.mxu0 0.0
    %1989 = vmatpush2.xpose.msra.mxu0 0.0
    %1990 = vmatprep.subr.mxu0 0.0
    %1991 = vmatpush2.xpose.msra.mxu0 0.0
    %1992 = vmatprep.subr.mxu0 0.0
    %1993 = vmatpush2.xpose.msra.mxu0 0.0
    %1994 = vmatprep.subr.mxu0 0.0
    %1995 = vmatpush2.xpose.msra.mxu0 0.0
    %1996 = vmatprep.subr.mxu0 0.0
    %1997 = vmatpush2.xpose.msra.mxu0 0.0
    %1998 = vmatprep.subr.mxu0 0.0
    %1999 = vmatpush2.xpose.msra.mxu0 0.0
    %2000 = vmatprep.subr.mxu0 0.0
    %2001 = vmatpush2.xpose.msra.mxu0 0.0
    %2002 = vmatprep.subr.mxu0 0.0
    %2003 = vmatpush2.xpose.msra.mxu0 0.0
    %2004 = vmatprep.subr.mxu0 0.0
    %2005 = vmatpush2.xpose.msra.mxu0 0.0
    %2006 = vmatprep.subr.mxu0 0.0
    %2007 = vmatpush2.xpose.msra.mxu0 0.0
    %2008 = vmatprep.subr.mxu0 0.0
    %2009 = vmatpush2.xpose.msra.mxu0 0.0
    %2010 = vmatprep.subr.mxu0 0.0
    %2011 = vmatpush2.xpose.msra.mxu0 0.0
    %2012 = vmatprep.subr.mxu0 0.0
    %2013 = vmatpush2.xpose.msra.mxu0 0.0
    %2014 = vmatprep.subr.mxu0 0.0
    %2015 = vmatpush2.xpose.msra.mxu0 0.0
    %2016 = vmatprep.subr.mxu0 0.0
    %2017 = vmatpush2.xpose.msra.mxu0 0.0
    %2018 = vmatprep.mubr.f32.mxu0 0.0
    %2019 = vmatmul.mubr.f32.gmra.mxu0 %v1950
    %v2020 = vpop.f32.mrf.mxu0
    %v2021 = vadd.f32 0.0, %v2020
    %v2022 = vpop.f32.mrf.mxu0
    %2023 = vdwg.mxu0
    %2024 = vrot.lane.b32.xlu0 %v1931, 96
    %v2025 = vpop.permute.xlu0 %2024
    %v2026 = vsel %vm148, %v1931, 0
    %v2028 = vsel %vm148, %v2025, 0
    %2030 = vmatprep.subr.mxu0 0.0
    %2031 = vmatpush1.xpose.msra.mxu0 0.0
    %2032 = vmatprep.subr.mxu0 0.0
    %2033 = vmatpush1.xpose.msra.mxu0 0.0
    %2034 = vmatprep.subr.mxu0 0.0
    %2035 = vmatpush1.xpose.msra.mxu0 0.0
    %2036 = vmatprep.subr.mxu0 0.0
    %2037 = vmatpush1.xpose.msra.mxu0 0.0
    %2038 = vmatprep.subr.mxu0 0.0
    %2039 = vmatpush1.xpose.msra.mxu0 0.0
    %2040 = vmatprep.subr.mxu0 0.0
    %2041 = vmatpush1.xpose.msra.mxu0 0.0
    %2042 = vmatprep.subr.mxu0 0.0
    %2043 = vmatpush1.xpose.msra.mxu0 0.0
    %2044 = vmatprep.subr.mxu0 0.0
    %2045 = vmatpush1.xpose.msra.mxu0 0.0
    %2046 = vmatprep.subr.mxu0 0.0
    %2047 = vmatpush1.xpose.msra.mxu0 0.0
    %2048 = vmatprep.subr.mxu0 0.0
    %2049 = vmatpush1.xpose.msra.mxu0 0.0
    %2050 = vmatprep.subr.mxu0 0.0
    %2051 = vmatpush1.xpose.msra.mxu0 0.0
    %2052 = vmatprep.subr.mxu0 0.0
    %2053 = vmatpush1.xpose.msra.mxu0 0.0
    %2054 = vmatprep.subr.mxu0 0.0
    %2055 = vmatpush1.xpose.msra.mxu0 0.0
    %2056 = vmatprep.subr.mxu0 0.0
    %2057 = vmatpush1.xpose.msra.mxu0 0.0
    %2058 = vmatprep.subr.mxu0 0.0
    %2059 = vmatpush1.xpose.msra.mxu0 0.0
    %2060 = vmatprep.subr.mxu0 0.0
    %2061 = vmatpush1.xpose.msra.mxu0 %v2028
    %2062 = vmatprep.subr.mxu0 0.0
    %2063 = vmatpush2.xpose.msra.mxu0 0.0
    %2064 = vmatprep.subr.mxu0 0.0
    %2065 = vmatpush2.xpose.msra.mxu0 0.0
    %2066 = vmatprep.subr.mxu0 0.0
    %2067 = vmatpush2.xpose.msra.mxu0 0.0
    %2068 = vmatprep.subr.mxu0 0.0
    %2069 = vmatpush2.xpose.msra.mxu0 0.0
    %2070 = vmatprep.subr.mxu0 0.0
    %2071 = vmatpush2.xpose.msra.mxu0 0.0
    %2072 = vmatprep.subr.mxu0 0.0
    %2073 = vmatpush2.xpose.msra.mxu0 0.0
    %2074 = vmatprep.subr.mxu0 0.0
    %2075 = vmatpush2.xpose.msra.mxu0 0.0
    %2076 = vmatprep.subr.mxu0 0.0
    %2077 = vmatpush2.xpose.msra.mxu0 0.0
    %2078 = vmatprep.subr.mxu0 0.0
    %2079 = vmatpush2.xpose.msra.mxu0 0.0
    %2080 = vmatprep.subr.mxu0 0.0
    %2081 = vmatpush2.xpose.msra.mxu0 0.0
    %2082 = vmatprep.subr.mxu0 0.0
    %2083 = vmatpush2.xpose.msra.mxu0 0.0
    %2084 = vmatprep.subr.mxu0 0.0
    %2085 = vmatpush2.xpose.msra.mxu0 0.0
    %2086 = vmatprep.subr.mxu0 0.0
    %2087 = vmatpush2.xpose.msra.mxu0 0.0
    %2088 = vmatprep.subr.mxu0 0.0
    %2089 = vmatpush2.xpose.msra.mxu0 0.0
    %2090 = vmatprep.subr.mxu0 0.0
    %2091 = vmatpush2.xpose.msra.mxu0 0.0
    %2092 = vmatprep.subr.mxu0 0.0
    %2093 = vmatpush2.xpose.msra.mxu0 0.0
    %2094 = vmatprep.mubr.f32.mxu0 0.0
    %2095 = vmatmul.mubr.f32.gmra.mxu0 %v2026
    %v2096 = vpop.f32.mrf.mxu0
    %v2097 = vadd.f32 0.0, %v2096
    %v2098 = vpop.f32.mrf.mxu0
    %2099 = vdwg.mxu0
    %2100 = vrot.lane.b32.xlu0 %v1937, 96
    %v2101 = vpop.permute.xlu0 %2100
    %v2102 = vsel %vm148, %v1937, 0
    %v2104 = vsel %vm148, %v2101, 0
    %2106 = vmatprep.subr.mxu0 0.0
    %2107 = vmatpush1.xpose.msra.mxu0 0.0
    %2108 = vmatprep.subr.mxu0 0.0
    %2109 = vmatpush1.xpose.msra.mxu0 0.0
    %2110 = vmatprep.subr.mxu0 0.0
    %2111 = vmatpush1.xpose.msra.mxu0 0.0
    %2112 = vmatprep.subr.mxu0 0.0
    %2113 = vmatpush1.xpose.msra.mxu0 0.0
    %2114 = vmatprep.subr.mxu0 0.0
    %2115 = vmatpush1.xpose.msra.mxu0 0.0
    %2116 = vmatprep.subr.mxu0 0.0
    %2117 = vmatpush1.xpose.msra.mxu0 0.0
    %2118 = vmatprep.subr.mxu0 0.0
    %2119 = vmatpush1.xpose.msra.mxu0 0.0
    %2120 = vmatprep.subr.mxu0 0.0
    %2121 = vmatpush1.xpose.msra.mxu0 0.0
    %2122 = vmatprep.subr.mxu0 0.0
    %2123 = vmatpush1.xpose.msra.mxu0 0.0
    %2124 = vmatprep.subr.mxu0 0.0
    %2125 = vmatpush1.xpose.msra.mxu0 0.0
    %2126 = vmatprep.subr.mxu0 0.0
    %2127 = vmatpush1.xpose.msra.mxu0 0.0
    %2128 = vmatprep.subr.mxu0 0.0
    %2129 = vmatpush1.xpose.msra.mxu0 0.0
    %2130 = vmatprep.subr.mxu0 0.0
    %2131 = vmatpush1.xpose.msra.mxu0 0.0
    %2132 = vmatprep.subr.mxu0 0.0
    %2133 = vmatpush1.xpose.msra.mxu0 0.0
    %2134 = vmatprep.subr.mxu0 0.0
    %2135 = vmatpush1.xpose.msra.mxu0 0.0
    %2136 = vmatprep.subr.mxu0 0.0
    %2137 = vmatpush1.xpose.msra.mxu0 %v2104
    %2138 = vmatprep.subr.mxu0 0.0
    %2139 = vmatpush2.xpose.msra.mxu0 0.0
    %2140 = vmatprep.subr.mxu0 0.0
    %2141 = vmatpush2.xpose.msra.mxu0 0.0
    %2142 = vmatprep.subr.mxu0 0.0
    %2143 = vmatpush2.xpose.msra.mxu0 0.0
    %2144 = vmatprep.subr.mxu0 0.0
    %2145 = vmatpush2.xpose.msra.mxu0 0.0
    %2146 = vmatprep.subr.mxu0 0.0
    %2147 = vmatpush2.xpose.msra.mxu0 0.0
    %2148 = vmatprep.subr.mxu0 0.0
    %2149 = vmatpush2.xpose.msra.mxu0 0.0
    %2150 = vmatprep.subr.mxu0 0.0
    %2151 = vmatpush2.xpose.msra.mxu0 0.0
    %2152 = vmatprep.subr.mxu0 0.0
    %2153 = vmatpush2.xpose.msra.mxu0 0.0
    %2154 = vmatprep.subr.mxu0 0.0
    %2155 = vmatpush2.xpose.msra.mxu0 0.0
    %2156 = vmatprep.subr.mxu0 0.0
    %2157 = vmatpush2.xpose.msra.mxu0 0.0
    %2158 = vmatprep.subr.mxu0 0.0
    %2159 = vmatpush2.xpose.msra.mxu0 0.0
    %2160 = vmatprep.subr.mxu0 0.0
    %2161 = vmatpush2.xpose.msra.mxu0 0.0
    %2162 = vmatprep.subr.mxu0 0.0
    %2163 = vmatpush2.xpose.msra.mxu0 0.0
    %2164 = vmatprep.subr.mxu0 0.0
    %2165 = vmatpush2.xpose.msra.mxu0 0.0
    %2166 = vmatprep.subr.mxu0 0.0
    %2167 = vmatpush2.xpose.msra.mxu0 0.0
    %2168 = vmatprep.subr.mxu0 0.0
    %2169 = vmatpush2.xpose.msra.mxu0 0.0
    %2170 = vmatprep.mubr.f32.mxu0 0.0
    %2171 = vmatmul.mubr.f32.gmra.mxu0 %v2102
    %v2172 = vpop.f32.mrf.mxu0
    %v2173 = vadd.f32 0.0, %v2172
    %v2174 = vpop.f32.mrf.mxu0
    %2175 = vdwg.mxu0
    %2176 = vrot.lane.b32.xlu0 %v1939, 96
    %v2177 = vpop.permute.xlu0 %2176
    %v2178 = vsel %vm148, %v1939, 0
    %v2180 = vsel %vm148, %v2177, 0
    %2182 = vmatprep.subr.mxu0 0.0
    %2183 = vmatpush1.xpose.msra.mxu0 0.0
    %2184 = vmatprep.subr.mxu0 0.0
    %2185 = vmatpush1.xpose.msra.mxu0 0.0
    %2186 = vmatprep.subr.mxu0 0.0
    %2187 = vmatpush1.xpose.msra.mxu0 0.0
    %2188 = vmatprep.subr.mxu0 0.0
    %2189 = vmatpush1.xpose.msra.mxu0 0.0
    %2190 = vmatprep.subr.mxu0 0.0
    %2191 = vmatpush1.xpose.msra.mxu0 0.0
    %2192 = vmatprep.subr.mxu0 0.0
    %2193 = vmatpush1.xpose.msra.mxu0 0.0
    %2194 = vmatprep.subr.mxu0 0.0
    %2195 = vmatpush1.xpose.msra.mxu0 0.0
    %2196 = vmatprep.subr.mxu0 0.0
    %2197 = vmatpush1.xpose.msra.mxu0 0.0
    %2198 = vmatprep.subr.mxu0 0.0
    %2199 = vmatpush1.xpose.msra.mxu0 0.0
    %2200 = vmatprep.subr.mxu0 0.0
    %2201 = vmatpush1.xpose.msra.mxu0 0.0
    %2202 = vmatprep.subr.mxu0 0.0
    %2203 = vmatpush1.xpose.msra.mxu0 0.0
    %2204 = vmatprep.subr.mxu0 0.0
    %2205 = vmatpush1.xpose.msra.mxu0 0.0
    %2206 = vmatprep.subr.mxu0 0.0
    %2207 = vmatpush1.xpose.msra.mxu0 0.0
    %2208 = vmatprep.subr.mxu0 0.0
    %2209 = vmatpush1.xpose.msra.mxu0 0.0
    %2210 = vmatprep.subr.mxu0 0.0
    %2211 = vmatpush1.xpose.msra.mxu0 0.0
    %2212 = vmatprep.subr.mxu0 0.0
    %2213 = vmatpush1.xpose.msra.mxu0 %v2180
    %2214 = vmatprep.subr.mxu0 0.0
    %2215 = vmatpush2.xpose.msra.mxu0 0.0
    %2216 = vmatprep.subr.mxu0 0.0
    %2217 = vmatpush2.xpose.msra.mxu0 0.0
    %2218 = vmatprep.subr.mxu0 0.0
    %2219 = vmatpush2.xpose.msra.mxu0 0.0
    %2220 = vmatprep.subr.mxu0 0.0
    %2221 = vmatpush2.xpose.msra.mxu0 0.0
    %2222 = vmatprep.subr.mxu0 0.0
    %2223 = vmatpush2.xpose.msra.mxu0 0.0
    %2224 = vmatprep.subr.mxu0 0.0
    %2225 = vmatpush2.xpose.msra.mxu0 0.0
    %2226 = vmatprep.subr.mxu0 0.0
    %2227 = vmatpush2.xpose.msra.mxu0 0.0
    %2228 = vmatprep.subr.mxu0 0.0
    %2229 = vmatpush2.xpose.msra.mxu0 0.0
    %2230 = vmatprep.subr.mxu0 0.0
    %2231 = vmatpush2.xpose.msra.mxu0 0.0
    %2232 = vmatprep.subr.mxu0 0.0
    %2233 = vmatpush2.xpose.msra.mxu0 0.0
    %2234 = vmatprep.subr.mxu0 0.0
    %2235 = vmatpush2.xpose.msra.mxu0 0.0
    %2236 = vmatprep.subr.mxu0 0.0
    %2237 = vmatpush2.xpose.msra.mxu0 0.0
    %2238 = vmatprep.subr.mxu0 0.0
    %2239 = vmatpush2.xpose.msra.mxu0 0.0
    %2240 = vmatprep.subr.mxu0 0.0
    %2241 = vmatpush2.xpose.msra.mxu0 0.0
    %2242 = vmatprep.subr.mxu0 0.0
    %2243 = vmatpush2.xpose.msra.mxu0 0.0
    %2244 = vmatprep.subr.mxu0 0.0
    %2245 = vmatpush2.xpose.msra.mxu0 0.0
    %2246 = vmatprep.mubr.f32.mxu0 0.0
    %2247 = vmatmul.mubr.f32.gmra.mxu0 %v2178
    %v2248 = vpop.f32.mrf.mxu0
    %v2249 = vadd.f32 0.0, %v2248
    %v2250 = vpop.f32.mrf.mxu0
    %2251 = vdwg.mxu0
    %2252 = vrot.lane.b32.xlu0 %v1941, 96
    %v2253 = vpop.permute.xlu0 %2252
    %v2254 = vsel %vm148, %v1941, 0
    %v2256 = vsel %vm148, %v2253, 0
    %2258 = vmatprep.subr.mxu0 0.0
    %2259 = vmatpush1.xpose.msra.mxu0 0.0
    %2260 = vmatprep.subr.mxu0 0.0
    %2261 = vmatpush1.xpose.msra.mxu0 0.0
    %2262 = vmatprep.subr.mxu0 0.0
    %2263 = vmatpush1.xpose.msra.mxu0 0.0
    %2264 = vmatprep.subr.mxu0 0.0
    %2265 = vmatpush1.xpose.msra.mxu0 0.0
    %2266 = vmatprep.subr.mxu0 0.0
    %2267 = vmatpush1.xpose.msra.mxu0 0.0
    %2268 = vmatprep.subr.mxu0 0.0
    %2269 = vmatpush1.xpose.msra.mxu0 0.0
    %2270 = vmatprep.subr.mxu0 0.0
    %2271 = vmatpush1.xpose.msra.mxu0 0.0
    %2272 = vmatprep.subr.mxu0 0.0
    %2273 = vmatpush1.xpose.msra.mxu0 0.0
    %2274 = vmatprep.subr.mxu0 0.0
    %2275 = vmatpush1.xpose.msra.mxu0 0.0
    %2276 = vmatprep.subr.mxu0 0.0
    %2277 = vmatpush1.xpose.msra.mxu0 0.0
    %2278 = vmatprep.subr.mxu0 0.0
    %2279 = vmatpush1.xpose.msra.mxu0 0.0
    %2280 = vmatprep.subr.mxu0 0.0
    %2281 = vmatpush1.xpose.msra.mxu0 0.0
    %2282 = vmatprep.subr.mxu0 0.0
    %2283 = vmatpush1.xpose.msra.mxu0 0.0
    %2284 = vmatprep.subr.mxu0 0.0
    %2285 = vmatpush1.xpose.msra.mxu0 0.0
    %2286 = vmatprep.subr.mxu0 0.0
    %2287 = vmatpush1.xpose.msra.mxu0 0.0
    %2288 = vmatprep.subr.mxu0 0.0
    %2289 = vmatpush1.xpose.msra.mxu0 %v2256
    %2290 = vmatprep.subr.mxu0 0.0
    %2291 = vmatpush2.xpose.msra.mxu0 0.0
    %2292 = vmatprep.subr.mxu0 0.0
    %2293 = vmatpush2.xpose.msra.mxu0 0.0
    %2294 = vmatprep.subr.mxu0 0.0
    %2295 = vmatpush2.xpose.msra.mxu0 0.0
    %2296 = vmatprep.subr.mxu0 0.0
    %2297 = vmatpush2.xpose.msra.mxu0 0.0
    %2298 = vmatprep.subr.mxu0 0.0
    %2299 = vmatpush2.xpose.msra.mxu0 0.0
    %2300 = vmatprep.subr.mxu0 0.0
    %2301 = vmatpush2.xpose.msra.mxu0 0.0
    %2302 = vmatprep.subr.mxu0 0.0
    %2303 = vmatpush2.xpose.msra.mxu0 0.0
    %2304 = vmatprep.subr.mxu0 0.0
    %2305 = vmatpush2.xpose.msra.mxu0 0.0
    %2306 = vmatprep.subr.mxu0 0.0
    %2307 = vmatpush2.xpose.msra.mxu0 0.0
    %2308 = vmatprep.subr.mxu0 0.0
    %2309 = vmatpush2.xpose.msra.mxu0 0.0
    %2310 = vmatprep.subr.mxu0 0.0
    %2311 = vmatpush2.xpose.msra.mxu0 0.0
    %2312 = vmatprep.subr.mxu0 0.0
    %2313 = vmatpush2.xpose.msra.mxu0 0.0
    %2314 = vmatprep.subr.mxu0 0.0
    %2315 = vmatpush2.xpose.msra.mxu0 0.0
    %2316 = vmatprep.subr.mxu0 0.0
    %2317 = vmatpush2.xpose.msra.mxu0 0.0
    %2318 = vmatprep.subr.mxu0 0.0
    %2319 = vmatpush2.xpose.msra.mxu0 0.0
    %2320 = vmatprep.subr.mxu0 0.0
    %2321 = vmatpush2.xpose.msra.mxu0 0.0
    %2322 = vmatprep.mubr.f32.mxu0 0.0
    %2323 = vmatmul.mubr.f32.gmra.mxu0 %v2254
    %v2324 = vpop.f32.mrf.mxu0
    %v2325 = vadd.f32 0.0, %v2324
    %v2326 = vpop.f32.mrf.mxu0
    %2327 = vdwg.mxu0
    %2328 = vrot.lane.b32.xlu0 %v1943, 96
    %v2329 = vpop.permute.xlu0 %2328
    %v2330 = vsel %vm148, %v1943, 0
    %v2332 = vsel %vm148, %v2329, 0
    %2334 = vmatprep.subr.mxu0 0.0
    %2335 = vmatpush1.xpose.msra.mxu0 0.0
    %2336 = vmatprep.subr.mxu0 0.0
    %2337 = vmatpush1.xpose.msra.mxu0 0.0
    %2338 = vmatprep.subr.mxu0 0.0
    %2339 = vmatpush1.xpose.msra.mxu0 0.0
    %2340 = vmatprep.subr.mxu0 0.0
    %2341 = vmatpush1.xpose.msra.mxu0 0.0
    %2342 = vmatprep.subr.mxu0 0.0
    %2343 = vmatpush1.xpose.msra.mxu0 0.0
    %2344 = vmatprep.subr.mxu0 0.0
    %2345 = vmatpush1.xpose.msra.mxu0 0.0
    %2346 = vmatprep.subr.mxu0 0.0
    %2347 = vmatpush1.xpose.msra.mxu0 0.0
    %2348 = vmatprep.subr.mxu0 0.0
    %2349 = vmatpush1.xpose.msra.mxu0 0.0
    %2350 = vmatprep.subr.mxu0 0.0
    %2351 = vmatpush1.xpose.msra.mxu0 0.0
    %2352 = vmatprep.subr.mxu0 0.0
    %2353 = vmatpush1.xpose.msra.mxu0 0.0
    %2354 = vmatprep.subr.mxu0 0.0
    %2355 = vmatpush1.xpose.msra.mxu0 0.0
    %2356 = vmatprep.subr.mxu0 0.0
    %2357 = vmatpush1.xpose.msra.mxu0 0.0
    %2358 = vmatprep.subr.mxu0 0.0
    %2359 = vmatpush1.xpose.msra.mxu0 0.0
    %2360 = vmatprep.subr.mxu0 0.0
    %2361 = vmatpush1.xpose.msra.mxu0 0.0
    %2362 = vmatprep.subr.mxu0 0.0
    %2363 = vmatpush1.xpose.msra.mxu0 0.0
    %2364 = vmatprep.subr.mxu0 0.0
    %2365 = vmatpush1.xpose.msra.mxu0 %v2332
    %2366 = vmatprep.subr.mxu0 0.0
    %2367 = vmatpush2.xpose.msra.mxu0 0.0
    %2368 = vmatprep.subr.mxu0 0.0
    %2369 = vmatpush2.xpose.msra.mxu0 0.0
    %2370 = vmatprep.subr.mxu0 0.0
    %2371 = vmatpush2.xpose.msra.mxu0 0.0
    %2372 = vmatprep.subr.mxu0 0.0
    %2373 = vmatpush2.xpose.msra.mxu0 0.0
    %2374 = vmatprep.subr.mxu0 0.0
    %2375 = vmatpush2.xpose.msra.mxu0 0.0
    %2376 = vmatprep.subr.mxu0 0.0
    %2377 = vmatpush2.xpose.msra.mxu0 0.0
    %2378 = vmatprep.subr.mxu0 0.0
    %2379 = vmatpush2.xpose.msra.mxu0 0.0
    %2380 = vmatprep.subr.mxu0 0.0
    %2381 = vmatpush2.xpose.msra.mxu0 0.0
    %2382 = vmatprep.subr.mxu0 0.0
    %2383 = vmatpush2.xpose.msra.mxu0 0.0
    %2384 = vmatprep.subr.mxu0 0.0
    %2385 = vmatpush2.xpose.msra.mxu0 0.0
    %2386 = vmatprep.subr.mxu0 0.0
    %2387 = vmatpush2.xpose.msra.mxu0 0.0
    %2388 = vmatprep.subr.mxu0 0.0
    %2389 = vmatpush2.xpose.msra.mxu0 0.0
    %2390 = vmatprep.subr.mxu0 0.0
    %2391 = vmatpush2.xpose.msra.mxu0 0.0
    %2392 = vmatprep.subr.mxu0 0.0
    %2393 = vmatpush2.xpose.msra.mxu0 0.0
    %2394 = vmatprep.subr.mxu0 0.0
    %2395 = vmatpush2.xpose.msra.mxu0 0.0
    %2396 = vmatprep.subr.mxu0 0.0
    %2397 = vmatpush2.xpose.msra.mxu0 0.0
    %2398 = vmatprep.mubr.f32.mxu0 0.0
    %2399 = vmatmul.mubr.f32.gmra.mxu0 %v2330
    %v2400 = vpop.f32.mrf.mxu0
    %v2401 = vadd.f32 0.0, %v2400
    %v2402 = vpop.f32.mrf.mxu0
    %2403 = vdwg.mxu0
    %2404 = vrot.lane.b32.xlu0 %v1945, 96
    %v2405 = vpop.permute.xlu0 %2404
    %v2406 = vsel %vm148, %v1945, 0
    %v2408 = vsel %vm148, %v2405, 0
    %2410 = vmatprep.subr.mxu0 0.0
    %2411 = vmatpush1.xpose.msra.mxu0 0.0
    %2412 = vmatprep.subr.mxu0 0.0
    %2413 = vmatpush1.xpose.msra.mxu0 0.0
    %2414 = vmatprep.subr.mxu0 0.0
    %2415 = vmatpush1.xpose.msra.mxu0 0.0
    %2416 = vmatprep.subr.mxu0 0.0
    %2417 = vmatpush1.xpose.msra.mxu0 0.0
    %2418 = vmatprep.subr.mxu0 0.0
    %2419 = vmatpush1.xpose.msra.mxu0 0.0
    %2420 = vmatprep.subr.mxu0 0.0
    %2421 = vmatpush1.xpose.msra.mxu0 0.0
    %2422 = vmatprep.subr.mxu0 0.0
    %2423 = vmatpush1.xpose.msra.mxu0 0.0
    %2424 = vmatprep.subr.mxu0 0.0
    %2425 = vmatpush1.xpose.msra.mxu0 0.0
    %2426 = vmatprep.subr.mxu0 0.0
    %2427 = vmatpush1.xpose.msra.mxu0 0.0
    %2428 = vmatprep.subr.mxu0 0.0
    %2429 = vmatpush1.xpose.msra.mxu0 0.0
    %2430 = vmatprep.subr.mxu0 0.0
    %2431 = vmatpush1.xpose.msra.mxu0 0.0
    %2432 = vmatprep.subr.mxu0 0.0
    %2433 = vmatpush1.xpose.msra.mxu0 0.0
    %2434 = vmatprep.subr.mxu0 0.0
    %2435 = vmatpush1.xpose.msra.mxu0 0.0
    %2436 = vmatprep.subr.mxu0 0.0
    %2437 = vmatpush1.xpose.msra.mxu0 0.0
    %2438 = vmatprep.subr.mxu0 0.0
    %2439 = vmatpush1.xpose.msra.mxu0 0.0
    %2440 = vmatprep.subr.mxu0 0.0
    %2441 = vmatpush1.xpose.msra.mxu0 %v2408
    %2442 = vmatprep.subr.mxu0 0.0
    %2443 = vmatpush2.xpose.msra.mxu0 0.0
    %2444 = vmatprep.subr.mxu0 0.0
    %2445 = vmatpush2.xpose.msra.mxu0 0.0
    %2446 = vmatprep.subr.mxu0 0.0
    %2447 = vmatpush2.xpose.msra.mxu0 0.0
    %2448 = vmatprep.subr.mxu0 0.0
    %2449 = vmatpush2.xpose.msra.mxu0 0.0
    %2450 = vmatprep.subr.mxu0 0.0
    %2451 = vmatpush2.xpose.msra.mxu0 0.0
    %2452 = vmatprep.subr.mxu0 0.0
    %2453 = vmatpush2.xpose.msra.mxu0 0.0
    %2454 = vmatprep.subr.mxu0 0.0
    %2455 = vmatpush2.xpose.msra.mxu0 0.0
    %2456 = vmatprep.subr.mxu0 0.0
    %2457 = vmatpush2.xpose.msra.mxu0 0.0
    %2458 = vmatprep.subr.mxu0 0.0
    %2459 = vmatpush2.xpose.msra.mxu0 0.0
    %2460 = vmatprep.subr.mxu0 0.0
    %2461 = vmatpush2.xpose.msra.mxu0 0.0
    %2462 = vmatprep.subr.mxu0 0.0
    %2463 = vmatpush2.xpose.msra.mxu0 0.0
    %2464 = vmatprep.subr.mxu0 0.0
    %2465 = vmatpush2.xpose.msra.mxu0 0.0
    %2466 = vmatprep.subr.mxu0 0.0
    %2467 = vmatpush2.xpose.msra.mxu0 0.0
    %2468 = vmatprep.subr.mxu0 0.0
    %2469 = vmatpush2.xpose.msra.mxu0 0.0
    %2470 = vmatprep.subr.mxu0 0.0
    %2471 = vmatpush2.xpose.msra.mxu0 0.0
    %2472 = vmatprep.subr.mxu0 0.0
    %2473 = vmatpush2.xpose.msra.mxu0 0.0
    %2474 = vmatprep.mubr.f32.mxu0 0.0
    %2475 = vmatmul.mubr.f32.gmra.mxu0 %v2406
    %v2476 = vpop.f32.mrf.mxu0
    %v2477 = vadd.f32 0.0, %v2476
    %v2478 = vpop.f32.mrf.mxu0
    %2479 = vdwg.mxu0
    %2480 = vrot.lane.b32.xlu0 %v1947, 96
    %v2481 = vpop.permute.xlu0 %2480
    %v2482 = vsel %vm148, %v1947, 0
    %v2484 = vsel %vm148, %v2481, 0
    %2486 = vmatprep.subr.mxu0 0.0
    %2487 = vmatpush1.xpose.msra.mxu0 0.0
    %2488 = vmatprep.subr.mxu0 0.0
    %2489 = vmatpush1.xpose.msra.mxu0 0.0
    %2490 = vmatprep.subr.mxu0 0.0
    %2491 = vmatpush1.xpose.msra.mxu0 0.0
    %2492 = vmatprep.subr.mxu0 0.0
    %2493 = vmatpush1.xpose.msra.mxu0 0.0
    %2494 = vmatprep.subr.mxu0 0.0
    %2495 = vmatpush1.xpose.msra.mxu0 0.0
    %2496 = vmatprep.subr.mxu0 0.0
    %2497 = vmatpush1.xpose.msra.mxu0 0.0
    %2498 = vmatprep.subr.mxu0 0.0
    %2499 = vmatpush1.xpose.msra.mxu0 0.0
    %2500 = vmatprep.subr.mxu0 0.0
    %2501 = vmatpush1.xpose.msra.mxu0 0.0
    %2502 = vmatprep.subr.mxu0 0.0
    %2503 = vmatpush1.xpose.msra.mxu0 0.0
    %2504 = vmatprep.subr.mxu0 0.0
    %2505 = vmatpush1.xpose.msra.mxu0 0.0
    %2506 = vmatprep.subr.mxu0 0.0
    %2507 = vmatpush1.xpose.msra.mxu0 0.0
    %2508 = vmatprep.subr.mxu0 0.0
    %2509 = vmatpush1.xpose.msra.mxu0 0.0
    %2510 = vmatprep.subr.mxu0 0.0
    %2511 = vmatpush1.xpose.msra.mxu0 0.0
    %2512 = vmatprep.subr.mxu0 0.0
    %2513 = vmatpush1.xpose.msra.mxu0 0.0
    %2514 = vmatprep.subr.mxu0 0.0
    %2515 = vmatpush1.xpose.msra.mxu0 0.0
    %2516 = vmatprep.subr.mxu0 0.0
    %2517 = vmatpush1.xpose.msra.mxu0 %v2484
    %2518 = vmatprep.subr.mxu0 0.0
    %2519 = vmatpush2.xpose.msra.mxu0 0.0
    %2520 = vmatprep.subr.mxu0 0.0
    %2521 = vmatpush2.xpose.msra.mxu0 0.0
    %2522 = vmatprep.subr.mxu0 0.0
    %2523 = vmatpush2.xpose.msra.mxu0 0.0
    %2524 = vmatprep.subr.mxu0 0.0
    %2525 = vmatpush2.xpose.msra.mxu0 0.0
    %2526 = vmatprep.subr.mxu0 0.0
    %2527 = vmatpush2.xpose.msra.mxu0 0.0
    %2528 = vmatprep.subr.mxu0 0.0
    %2529 = vmatpush2.xpose.msra.mxu0 0.0
    %2530 = vmatprep.subr.mxu0 0.0
    %2531 = vmatpush2.xpose.msra.mxu0 0.0
    %2532 = vmatprep.subr.mxu0 0.0
    %2533 = vmatpush2.xpose.msra.mxu0 0.0
    %2534 = vmatprep.subr.mxu0 0.0
    %2535 = vmatpush2.xpose.msra.mxu0 0.0
    %2536 = vmatprep.subr.mxu0 0.0
    %2537 = vmatpush2.xpose.msra.mxu0 0.0
    %2538 = vmatprep.subr.mxu0 0.0
    %2539 = vmatpush2.xpose.msra.mxu0 0.0
    %2540 = vmatprep.subr.mxu0 0.0
    %2541 = vmatpush2.xpose.msra.mxu0 0.0
    %2542 = vmatprep.subr.mxu0 0.0
    %2543 = vmatpush2.xpose.msra.mxu0 0.0
    %2544 = vmatprep.subr.mxu0 0.0
    %2545 = vmatpush2.xpose.msra.mxu0 0.0
    %2546 = vmatprep.subr.mxu0 0.0
    %2547 = vmatpush2.xpose.msra.mxu0 0.0
    %2548 = vmatprep.subr.mxu0 0.0
    %2549 = vmatpush2.xpose.msra.mxu0 0.0
    %2550 = vmatprep.mubr.f32.mxu0 0.0
    %2551 = vmatmul.mubr.f32.gmra.mxu0 %v2482
    %v2552 = vpop.f32.mrf.mxu0
    %v2553 = vadd.f32 0.0, %v2552
    %v2554 = vpop.f32.mrf.mxu0
    %2555 = vdwg.mxu0
    %v2556 = vsel %vm148, %v2021, -inf
    %2557 = vmax.xlane.f32.xlu0 %v2556
    %v2558 = vpop.xlane.xlu0 %2557
    %v2559 = vsel %vm148, %v2097, -inf
    %2560 = vmax.xlane.f32.xlu0 %v2559
    %v2561 = vpop.xlane.xlu0 %2560
    %v2562 = vsel %vm148, %v2173, -inf
    %2563 = vmax.xlane.f32.xlu0 %v2562
    %v2564 = vpop.xlane.xlu0 %2563
    %v2565 = vsel %vm148, %v2249, -inf
    %2566 = vmax.xlane.f32.xlu0 %v2565
    %v2567 = vpop.xlane.xlu0 %2566
    %v2568 = vsel %vm148, %v2325, -inf
    %2569 = vmax.xlane.f32.xlu0 %v2568
    %v2570 = vpop.xlane.xlu0 %2569
    %v2571 = vsel %vm148, %v2401, -inf
    %2572 = vmax.xlane.f32.xlu0 %v2571
    %v2573 = vpop.xlane.xlu0 %2572
    %v2574 = vsel %vm148, %v2477, -inf
    %2575 = vmax.xlane.f32.xlu0 %v2574
    %v2576 = vpop.xlane.xlu0 %2575
    %v2577 = vsel %vm148, %v2553, -inf
    %2578 = vmax.xlane.f32.xlu0 %v2577
    %v2579 = vpop.xlane.xlu0 %2578
    %v2580 = vsub.f32 %v2021, %v2558
    %v2581 = vsub.f32 %v2097, %v2561
    %v2582 = vsub.f32 %v2173, %v2564
    %v2583 = vsub.f32 %v2249, %v2567
    %v2584 = vsub.f32 %v2325, %v2570
    %v2585 = vsub.f32 %v2401, %v2573
    %v2586 = vsub.f32 %v2477, %v2576
    %v2587 = vsub.f32 %v2553, %v2579
    %v2588 = vmul.f32 %v2580, 1.442695
    %v2589 = vpow.pop %v2588
    %v2590 = vmul.f32 %v2581, 1.442695
    %v2591 = vpow.pop %v2590
    %v2592 = vmul.f32 %v2582, 1.442695
    %v2593 = vpow.pop %v2592
    %v2594 = vmul.f32 %v2583, 1.442695
    %v2595 = vpow.pop %v2594
    %v2596 = vmul.f32 %v2584, 1.442695
    %v2597 = vpow.pop %v2596
    %v2598 = vmul.f32 %v2585, 1.442695
    %v2599 = vpow.pop %v2598
    %v2600 = vmul.f32 %v2586, 1.442695
    %v2601 = vpow.pop %v2600
    %v2602 = vmul.f32 %v2587, 1.442695
    %v2603 = vpow.pop %v2602
    %v2604 = vsel %vm148, %v2589, 0.0
    %2605 = vadd.xlane.f32.xlu0 %v2604
    %v2606 = vpop.xlane.xlu0 %2605
    %v2607 = vsel %vm148, %v2591, 0.0
    %2608 = vadd.xlane.f32.xlu0 %v2607
    %v2609 = vpop.xlane.xlu0 %2608
    %v2610 = vsel %vm148, %v2593, 0.0
    %2611 = vadd.xlane.f32.xlu0 %v2610
    %v2612 = vpop.xlane.xlu0 %2611
    %v2613 = vsel %vm148, %v2595, 0.0
    %2614 = vadd.xlane.f32.xlu0 %v2613
    %v2615 = vpop.xlane.xlu0 %2614
    %v2616 = vsel %vm148, %v2597, 0.0
    %2617 = vadd.xlane.f32.xlu0 %v2616
    %v2618 = vpop.xlane.xlu0 %2617
    %v2619 = vsel %vm148, %v2599, 0.0
    %2620 = vadd.xlane.f32.xlu0 %v2619
    %v2621 = vpop.xlane.xlu0 %2620
    %v2622 = vsel %vm148, %v2601, 0.0
    %2623 = vadd.xlane.f32.xlu0 %v2622
    %v2624 = vpop.xlane.xlu0 %2623
    %v2625 = vsel %vm148, %v2603, 0.0
    %2626 = vadd.xlane.f32.xlu0 %v2625
    %v2627 = vpop.xlane.xlu0 %2626
    %v2628 = vrcp.pop %v2606
    %v2629 = vrcp.pop %v2609
    %v2630 = vrcp.pop %v2612
    %v2631 = vrcp.pop %v2615
    %v2632 = vrcp.pop %v2618
    %v2633 = vrcp.pop %v2621
    %v2634 = vrcp.pop %v2624
    %v2635 = vrcp.pop %v2627
    %v2636 = vmul.f32 %v2589, %v2628
    %v2637 = vmul.f32 %v2591, %v2629
    %v2638 = vmul.f32 %v2593, %v2630
    %v2639 = vmul.f32 %v2595, %v2631
    %v2640 = vmul.f32 %v2597, %v2632
    %v2641 = vmul.f32 %v2599, %v2633
    %v2642 = vmul.f32 %v2601, %v2634
    %v2643 = vmul.f32 %v2603, %v2635
    %2644 = vrot.lane.b32.xlu0 %v1926, 64
    %v2645 = vpop.permute.xlu0 %2644
    %v2648 = vsel %vm148, %v2636, 0
    %2650 = vmatprep.subr.mxu0 0.0
    %2651 = vmatpush1.msra.mxu0 0.0
    %2652 = vmatprep.subr.mxu0 0.0
    %2653 = vmatpush1.msra.mxu0 0.0
    %2654 = vmatprep.subr.mxu0 0.0
    %2655 = vmatpush1.msra.mxu0 0.0
    %2656 = vmatprep.subr.mxu0 0.0
    %2657 = vmatpush1.msra.mxu0 0.0
    %2658 = vmatprep.subr.mxu0 0.0
    %2659 = vmatpush1.msra.mxu0 0.0
    %2660 = vmatprep.subr.mxu0 0.0
    %2661 = vmatpush1.msra.mxu0 0.0
    %2662 = vmatprep.subr.mxu0 0.0
    %2663 = vmatpush1.msra.mxu0 0.0
    %2664 = vmatprep.subr.mxu0 0.0
    %2665 = vmatpush1.msra.mxu0 0.0
    %2666 = vmatprep.subr.mxu0 0.0
    %2667 = vmatpush1.msra.mxu0 0.0
    %2668 = vmatprep.subr.mxu0 0.0
    %2669 = vmatpush1.msra.mxu0 0.0
    %2670 = vmatprep.subr.mxu0 0.0
    %2671 = vmatpush1.msra.mxu0 0.0
    %2672 = vmatprep.subr.mxu0 0.0
    %2673 = vmatpush1.msra.mxu0 0.0
    %2674 = vmatprep.subr.mxu0 0.0
    %2675 = vmatpush1.msra.mxu0 0.0
    %2676 = vmatprep.subr.mxu0 0.0
    %2677 = vmatpush1.msra.mxu0 0.0
    %2678 = vmatprep.subr.mxu0 0.0
    %2679 = vmatpush1.msra.mxu0 0.0
    %2680 = vmatprep.subr.mxu0 0.0
    %2681 = vmatpush1.msra.mxu0 %v2645
    %2682 = vmatprep.subr.mxu0 0.0
    %2683 = vmatpush2.msra.mxu0 0.0
    %2684 = vmatprep.subr.mxu0 0.0
    %2685 = vmatpush2.msra.mxu0 0.0
    %2686 = vmatprep.subr.mxu0 0.0
    %2687 = vmatpush2.msra.mxu0 0.0
    %2688 = vmatprep.subr.mxu0 0.0
    %2689 = vmatpush2.msra.mxu0 0.0
    %2690 = vmatprep.subr.mxu0 0.0
    %2691 = vmatpush2.msra.mxu0 0.0
    %2692 = vmatprep.subr.mxu0 0.0
    %2693 = vmatpush2.msra.mxu0 0.0
    %2694 = vmatprep.subr.mxu0 0.0
    %2695 = vmatpush2.msra.mxu0 0.0
    %2696 = vmatprep.subr.mxu0 0.0
    %2697 = vmatpush2.msra.mxu0 0.0
    %2698 = vmatprep.subr.mxu0 0.0
    %2699 = vmatpush2.msra.mxu0 0.0
    %2700 = vmatprep.subr.mxu0 0.0
    %2701 = vmatpush2.msra.mxu0 0.0
    %2702 = vmatprep.subr.mxu0 0.0
    %2703 = vmatpush2.msra.mxu0 0.0
    %2704 = vmatprep.subr.mxu0 0.0
    %2705 = vmatpush2.msra.mxu0 0.0
    %2706 = vmatprep.subr.mxu0 0.0
    %2707 = vmatpush2.msra.mxu0 0.0
    %2708 = vmatprep.subr.mxu0 0.0
    %2709 = vmatpush2.msra.mxu0 0.0
    %2710 = vmatprep.subr.mxu0 0.0
    %2711 = vmatpush2.msra.mxu0 0.0
    %2712 = vmatprep.subr.mxu0 0.0
    %2713 = vmatpush2.msra.mxu0 0.0
    %2714 = vmatprep.mubr.f32.mxu0 0.0
    %2715 = vmatmul.mubr.f32.gmra.mxu0 %v2648
    %v2716 = vpop.f32.mrf.mxu0
    %v2717 = vadd.f32 0.0, %v2716
    %v2718 = vpop.f32.mrf.mxu0
    %2719 = vdwg.mxu0
    %2720 = vrot.lane.b32.xlu0 %v1931, 64
    %v2721 = vpop.permute.xlu0 %2720
    %v2724 = vsel %vm148, %v2637, 0
    %2726 = vmatprep.subr.mxu0 0.0
    %2727 = vmatpush1.msra.mxu0 0.0
    %2728 = vmatprep.subr.mxu0 0.0
    %2729 = vmatpush1.msra.mxu0 0.0
    %2730 = vmatprep.subr.mxu0 0.0
    %2731 = vmatpush1.msra.mxu0 0.0
    %2732 = vmatprep.subr.mxu0 0.0
    %2733 = vmatpush1.msra.mxu0 0.0
    %2734 = vmatprep.subr.mxu0 0.0
    %2735 = vmatpush1.msra.mxu0 0.0
    %2736 = vmatprep.subr.mxu0 0.0
    %2737 = vmatpush1.msra.mxu0 0.0
    %2738 = vmatprep.subr.mxu0 0.0
    %2739 = vmatpush1.msra.mxu0 0.0
    %2740 = vmatprep.subr.mxu0 0.0
    %2741 = vmatpush1.msra.mxu0 0.0
    %2742 = vmatprep.subr.mxu0 0.0
    %2743 = vmatpush1.msra.mxu0 0.0
    %2744 = vmatprep.subr.mxu0 0.0
    %2745 = vmatpush1.msra.mxu0 0.0
    %2746 = vmatprep.subr.mxu0 0.0
    %2747 = vmatpush1.msra.mxu0 0.0
    %2748 = vmatprep.subr.mxu0 0.0
    %2749 = vmatpush1.msra.mxu0 0.0
    %2750 = vmatprep.subr.mxu0 0.0
    %2751 = vmatpush1.msra.mxu0 0.0
    %2752 = vmatprep.subr.mxu0 0.0
    %2753 = vmatpush1.msra.mxu0 0.0
    %2754 = vmatprep.subr.mxu0 0.0
    %2755 = vmatpush1.msra.mxu0 0.0
    %2756 = vmatprep.subr.mxu0 0.0
    %2757 = vmatpush1.msra.mxu0 %v2721
    %2758 = vmatprep.subr.mxu0 0.0
    %2759 = vmatpush2.msra.mxu0 0.0
    %2760 = vmatprep.subr.mxu0 0.0
    %2761 = vmatpush2.msra.mxu0 0.0
    %2762 = vmatprep.subr.mxu0 0.0
    %2763 = vmatpush2.msra.mxu0 0.0
    %2764 = vmatprep.subr.mxu0 0.0
    %2765 = vmatpush2.msra.mxu0 0.0
    %2766 = vmatprep.subr.mxu0 0.0
    %2767 = vmatpush2.msra.mxu0 0.0
    %2768 = vmatprep.subr.mxu0 0.0
    %2769 = vmatpush2.msra.mxu0 0.0
    %2770 = vmatprep.subr.mxu0 0.0
    %2771 = vmatpush2.msra.mxu0 0.0
    %2772 = vmatprep.subr.mxu0 0.0
    %2773 = vmatpush2.msra.mxu0 0.0
    %2774 = vmatprep.subr.mxu0 0.0
    %2775 = vmatpush2.msra.mxu0 0.0
    %2776 = vmatprep.subr.mxu0 0.0
    %2777 = vmatpush2.msra.mxu0 0.0
    %2778 = vmatprep.subr.mxu0 0.0
    %2779 = vmatpush2.msra.mxu0 0.0
    %2780 = vmatprep.subr.mxu0 0.0
    %2781 = vmatpush2.msra.mxu0 0.0
    %2782 = vmatprep.subr.mxu0 0.0
    %2783 = vmatpush2.msra.mxu0 0.0
    %2784 = vmatprep.subr.mxu0 0.0
    %2785 = vmatpush2.msra.mxu0 0.0
    %2786 = vmatprep.subr.mxu0 0.0
    %2787 = vmatpush2.msra.mxu0 0.0
    %2788 = vmatprep.subr.mxu0 0.0
    %2789 = vmatpush2.msra.mxu0 0.0
    %2790 = vmatprep.mubr.f32.mxu0 0.0
    %2791 = vmatmul.mubr.f32.gmra.mxu0 %v2724
    %v2792 = vpop.f32.mrf.mxu0
    %v2793 = vadd.f32 0.0, %v2792
    %v2794 = vpop.f32.mrf.mxu0
    %2795 = vdwg.mxu0
    %2796 = vrot.lane.b32.xlu0 %v1937, 64
    %v2797 = vpop.permute.xlu0 %2796
    %v2800 = vsel %vm148, %v2638, 0
    %2802 = vmatprep.subr.mxu0 0.0
    %2803 = vmatpush1.msra.mxu0 0.0
    %2804 = vmatprep.subr.mxu0 0.0
    %2805 = vmatpush1.msra.mxu0 0.0
    %2806 = vmatprep.subr.mxu0 0.0
    %2807 = vmatpush1.msra.mxu0 0.0
    %2808 = vmatprep.subr.mxu0 0.0
    %2809 = vmatpush1.msra.mxu0 0.0
    %2810 = vmatprep.subr.mxu0 0.0
    %2811 = vmatpush1.msra.mxu0 0.0
    %2812 = vmatprep.subr.mxu0 0.0
    %2813 = vmatpush1.msra.mxu0 0.0
    %2814 = vmatprep.subr.mxu0 0.0
    %2815 = vmatpush1.msra.mxu0 0.0
    %2816 = vmatprep.subr.mxu0 0.0
    %2817 = vmatpush1.msra.mxu0 0.0
    %2818 = vmatprep.subr.mxu0 0.0
    %2819 = vmatpush1.msra.mxu0 0.0
    %2820 = vmatprep.subr.mxu0 0.0
    %2821 = vmatpush1.msra.mxu0 0.0
    %2822 = vmatprep.subr.mxu0 0.0
    %2823 = vmatpush1.msra.mxu0 0.0
    %2824 = vmatprep.subr.mxu0 0.0
    %2825 = vmatpush1.msra.mxu0 0.0
    %2826 = vmatprep.subr.mxu0 0.0
    %2827 = vmatpush1.msra.mxu0 0.0
    %2828 = vmatprep.subr.mxu0 0.0
    %2829 = vmatpush1.msra.mxu0 0.0
    %2830 = vmatprep.subr.mxu0 0.0
    %2831 = vmatpush1.msra.mxu0 0.0
    %2832 = vmatprep.subr.mxu0 0.0
    %2833 = vmatpush1.msra.mxu0 %v2797
    %2834 = vmatprep.subr.mxu0 0.0
    %2835 = vmatpush2.msra.mxu0 0.0
    %2836 = vmatprep.subr.mxu0 0.0
    %2837 = vmatpush2.msra.mxu0 0.0
    %2838 = vmatprep.subr.mxu0 0.0
    %2839 = vmatpush2.msra.mxu0 0.0
    %2840 = vmatprep.subr.mxu0 0.0
    %2841 = vmatpush2.msra.mxu0 0.0
    %2842 = vmatprep.subr.mxu0 0.0
    %2843 = vmatpush2.msra.mxu0 0.0
    %2844 = vmatprep.subr.mxu0 0.0
    %2845 = vmatpush2.msra.mxu0 0.0
    %2846 = vmatprep.subr.mxu0 0.0
    %2847 = vmatpush2.msra.mxu0 0.0
    %2848 = vmatprep.subr.mxu0 0.0
    %2849 = vmatpush2.msra.mxu0 0.0
    %2850 = vmatprep.subr.mxu0 0.0
    %2851 = vmatpush2.msra.mxu0 0.0
    %2852 = vmatprep.subr.mxu0 0.0
    %2853 = vmatpush2.msra.mxu0 0.0
    %2854 = vmatprep.subr.mxu0 0.0
    %2855 = vmatpush2.msra.mxu0 0.0
    %2856 = vmatprep.subr.mxu0 0.0
    %2857 = vmatpush2.msra.mxu0 0.0
    %2858 = vmatprep.subr.mxu0 0.0
    %2859 = vmatpush2.msra.mxu0 0.0
    %2860 = vmatprep.subr.mxu0 0.0
    %2861 = vmatpush2.msra.mxu0 0.0
    %2862 = vmatprep.subr.mxu0 0.0
    %2863 = vmatpush2.msra.mxu0 0.0
    %2864 = vmatprep.subr.mxu0 0.0
    %2865 = vmatpush2.msra.mxu0 0.0
    %2866 = vmatprep.mubr.f32.mxu0 0.0
    %2867 = vmatmul.mubr.f32.gmra.mxu0 %v2800
    %v2868 = vpop.f32.mrf.mxu0
    %v2869 = vadd.f32 0.0, %v2868
    %v2870 = vpop.f32.mrf.mxu0
    %2871 = vdwg.mxu0
    %2872 = vrot.lane.b32.xlu0 %v1939, 64
    %v2873 = vpop.permute.xlu0 %2872
    %v2876 = vsel %vm148, %v2639, 0
    %2878 = vmatprep.subr.mxu0 0.0
    %2879 = vmatpush1.msra.mxu0 0.0
    %2880 = vmatprep.subr.mxu0 0.0
    %2881 = vmatpush1.msra.mxu0 0.0
    %2882 = vmatprep.subr.mxu0 0.0
    %2883 = vmatpush1.msra.mxu0 0.0
    %2884 = vmatprep.subr.mxu0 0.0
    %2885 = vmatpush1.msra.mxu0 0.0
    %2886 = vmatprep.subr.mxu0 0.0
    %2887 = vmatpush1.msra.mxu0 0.0
    %2888 = vmatprep.subr.mxu0 0.0
    %2889 = vmatpush1.msra.mxu0 0.0
    %2890 = vmatprep.subr.mxu0 0.0
    %2891 = vmatpush1.msra.mxu0 0.0
    %2892 = vmatprep.subr.mxu0 0.0
    %2893 = vmatpush1.msra.mxu0 0.0
    %2894 = vmatprep.subr.mxu0 0.0
    %2895 = vmatpush1.msra.mxu0 0.0
    %2896 = vmatprep.subr.mxu0 0.0
    %2897 = vmatpush1.msra.mxu0 0.0
    %2898 = vmatprep.subr.mxu0 0.0
    %2899 = vmatpush1.msra.mxu0 0.0
    %2900 = vmatprep.subr.mxu0 0.0
    %2901 = vmatpush1.msra.mxu0 0.0
    %2902 = vmatprep.subr.mxu0 0.0
    %2903 = vmatpush1.msra.mxu0 0.0
    %2904 = vmatprep.subr.mxu0 0.0
    %2905 = vmatpush1.msra.mxu0 0.0
    %2906 = vmatprep.subr.mxu0 0.0
    %2907 = vmatpush1.msra.mxu0 0.0
    %2908 = vmatprep.subr.mxu0 0.0
    %2909 = vmatpush1.msra.mxu0 %v2873
    %2910 = vmatprep.subr.mxu0 0.0
    %2911 = vmatpush2.msra.mxu0 0.0
    %2912 = vmatprep.subr.mxu0 0.0
    %2913 = vmatpush2.msra.mxu0 0.0
    %2914 = vmatprep.subr.mxu0 0.0
    %2915 = vmatpush2.msra.mxu0 0.0
    %2916 = vmatprep.subr.mxu0 0.0
    %2917 = vmatpush2.msra.mxu0 0.0
    %2918 = vmatprep.subr.mxu0 0.0
    %2919 = vmatpush2.msra.mxu0 0.0
    %2920 = vmatprep.subr.mxu0 0.0
    %2921 = vmatpush2.msra.mxu0 0.0
    %2922 = vmatprep.subr.mxu0 0.0
    %2923 = vmatpush2.msra.mxu0 0.0
    %2924 = vmatprep.subr.mxu0 0.0
    %2925 = vmatpush2.msra.mxu0 0.0
    %2926 = vmatprep.subr.mxu0 0.0
    %2927 = vmatpush2.msra.mxu0 0.0
    %2928 = vmatprep.subr.mxu0 0.0
    %2929 = vmatpush2.msra.mxu0 0.0
    %2930 = vmatprep.subr.mxu0 0.0
    %2931 = vmatpush2.msra.mxu0 0.0
    %2932 = vmatprep.subr.mxu0 0.0
    %2933 = vmatpush2.msra.mxu0 0.0
    %2934 = vmatprep.subr.mxu0 0.0
    %2935 = vmatpush2.msra.mxu0 0.0
    %2936 = vmatprep.subr.mxu0 0.0
    %2937 = vmatpush2.msra.mxu0 0.0
    %2938 = vmatprep.subr.mxu0 0.0
    %2939 = vmatpush2.msra.mxu0 0.0
    %2940 = vmatprep.subr.mxu0 0.0
    %2941 = vmatpush2.msra.mxu0 0.0
    %2942 = vmatprep.mubr.f32.mxu0 0.0
    %2943 = vmatmul.mubr.f32.gmra.mxu0 %v2876
    %v2944 = vpop.f32.mrf.mxu0
    %v2945 = vadd.f32 0.0, %v2944
    %v2946 = vpop.f32.mrf.mxu0
    %2947 = vdwg.mxu0
    %2948 = vrot.lane.b32.xlu0 %v1941, 64
    %v2949 = vpop.permute.xlu0 %2948
    %v2952 = vsel %vm148, %v2640, 0
    %2954 = vmatprep.subr.mxu0 0.0
    %2955 = vmatpush1.msra.mxu0 0.0
    %2956 = vmatprep.subr.mxu0 0.0
    %2957 = vmatpush1.msra.mxu0 0.0
    %2958 = vmatprep.subr.mxu0 0.0
    %2959 = vmatpush1.msra.mxu0 0.0
    %2960 = vmatprep.subr.mxu0 0.0
    %2961 = vmatpush1.msra.mxu0 0.0
    %2962 = vmatprep.subr.mxu0 0.0
    %2963 = vmatpush1.msra.mxu0 0.0
    %2964 = vmatprep.subr.mxu0 0.0
    %2965 = vmatpush1.msra.mxu0 0.0
    %2966 = vmatprep.subr.mxu0 0.0
    %2967 = vmatpush1.msra.mxu0 0.0
    %2968 = vmatprep.subr.mxu0 0.0
    %2969 = vmatpush1.msra.mxu0 0.0
    %2970 = vmatprep.subr.mxu0 0.0
    %2971 = vmatpush1.msra.mxu0 0.0
    %2972 = vmatprep.subr.mxu0 0.0
    %2973 = vmatpush1.msra.mxu0 0.0
    %2974 = vmatprep.subr.mxu0 0.0
    %2975 = vmatpush1.msra.mxu0 0.0
    %2976 = vmatprep.subr.mxu0 0.0
    %2977 = vmatpush1.msra.mxu0 0.0
    %2978 = vmatprep.subr.mxu0 0.0
    %2979 = vmatpush1.msra.mxu0 0.0
    %2980 = vmatprep.subr.mxu0 0.0
    %2981 = vmatpush1.msra.mxu0 0.0
    %2982 = vmatprep.subr.mxu0 0.0
    %2983 = vmatpush1.msra.mxu0 0.0
    %2984 = vmatprep.subr.mxu0 0.0
    %2985 = vmatpush1.msra.mxu0 %v2949
    %2986 = vmatprep.subr.mxu0 0.0
    %2987 = vmatpush2.msra.mxu0 0.0
    %2988 = vmatprep.subr.mxu0 0.0
    %2989 = vmatpush2.msra.mxu0 0.0
    %2990 = vmatprep.subr.mxu0 0.0
    %2991 = vmatpush2.msra.mxu0 0.0
    %2992 = vmatprep.subr.mxu0 0.0
    %2993 = vmatpush2.msra.mxu0 0.0
    %2994 = vmatprep.subr.mxu0 0.0
    %2995 = vmatpush2.msra.mxu0 0.0
    %2996 = vmatprep.subr.mxu0 0.0
    %2997 = vmatpush2.msra.mxu0 0.0
    %2998 = vmatprep.subr.mxu0 0.0
    %2999 = vmatpush2.msra.mxu0 0.0
    %3000 = vmatprep.subr.mxu0 0.0
    %3001 = vmatpush2.msra.mxu0 0.0
    %3002 = vmatprep.subr.mxu0 0.0
    %3003 = vmatpush2.msra.mxu0 0.0
    %3004 = vmatprep.subr.mxu0 0.0
    %3005 = vmatpush2.msra.mxu0 0.0
    %3006 = vmatprep.subr.mxu0 0.0
    %3007 = vmatpush2.msra.mxu0 0.0
    %3008 = vmatprep.subr.mxu0 0.0
    %3009 = vmatpush2.msra.mxu0 0.0
    %3010 = vmatprep.subr.mxu0 0.0
    %3011 = vmatpush2.msra.mxu0 0.0
    %3012 = vmatprep.subr.mxu0 0.0
    %3013 = vmatpush2.msra.mxu0 0.0
    %3014 = vmatprep.subr.mxu0 0.0
    %3015 = vmatpush2.msra.mxu0 0.0
    %3016 = vmatprep.subr.mxu0 0.0
    %3017 = vmatpush2.msra.mxu0 0.0
    %3018 = vmatprep.mubr.f32.mxu0 0.0
    %3019 = vmatmul.mubr.f32.gmra.mxu0 %v2952
    %v3020 = vpop.f32.mrf.mxu0
    %v3021 = vadd.f32 0.0, %v3020
    %v3022 = vpop.f32.mrf.mxu0
    %3023 = vdwg.mxu0
    %3024 = vrot.lane.b32.xlu0 %v1943, 64
    %v3025 = vpop.permute.xlu0 %3024
    %v3028 = vsel %vm148, %v2641, 0
    %3030 = vmatprep.subr.mxu0 0.0
    %3031 = vmatpush1.msra.mxu0 0.0
    %3032 = vmatprep.subr.mxu0 0.0
    %3033 = vmatpush1.msra.mxu0 0.0
    %3034 = vmatprep.subr.mxu0 0.0
    %3035 = vmatpush1.msra.mxu0 0.0
    %3036 = vmatprep.subr.mxu0 0.0
    %3037 = vmatpush1.msra.mxu0 0.0
    %3038 = vmatprep.subr.mxu0 0.0
    %3039 = vmatpush1.msra.mxu0 0.0
    %3040 = vmatprep.subr.mxu0 0.0
    %3041 = vmatpush1.msra.mxu0 0.0
    %3042 = vmatprep.subr.mxu0 0.0
    %3043 = vmatpush1.msra.mxu0 0.0
    %3044 = vmatprep.subr.mxu0 0.0
    %3045 = vmatpush1.msra.mxu0 0.0
    %3046 = vmatprep.subr.mxu0 0.0
    %3047 = vmatpush1.msra.mxu0 0.0
    %3048 = vmatprep.subr.mxu0 0.0
    %3049 = vmatpush1.msra.mxu0 0.0
    %3050 = vmatprep.subr.mxu0 0.0
    %3051 = vmatpush1.msra.mxu0 0.0
    %3052 = vmatprep.subr.mxu0 0.0
    %3053 = vmatpush1.msra.mxu0 0.0
    %3054 = vmatprep.subr.mxu0 0.0
    %3055 = vmatpush1.msra.mxu0 0.0
    %3056 = vmatprep.subr.mxu0 0.0
    %3057 = vmatpush1.msra.mxu0 0.0
    %3058 = vmatprep.subr.mxu0 0.0
    %3059 = vmatpush1.msra.mxu0 0.0
    %3060 = vmatprep.subr.mxu0 0.0
    %3061 = vmatpush1.msra.mxu0 %v3025
    %3062 = vmatprep.subr.mxu0 0.0
    %3063 = vmatpush2.msra.mxu0 0.0
    %3064 = vmatprep.subr.mxu0 0.0
    %3065 = vmatpush2.msra.mxu0 0.0
    %3066 = vmatprep.subr.mxu0 0.0
    %3067 = vmatpush2.msra.mxu0 0.0
    %3068 = vmatprep.subr.mxu0 0.0
    %3069 = vmatpush2.msra.mxu0 0.0
    %3070 = vmatprep.subr.mxu0 0.0
    %3071 = vmatpush2.msra.mxu0 0.0
    %3072 = vmatprep.subr.mxu0 0.0
    %3073 = vmatpush2.msra.mxu0 0.0
    %3074 = vmatprep.subr.mxu0 0.0
    %3075 = vmatpush2.msra.mxu0 0.0
    %3076 = vmatprep.subr.mxu0 0.0
    %3077 = vmatpush2.msra.mxu0 0.0
    %3078 = vmatprep.subr.mxu0 0.0
    %3079 = vmatpush2.msra.mxu0 0.0
    %3080 = vmatprep.subr.mxu0 0.0
    %3081 = vmatpush2.msra.mxu0 0.0
    %3082 = vmatprep.subr.mxu0 0.0
    %3083 = vmatpush2.msra.mxu0 0.0
    %3084 = vmatprep.subr.mxu0 0.0
    %3085 = vmatpush2.msra.mxu0 0.0
    %3086 = vmatprep.subr.mxu0 0.0
    %3087 = vmatpush2.msra.mxu0 0.0
    %3088 = vmatprep.subr.mxu0 0.0
    %3089 = vmatpush2.msra.mxu0 0.0
    %3090 = vmatprep.subr.mxu0 0.0
    %3091 = vmatpush2.msra.mxu0 0.0
    %3092 = vmatprep.subr.mxu0 0.0
    %3093 = vmatpush2.msra.mxu0 0.0
    %3094 = vmatprep.mubr.f32.mxu0 0.0
    %3095 = vmatmul.mubr.f32.gmra.mxu0 %v3028
    %v3096 = vpop.f32.mrf.mxu0
    %v3097 = vadd.f32 0.0, %v3096
    %v3098 = vpop.f32.mrf.mxu0
    %3099 = vdwg.mxu0
    %3100 = vrot.lane.b32.xlu0 %v1945, 64
    %v3101 = vpop.permute.xlu0 %3100
    %v3104 = vsel %vm148, %v2642, 0
    %3106 = vmatprep.subr.mxu0 0.0
    %3107 = vmatpush1.msra.mxu0 0.0
    %3108 = vmatprep.subr.mxu0 0.0
    %3109 = vmatpush1.msra.mxu0 0.0
    %3110 = vmatprep.subr.mxu0 0.0
    %3111 = vmatpush1.msra.mxu0 0.0
    %3112 = vmatprep.subr.mxu0 0.0
    %3113 = vmatpush1.msra.mxu0 0.0
    %3114 = vmatprep.subr.mxu0 0.0
    %3115 = vmatpush1.msra.mxu0 0.0
    %3116 = vmatprep.subr.mxu0 0.0
    %3117 = vmatpush1.msra.mxu0 0.0
    %3118 = vmatprep.subr.mxu0 0.0
    %3119 = vmatpush1.msra.mxu0 0.0
    %3120 = vmatprep.subr.mxu0 0.0
    %3121 = vmatpush1.msra.mxu0 0.0
    %3122 = vmatprep.subr.mxu0 0.0
    %3123 = vmatpush1.msra.mxu0 0.0
    %3124 = vmatprep.subr.mxu0 0.0
    %3125 = vmatpush1.msra.mxu0 0.0
    %3126 = vmatprep.subr.mxu0 0.0
    %3127 = vmatpush1.msra.mxu0 0.0
    %3128 = vmatprep.subr.mxu0 0.0
    %3129 = vmatpush1.msra.mxu0 0.0
    %3130 = vmatprep.subr.mxu0 0.0
    %3131 = vmatpush1.msra.mxu0 0.0
    %3132 = vmatprep.subr.mxu0 0.0
    %3133 = vmatpush1.msra.mxu0 0.0
    %3134 = vmatprep.subr.mxu0 0.0
    %3135 = vmatpush1.msra.mxu0 0.0
    %3136 = vmatprep.subr.mxu0 0.0
    %3137 = vmatpush1.msra.mxu0 %v3101
    %3138 = vmatprep.subr.mxu0 0.0
    %3139 = vmatpush2.msra.mxu0 0.0
    %3140 = vmatprep.subr.mxu0 0.0
    %3141 = vmatpush2.msra.mxu0 0.0
    %3142 = vmatprep.subr.mxu0 0.0
    %3143 = vmatpush2.msra.mxu0 0.0
    %3144 = vmatprep.subr.mxu0 0.0
    %3145 = vmatpush2.msra.mxu0 0.0
    %3146 = vmatprep.subr.mxu0 0.0
    %3147 = vmatpush2.msra.mxu0 0.0
    %3148 = vmatprep.subr.mxu0 0.0
    %3149 = vmatpush2.msra.mxu0 0.0
    %3150 = vmatprep.subr.mxu0 0.0
    %3151 = vmatpush2.msra.mxu0 0.0
    %3152 = vmatprep.subr.mxu0 0.0
    %3153 = vmatpush2.msra.mxu0 0.0
    %3154 = vmatprep.subr.mxu0 0.0
    %3155 = vmatpush2.msra.mxu0 0.0
    %3156 = vmatprep.subr.mxu0 0.0
    %3157 = vmatpush2.msra.mxu0 0.0
    %3158 = vmatprep.subr.mxu0 0.0
    %3159 = vmatpush2.msra.mxu0 0.0
    %3160 = vmatprep.subr.mxu0 0.0
    %3161 = vmatpush2.msra.mxu0 0.0
    %3162 = vmatprep.subr.mxu0 0.0
    %3163 = vmatpush2.msra.mxu0 0.0
    %3164 = vmatprep.subr.mxu0 0.0
    %3165 = vmatpush2.msra.mxu0 0.0
    %3166 = vmatprep.subr.mxu0 0.0
    %3167 = vmatpush2.msra.mxu0 0.0
    %3168 = vmatprep.subr.mxu0 0.0
    %3169 = vmatpush2.msra.mxu0 0.0
    %3170 = vmatprep.mubr.f32.mxu0 0.0
    %3171 = vmatmul.mubr.f32.gmra.mxu0 %v3104
    %v3172 = vpop.f32.mrf.mxu0
    %v3173 = vadd.f32 0.0, %v3172
    %v3174 = vpop.f32.mrf.mxu0
    %3175 = vdwg.mxu0
    %3176 = vrot.lane.b32.xlu0 %v1947, 64
    %v3177 = vpop.permute.xlu0 %3176
    %v3180 = vsel %vm148, %v2643, 0
    %3182 = vmatprep.subr.mxu0 0.0
    %3183 = vmatpush1.msra.mxu0 0.0
    %3184 = vmatprep.subr.mxu0 0.0
    %3185 = vmatpush1.msra.mxu0 0.0
    %3186 = vmatprep.subr.mxu0 0.0
    %3187 = vmatpush1.msra.mxu0 0.0
    %3188 = vmatprep.subr.mxu0 0.0
    %3189 = vmatpush1.msra.mxu0 0.0
    %3190 = vmatprep.subr.mxu0 0.0
    %3191 = vmatpush1.msra.mxu0 0.0
    %3192 = vmatprep.subr.mxu0 0.0
    %3193 = vmatpush1.msra.mxu0 0.0
    %3194 = vmatprep.subr.mxu0 0.0
    %3195 = vmatpush1.msra.mxu0 0.0
    %3196 = vmatprep.subr.mxu0 0.0
    %3197 = vmatpush1.msra.mxu0 0.0
    %3198 = vmatprep.subr.mxu0 0.0
    %3199 = vmatpush1.msra.mxu0 0.0
    %3200 = vmatprep.subr.mxu0 0.0
    %3201 = vmatpush1.msra.mxu0 0.0
    %3202 = vmatprep.subr.mxu0 0.0
    %3203 = vmatpush1.msra.mxu0 0.0
    %3204 = vmatprep.subr.mxu0 0.0
    %3205 = vmatpush1.msra.mxu0 0.0
    %3206 = vmatprep.subr.mxu0 0.0
    %3207 = vmatpush1.msra.mxu0 0.0
    %3208 = vmatprep.subr.mxu0 0.0
    %3209 = vmatpush1.msra.mxu0 0.0
    %3210 = vmatprep.subr.mxu0 0.0
    %3211 = vmatpush1.msra.mxu0 0.0
    %3212 = vmatprep.subr.mxu0 0.0
    %3213 = vmatpush1.msra.mxu0 %v3177
    %3214 = vmatprep.subr.mxu0 0.0
    %3215 = vmatpush2.msra.mxu0 0.0
    %3216 = vmatprep.subr.mxu0 0.0
    %3217 = vmatpush2.msra.mxu0 0.0
    %3218 = vmatprep.subr.mxu0 0.0
    %3219 = vmatpush2.msra.mxu0 0.0
    %3220 = vmatprep.subr.mxu0 0.0
    %3221 = vmatpush2.msra.mxu0 0.0
    %3222 = vmatprep.subr.mxu0 0.0
    %3223 = vmatpush2.msra.mxu0 0.0
    %3224 = vmatprep.subr.mxu0 0.0
    %3225 = vmatpush2.msra.mxu0 0.0
    %3226 = vmatprep.subr.mxu0 0.0
    %3227 = vmatpush2.msra.mxu0 0.0
    %3228 = vmatprep.subr.mxu0 0.0
    %3229 = vmatpush2.msra.mxu0 0.0
    %3230 = vmatprep.subr.mxu0 0.0
    %3231 = vmatpush2.msra.mxu0 0.0
    %3232 = vmatprep.subr.mxu0 0.0
    %3233 = vmatpush2.msra.mxu0 0.0
    %3234 = vmatprep.subr.mxu0 0.0
    %3235 = vmatpush2.msra.mxu0 0.0
    %3236 = vmatprep.subr.mxu0 0.0
    %3237 = vmatpush2.msra.mxu0 0.0
    %3238 = vmatprep.subr.mxu0 0.0
    %3239 = vmatpush2.msra.mxu0 0.0
    %3240 = vmatprep.subr.mxu0 0.0
    %3241 = vmatpush2.msra.mxu0 0.0
    %3242 = vmatprep.subr.mxu0 0.0
    %3243 = vmatpush2.msra.mxu0 0.0
    %3244 = vmatprep.subr.mxu0 0.0
    %3245 = vmatpush2.msra.mxu0 0.0
    %3246 = vmatprep.mubr.f32.mxu0 0.0
    %3247 = vmatmul.mubr.f32.gmra.mxu0 %v3180
    %v3248 = vpop.f32.mrf.mxu0
    %v3249 = vadd.f32 0.0, %v3248
    %v3250 = vpop.f32.mrf.mxu0
    %3251 = vdwg.mxu0
    %3254 = vrot.lane.b32.xlu0 %v2869, 8
    %v3255 = vpop.permute.xlu0 %3254
    %3256 = vrot.lane.b32.xlu0 %v2945, 8
    %v3257 = vpop.permute.xlu0 %3256
    %3262 = vrot.lane.b32.xlu0 %v3021, 16
    %v3263 = vpop.permute.xlu0 %3262
    %3264 = vrot.lane.b32.xlu0 %v3097, 16
    %v3265 = vpop.permute.xlu0 %3264
    %3270 = vrot.lane.b32.xlu0 %v3173, 24
    %v3271 = vpop.permute.xlu0 %3270
    %3272 = vrot.lane.b32.xlu0 %v3249, 24
    %v3273 = vpop.permute.xlu0 %3272
    %v3276 = vsel %vm148, %v2717, %v3255
    %v3277 = vsel %vm148, %v2793, %v3257
    %v3278 = vsel %vm1477, %v3276, %v3263
    %v3279 = vsel %vm1477, %v3277, %v3265
    %v3280 = vsel %vm1480, %v3278, %v3271
    %v3281 = vsel %vm1480, %v3279, %v3273
    %v3282 = vlaneseq
    %v3283 = vshrl.u32 %v3282, 7
    %v3284 = vsub.s32 0, %v3283
    %v3285 = vrot.slane %v1848, %v3284
    %v3287 = vsel %vm50, %v3280, 0
    %v3290 = vsel %vm50, %v3281, 0
    %3292 = vmatprep.subr.mxu0 0.0
    %3293 = vmatpush1.msra.mxu0 0.0
    %3294 = vmatprep.subr.mxu0 0.0
    %3295 = vmatpush1.msra.mxu0 0.0
    %3296 = vmatprep.subr.mxu0 0.0
    %3297 = vmatpush1.msra.mxu0 0.0
    %3298 = vmatprep.subr.mxu0 0.0
    %3299 = vmatpush1.msra.mxu0 0.0
    %3300 = vmatprep.subr.mxu0 0.0
    %3301 = vmatpush1.msra.mxu0 0.0
    %3302 = vmatprep.subr.mxu0 0.0
    %3303 = vmatpush1.msra.mxu0 0.0
    %3304 = vmatprep.subr.mxu0 0.0
    %3305 = vmatpush1.msra.mxu0 0.0
    %3306 = vmatprep.subr.mxu0 0.0
    %3307 = vmatpush1.msra.mxu0 0.0
    %3308 = vmatprep.subr.mxu0 0.0
    %3309 = vmatpush1.msra.mxu0 0.0
    %3310 = vmatprep.subr.mxu0 0.0
    %3311 = vmatpush1.msra.mxu0 0.0
    %3312 = vmatprep.subr.mxu0 0.0
    %3313 = vmatpush1.msra.mxu0 0.0
    %3314 = vmatprep.subr.mxu0 0.0
    %3315 = vmatpush1.msra.mxu0 0.0
    %3316 = vmatprep.subr.mxu0 0.0
    %3317 = vmatpush1.msra.mxu0 %v1838
    %3318 = vmatprep.subr.mxu0 0.0
    %3319 = vmatpush1.msra.mxu0 %v1837
    %3320 = vmatprep.subr.mxu0 0.0
    %3321 = vmatpush1.msra.mxu0 %v1836
    %3322 = vmatprep.subr.mxu0 0.0
    %3323 = vmatpush1.msra.mxu0 %v1835
    %3324 = vmatprep.subr.mxu0 0.0
    %3325 = vmatpush2.msra.mxu0 0.0
    %3326 = vmatprep.subr.mxu0 0.0
    %3327 = vmatpush2.msra.mxu0 0.0
    %3328 = vmatprep.subr.mxu0 0.0
    %3329 = vmatpush2.msra.mxu0 0.0
    %3330 = vmatprep.subr.mxu0 0.0
    %3331 = vmatpush2.msra.mxu0 0.0
    %3332 = vmatprep.subr.mxu0 0.0
    %3333 = vmatpush2.msra.mxu0 0.0
    %3334 = vmatprep.subr.mxu0 0.0
    %3335 = vmatpush2.msra.mxu0 0.0
    %3336 = vmatprep.subr.mxu0 0.0
    %3337 = vmatpush2.msra.mxu0 0.0
    %3338 = vmatprep.subr.mxu0 0.0
    %3339 = vmatpush2.msra.mxu0 0.0
    %3340 = vmatprep.subr.mxu0 0.0
    %3341 = vmatpush2.msra.mxu0 0.0
    %3342 = vmatprep.subr.mxu0 0.0
    %3343 = vmatpush2.msra.mxu0 0.0
    %3344 = vmatprep.subr.mxu0 0.0
    %3345 = vmatpush2.msra.mxu0 0.0
    %3346 = vmatprep.subr.mxu0 0.0
    %3347 = vmatpush2.msra.mxu0 0.0
    %3348 = vmatprep.subr.mxu0 0.0
    %3349 = vmatpush2.msra.mxu0 0.0
    %3350 = vmatprep.subr.mxu0 0.0
    %3351 = vmatpush2.msra.mxu0 0.0
    %3352 = vmatprep.subr.mxu0 0.0
    %3353 = vmatpush2.msra.mxu0 0.0
    %3354 = vmatprep.subr.mxu0 0.0
    %3355 = vmatpush2.msra.mxu0 0.0
    %3356 = vmatprep.mubr.f32.mxu0 0.0
    %3357 = vmatmul.mubr.f32.gmra.mxu0 %v3287
    %v3358 = vpop.f32.mrf.mxu0
    %v3359 = vadd.f32 %v3285, %v3358
    %v3360 = vpop.f32.mrf.mxu0
    %3361 = vmatprep.mubr.f32.mxu0 0.0
    %3362 = vmatmul.mubr.f32.gmra.mxu0 %v3290
    %v3363 = vpop.f32.mrf.mxu0
    %v3364 = vadd.f32 %v3285, %v3363
    %v3365 = vpop.f32.mrf.mxu0
    %3366 = vdwg.mxu0
    %v3367 = vadd.f32 %v1820, %v3359
    %v3368 = vadd.f32 %v1821, %v3364
    %v3369 = vsel %vm50, %v3367, 0.0
    %3370 = vadd.xlane.f32.xlu0 %v3369
    %v3371 = vpop.xlane.xlu0 %3370
    %v3372 = vsel %vm50, %v3368, 0.0
    %3373 = vadd.xlane.f32.xlu0 %v3372
    %v3374 = vpop.xlane.xlu0 %3373
    %v3375 = vmul.f32 %v3371, %v1576
    %v3376 = vmul.f32 %v3374, %v1576
    %v3377 = vsub.f32 %v3367, %v3375
    %v3378 = vsub.f32 %v3368, %v3376
    %v3379 = vmul.f32 %v3377, %v3377
    %v3380 = vmul.f32 %v3378, %v3378
    %v3381 = vsel %vm50, %v3379, 0.0
    %3382 = vadd.xlane.f32.xlu0 %v3381
    %v3383 = vpop.xlane.xlu0 %3382
    %v3384 = vsel %vm50, %v3380, 0.0
    %3385 = vadd.xlane.f32.xlu0 %v3384
    %v3386 = vpop.xlane.xlu0 %3385
    %v3387 = vmul.f32 %v3383, %v1576
    %v3388 = vmul.f32 %v3386, %v1576
    %v3389 = vadd.f32 %v3387, 1e-05
    %v3390 = vadd.f32 %v3388, 1e-05
    %v3391 = vrsqrt.pop %v3389
    %v3392 = vrsqrt.pop %v3390
    %v3393 = vmul.f32 %v3377, %v3391
    %v3394 = vmul.f32 %v3378, %v3392
    %v3395 = vlaneseq
    %v3396 = vshrl.u32 %v3395, 7
    %v3397 = vsub.s32 1, %v3396
    %v3398 = vrot.slane %v1848, %v3397
    %v3399 = vmul.f32 %v3393, %v3398
    %v3400 = vmul.f32 %v3394, %v3398
    %v3401 = vlaneseq
    %v3402 = vshrl.u32 %v3401, 7
    %v3403 = vsub.s32 2, %v3402
    %v3404 = vrot.slane %v1848, %v3403
    %v3405 = vadd.f32 %v3399, %v3404
    %v3406 = vadd.f32 %v3400, %v3404
    %v3407 = vlaneseq
    %v3408 = vshrl.u32 %v3407, 7
    %v3409 = vsub.s32 0, %v3408
    %v3410 = vrot.slane %v1833, %v3409
    %v3412 = vsel %vm50, %v3405, 0
    %v3415 = vsel %vm50, %v3406, 0
    %3417 = vmatprep.subr.mxu0 0.0
    %3418 = vmatpush1.msra.mxu0 0.0
    %3419 = vmatprep.subr.mxu0 0.0
    %3420 = vmatpush1.msra.mxu0 0.0
    %3421 = vmatprep.subr.mxu0 0.0
    %3422 = vmatpush1.msra.mxu0 0.0
    %3423 = vmatprep.subr.mxu0 0.0
    %3424 = vmatpush1.msra.mxu0 0.0
    %3425 = vmatprep.subr.mxu0 0.0
    %3426 = vmatpush1.msra.mxu0 0.0
    %3427 = vmatprep.subr.mxu0 0.0
    %3428 = vmatpush1.msra.mxu0 0.0
    %3429 = vmatprep.subr.mxu0 0.0
    %3430 = vmatpush1.msra.mxu0 0.0
    %3431 = vmatprep.subr.mxu0 0.0
    %3432 = vmatpush1.msra.mxu0 0.0
    %3433 = vmatprep.subr.mxu0 0.0
    %3434 = vmatpush1.msra.mxu0 0.0
    %3435 = vmatprep.subr.mxu0 0.0
    %3436 = vmatpush1.msra.mxu0 0.0
    %3437 = vmatprep.subr.mxu0 0.0
    %3438 = vmatpush1.msra.mxu0 0.0
    %3439 = vmatprep.subr.mxu0 0.0
    %3440 = vmatpush1.msra.mxu0 0.0
    %3441 = vmatprep.subr.mxu0 0.0
    %3442 = vmatpush1.msra.mxu0 %v1832
    %3443 = vmatprep.subr.mxu0 0.0
    %3444 = vmatpush1.msra.mxu0 %v1831
    %3445 = vmatprep.subr.mxu0 0.0
    %3446 = vmatpush1.msra.mxu0 %v1830
    %3447 = vmatprep.subr.mxu0 0.0
    %3448 = vmatpush1.msra.mxu0 %v1829
    %3449 = vmatprep.subr.mxu0 0.0
    %3450 = vmatpush2.msra.mxu0 0.0
    %3451 = vmatprep.subr.mxu0 0.0
    %3452 = vmatpush2.msra.mxu0 0.0
    %3453 = vmatprep.subr.mxu0 0.0
    %3454 = vmatpush2.msra.mxu0 0.0
    %3455 = vmatprep.subr.mxu0 0.0
    %3456 = vmatpush2.msra.mxu0 0.0
    %3457 = vmatprep.subr.mxu0 0.0
    %3458 = vmatpush2.msra.mxu0 0.0
    %3459 = vmatprep.subr.mxu0 0.0
    %3460 = vmatpush2.msra.mxu0 0.0
    %3461 = vmatprep.subr.mxu0 0.0
    %3462 = vmatpush2.msra.mxu0 0.0
    %3463 = vmatprep.subr.mxu0 0.0
    %3464 = vmatpush2.msra.mxu0 0.0
    %3465 = vmatprep.subr.mxu0 0.0
    %3466 = vmatpush2.msra.mxu0 0.0
    %3467 = vmatprep.subr.mxu0 0.0
    %3468 = vmatpush2.msra.mxu0 0.0
    %3469 = vmatprep.subr.mxu0 0.0
    %3470 = vmatpush2.msra.mxu0 0.0
    %3471 = vmatprep.subr.mxu0 0.0
    %3472 = vmatpush2.msra.mxu0 0.0
    %3473 = vmatprep.subr.mxu0 0.0
    %3474 = vmatpush2.msra.mxu0 0.0
    %3475 = vmatprep.subr.mxu0 0.0
    %3476 = vmatpush2.msra.mxu0 0.0
    %3477 = vmatprep.subr.mxu0 0.0
    %3478 = vmatpush2.msra.mxu0 0.0
    %3479 = vmatprep.subr.mxu0 0.0
    %3480 = vmatpush2.msra.mxu0 0.0
    %3481 = vmatprep.mubr.f32.mxu0 0.0
    %3482 = vmatmul.mubr.f32.gmra.mxu0 %v3412
    %v3483 = vpop.f32.mrf.mxu0
    %v3484 = vadd.f32 %v3410, %v3483
    %v3485 = vpop.f32.mrf.mxu0
    %3486 = vmatprep.mubr.f32.mxu0 0.0
    %3487 = vmatmul.mubr.f32.gmra.mxu0 %v3415
    %v3488 = vpop.f32.mrf.mxu0
    %v3489 = vadd.f32 %v3410, %v3488
    %v3490 = vpop.f32.mrf.mxu0
    %3491 = vdwg.mxu0
    %v3492 = vmax.f32 %v3484, 0.0
    %v3493 = vmax.f32 %v3489, 0.0
    %v3494 = vlaneseq
    %v3495 = vshrl.u32 %v3494, 7
    %v3496 = vsub.s32 3, %v3495
    %v3497 = vrot.slane %v1848, %v3496
    %v3499 = vsel %vm1700, %v3492, 0
    %v3502 = vsel %vm1700, %v3493, 0
    %3504 = vmatprep.subr.mxu0 0.0
    %3505 = vmatpush1.msra.mxu0 0.0
    %3506 = vmatprep.subr.mxu0 0.0
    %3507 = vmatpush1.msra.mxu0 0.0
    %3508 = vmatprep.subr.mxu0 0.0
    %3509 = vmatpush1.msra.mxu0 0.0
    %3510 = vmatprep.subr.mxu0 0.0
    %3511 = vmatpush1.msra.mxu0 0.0
    %3512 = vmatprep.subr.mxu0 0.0
    %3513 = vmatpush1.msra.mxu0 0.0
    %3514 = vmatprep.subr.mxu0 0.0
    %3515 = vmatpush1.msra.mxu0 0.0
    %3516 = vmatprep.subr.mxu0 0.0
    %3517 = vmatpush1.msra.mxu0 0.0
    %3518 = vmatprep.subr.mxu0 0.0
    %3519 = vmatpush1.msra.mxu0 0.0
    %3520 = vmatprep.subr.mxu0 0.0
    %3521 = vmatpush1.msra.mxu0 %v1846
    %3522 = vmatprep.subr.mxu0 0.0
    %3523 = vmatpush1.msra.mxu0 %v1845
    %3524 = vmatprep.subr.mxu0 0.0
    %3525 = vmatpush1.msra.mxu0 %v1844
    %3526 = vmatprep.subr.mxu0 0.0
    %3527 = vmatpush1.msra.mxu0 %v1843
    %3528 = vmatprep.subr.mxu0 0.0
    %3529 = vmatpush1.msra.mxu0 %v1842
    %3530 = vmatprep.subr.mxu0 0.0
    %3531 = vmatpush1.msra.mxu0 %v1841
    %3532 = vmatprep.subr.mxu0 0.0
    %3533 = vmatpush1.msra.mxu0 %v1840
    %3534 = vmatprep.subr.mxu0 0.0
    %3535 = vmatpush1.msra.mxu0 %v1839
    %3536 = vmatprep.subr.mxu0 0.0
    %3537 = vmatpush2.msra.mxu0 0.0
    %3538 = vmatprep.subr.mxu0 0.0
    %3539 = vmatpush2.msra.mxu0 0.0
    %3540 = vmatprep.subr.mxu0 0.0
    %3541 = vmatpush2.msra.mxu0 0.0
    %3542 = vmatprep.subr.mxu0 0.0
    %3543 = vmatpush2.msra.mxu0 0.0
    %3544 = vmatprep.subr.mxu0 0.0
    %3545 = vmatpush2.msra.mxu0 0.0
    %3546 = vmatprep.subr.mxu0 0.0
    %3547 = vmatpush2.msra.mxu0 0.0
    %3548 = vmatprep.subr.mxu0 0.0
    %3549 = vmatpush2.msra.mxu0 0.0
    %3550 = vmatprep.subr.mxu0 0.0
    %3551 = vmatpush2.msra.mxu0 0.0
    %3552 = vmatprep.subr.mxu0 0.0
    %3553 = vmatpush2.msra.mxu0 0.0
    %3554 = vmatprep.subr.mxu0 0.0
    %3555 = vmatpush2.msra.mxu0 0.0
    %3556 = vmatprep.subr.mxu0 0.0
    %3557 = vmatpush2.msra.mxu0 0.0
    %3558 = vmatprep.subr.mxu0 0.0
    %3559 = vmatpush2.msra.mxu0 0.0
    %3560 = vmatprep.subr.mxu0 0.0
    %3561 = vmatpush2.msra.mxu0 0.0
    %3562 = vmatprep.subr.mxu0 0.0
    %3563 = vmatpush2.msra.mxu0 0.0
    %3564 = vmatprep.subr.mxu0 0.0
    %3565 = vmatpush2.msra.mxu0 0.0
    %3566 = vmatprep.subr.mxu0 0.0
    %3567 = vmatpush2.msra.mxu0 0.0
    %3568 = vmatprep.mubr.f32.mxu0 0.0
    %3569 = vmatmul.mubr.f32.gmra.mxu0 %v3499
    %v3570 = vpop.f32.mrf.mxu0
    %v3571 = vadd.f32 %v3497, %v3570
    %v3572 = vpop.f32.mrf.mxu0
    %3573 = vmatprep.mubr.f32.mxu0 0.0
    %3574 = vmatmul.mubr.f32.gmra.mxu0 %v3502
    %v3575 = vpop.f32.mrf.mxu0
    %v3576 = vadd.f32 %v3497, %v3575
    %v3577 = vpop.f32.mrf.mxu0
    %3578 = vdwg.mxu0
    %v3579 = vadd.f32 %v3405, %v3571
    %v3580 = vadd.f32 %v3406, %v3576
    %v3581 = vsel %vm50, %v3579, 0.0
    %3582 = vadd.xlane.f32.xlu0 %v3581
    %v3583 = vpop.xlane.xlu0 %3582
    %v3584 = vsel %vm50, %v3580, 0.0
    %3585 = vadd.xlane.f32.xlu0 %v3584
    %v3586 = vpop.xlane.xlu0 %3585
    %v3587 = vmul.f32 %v3583, %v1576
    %v3588 = vmul.f32 %v3586, %v1576
    %v3589 = vsub.f32 %v3579, %v3587
    %v3590 = vsub.f32 %v3580, %v3588
    %v3591 = vmul.f32 %v3589, %v3589
    %v3592 = vmul.f32 %v3590, %v3590
    %v3593 = vsel %vm50, %v3591, 0.0
    %3594 = vadd.xlane.f32.xlu0 %v3593
    %v3595 = vpop.xlane.xlu0 %3594
    %v3596 = vsel %vm50, %v3592, 0.0
    %3597 = vadd.xlane.f32.xlu0 %v3596
    %v3598 = vpop.xlane.xlu0 %3597
    %v3599 = vmul.f32 %v3595, %v1576
    %v3600 = vmul.f32 %v3598, %v1576
    %v3601 = vadd.f32 %v3599, 1e-05
    %v3602 = vadd.f32 %v3600, 1e-05
    %v3603 = vrsqrt.pop %v3601
    %v3604 = vrsqrt.pop %v3602
    %v3605 = vmul.f32 %v3589, %v3603
    %v3606 = vmul.f32 %v3590, %v3604
    %v3607 = vlaneseq
    %v3608 = vshrl.u32 %v3607, 7
    %v3609 = vsub.s32 4, %v3608
    %v3610 = vrot.slane %v1848, %v3609
    %v3611 = vmul.f32 %v3605, %v3610
    %v3612 = vmul.f32 %v3606, %v3610
    %v3613 = vlaneseq
    %v3614 = vshrl.u32 %v3613, 7
    %v3615 = vsub.s32 5, %v3614
    %v3616 = vrot.slane %v1848, %v3615
    %v3617 = vadd.f32 %v3611, %v3616
    %v3618 = vadd.f32 %v3612, %v3616
    %3619 = vst.msk [vmem:[#allocation2] sm:$0xff] %vm50, %v3617
    %3620 = vst.msk [vmem:[#allocation2 + $0x8] sm:$0xff] %vm50, %v3618
    // Predicated region
    $region22: #{encoder_forward.1} parent=1 // pred_check
      _
    $region23: #{encoder_forward.1} parent=1 // pred_check_branch
      %3622 = sbr.rel (0) target = $region25
    $region24: #{encoder_forward.1} parent=1 // pred_region
      %s3624 = ssub.s32 256, 256
      %3625 = vsyncadd [#allocation3], %s3624
      %s3626 = sshll.u32 [#allocation2], 4
      %s3627 = int_to_ptr.vmem [resolvable:$true] %s3626
      %3632 = dma.vmem_to_hbm [thread:$0]  %s3627, 256, %s5, [#allocation3], 128, 128, 8
    $region25: #{encoder_forward.1} parent=1 // pred_fallthru
      _
    // Predicated region
    $region26: #{encoder_forward.1} parent=1 // pred_check
      _
    $region27: #{encoder_forward.1} parent=1 // pred_check_branch
      %3634 = sbr.rel (0) target = $region29
    $region28: #{encoder_forward.1} parent=1 // pred_region
      %3635 = dma.done [#allocation3], 256
    $region29: #{encoder_forward.1} parent=1 // pred_fallthru
      _
    %3636 = vsyncpa [#allocation3], 1

</llo_original>
